<compile_context>
chip_gen: v5e
topology: v5e:2x2
jax: 0.10.0
libtpu: 0.0.40
codegen_flags: <defaults>
</compile_context>

<pallas_src>
import jax
import jax.numpy as jnp
from jax.experimental import pallas as pl
from jax.experimental.pallas import tpu as pltpu

NUM_FEATURES = 9
LAYER_DIMS = [(NUM_FEATURES, 256), (256, 512), (512, 1024),
              (1024, 256), (256, 128), (128, 1)]

TILE_B_MAX = 1024     # multiple of 256 (v6e/v7x MXU) and 128 (v5e MXU)
MIN_SPLIT_B = 512     # only force an even tile count if halves stay >= 256 rows


def _cdiv(a, b):
    return -(-a // b)


def _round_up(n, m):
    return _cdiv(n, m) * m


def _choose_tiling(batch):
    """Minimal-padding batch tiling; even tile count (v7x megacore) when cheap."""
    num_tiles = _cdiv(batch, TILE_B_MAX)
    if num_tiles % 2 == 1 and batch >= MIN_SPLIT_B:
        num_tiles += 1          # balance the two v7x TensorCores
    tile_b = _round_up(_cdiv(batch, num_tiles), 8)
    return num_tiles, tile_b


def _mlp_kernel(x_ref,
                w0, b0, w1, b1, w2, b2, w3, b3, w4, b4, w5, b5,
                o_ref):
    """One batch tile of the fused 6-layer MLP (all activations stay in VMEM)."""
    # Cast the (tile_b, 9) f32 input once; activations stay bf16 end-to-end
    # (half the VMEM / load-store traffic of the big intermediates), while
    # every matmul accumulates in f32 on the MXU.
    h = x_ref[...].astype(jnp.bfloat16)

    def linear_relu(h, w_ref, b_ref):
        y = jnp.dot(h, w_ref[...], preferred_element_type=jnp.float32)
        # Bias + ReLU + bf16 downcast fused into the epilogue.
        return jnp.maximum(y + b_ref[...], 0.0).astype(jnp.bfloat16)

    h = linear_relu(h, w0, b0)
    h = linear_relu(h, w1, b1)
    h = linear_relu(h, w2, b2)
    h = linear_relu(h, w3, b3)
    h = linear_relu(h, w4, b4)                      # (tile_b, 128) bf16

    # Output layer (128 -> 1), expressed as (1,128) @ (tile_b,128)^T so the
    # result is already a lane-dense (1, tile_b) row -> unmasked stores,
    # instead of a (tile_b, 1) column with one useful lane per vreg.
    y = jax.lax.dot_general(
        w5[...], h, dimension_numbers=(((1,), (1,)), ((), ())),
        preferred_element_type=jnp.float32)          # (1, tile_b) f32
    o_ref[0] = (y + b5[...]).astype(o_ref.dtype)

    # NOTE: the weight/bias blocks have constant index_maps; single-buffering
    # them (pipeline_mode=pl.Buffered(1)) would save ~2 MiB of VMEM but is not
    # needed at this tile size / VMEM budget.


def multiple_regression_forward(x, params, *, tile_b=None):
    """x: (B, NUM_FEATURES) float32; params: flat list [w0, b0, ..., w5, b5]."""
    batch = x.shape[0]
    if tile_b is None:
        num_tiles, tile_b = _choose_tiling(batch)
    else:
        tile_b = _round_up(tile_b, 8)
        num_tiles = _cdiv(batch, tile_b)
    b_padded = num_tiles * tile_b
    if b_padded != batch:
        x = jnp.pad(x, ((0, b_padded - batch), (0, 0)))

    # Present the final (128, 1) weight as a (1, 128) row for the transposed
    # last-layer matmul.
    kparams = list(params[:-2]) + [params[-2].reshape(1, 128), params[-1]]

    # x / out are tiled over the batch grid; every weight/bias has a constant
    # index_map so it is DMA'd into VMEM once and stays resident across tiles.
    def const_spec(p):
        return pl.BlockSpec(p.shape, lambda i: (0, 0))

    in_specs = [pl.BlockSpec((tile_b, NUM_FEATURES), lambda i: (i, 0))]
    in_specs += [const_spec(p) for p in kparams]

    out = pl.pallas_call(
        _mlp_kernel,
        out_shape=jax.ShapeDtypeStruct((num_tiles, 1, tile_b), jnp.float32),
        grid=(num_tiles,),
        in_specs=in_specs,
        out_specs=pl.BlockSpec((1, 1, tile_b), lambda i: (i, 0, 0)),
        compiler_params=pltpu.CompilerParams(
            dimension_semantics=("parallel",),       # megacore shard on v7x
            # > v5e's 16 MiB scoped default; plenty for tile_b <= 1024 and
            # well inside v7x's 64 MiB physical VMEM (re-derive if tile_b
            # is ever pushed past ~2048).
            vmem_limit_bytes=32 * 1024 * 1024),
    )(x, *kparams)
    # (num_tiles, 1, tile_b) row-major flatten restores batch order.
    return out.reshape(b_padded, 1)[:batch]


def init_params(key, weight_dtype=jnp.bfloat16):
    """PyTorch-style (Kaiming-uniform) init; weights stored in bf16, biases f32."""
    params = []
    for (fan_in, fan_out) in LAYER_DIMS:
        key, kw, kb = jax.random.split(key, 3)
        bound = 1.0 / jnp.sqrt(float(fan_in))
        w = jax.random.uniform(kw, (fan_in, fan_out), jnp.float32,
                               minval=-bound, maxval=bound).astype(weight_dtype)
        b = jax.random.uniform(kb, (1, fan_out), jnp.float32,
                               minval=-bound, maxval=bound)
        params.extend([w, b])
    return params


def reference_forward(x, params):
    """Plain-JAX reference (same bf16-weight / f32-accumulate math)."""
    h = x
    for i in range(0, 10, 2):
        w, b = params[i], params[i + 1]
        h = jnp.maximum(
            jnp.dot(h.astype(w.dtype), w,
                    preferred_element_type=jnp.float32) + b, 0.0)
    w5, b5 = params[10], params[11]
    return jnp.dot(h, w5.astype(jnp.float32)) + b5


if __name__ == "__main__":
    key = jax.random.PRNGKey(0)
    key, kx = jax.random.split(key)
    params = init_params(key)

    # Small batch (latency / weight-fetch-bound path): single tile of 8 rows.
    batch = 8
    x = jax.random.normal(kx, (batch, NUM_FEATURES), dtype=jnp.float32)
    out = jax.block_until_ready(multiple_regression_forward(x, params))
    ref = reference_forward(x, params)
    assert out.shape == (batch, 1), out.shape
    assert jnp.allclose(out, ref, atol=2e-2, rtol=2e-2), "small-batch mismatch"

    # Larger, non-tile-multiple batch: exercises the padding-minimizing tiling
    # (520 -> 2 tiles of 264, padded to 528 instead of 768), VMEM-resident
    # weights across grid steps, and the lane-dense output path.
    key, kx2 = jax.random.split(key)
    batch2 = 520
    x2 = jax.random.normal(kx2, (batch2, NUM_FEATURES), dtype=jnp.float32)
    out2 = jax.block_until_ready(multiple_regression_forward(x2, params))
    ref2 = reference_forward(x2, params)
    assert out2.shape == (batch2, 1), out2.shape
    assert jnp.allclose(out2, ref2, atol=2e-2, rtol=2e-2), "large-batch mismatch"

    # Big tile-multiple batch: single-grid-step-per-core path at tile_b=1024.
    key, kx3 = jax.random.split(key)
    batch3 = 2048
    x3 = jax.random.normal(kx3, (batch3, NUM_FEATURES), dtype=jnp.float32)
    out3 = jax.block_until_ready(multiple_regression_forward(x3, params))
    ref3 = reference_forward(x3, params)
    assert out3.shape == (batch3, 1), out3.shape
    assert jnp.allclose(out3, ref3, atol=2e-2, rtol=2e-2), "huge-batch mismatch"

    print("KERNEL_OK")
</pallas_src>

<mosaic_0001>
module attributes {stable_mosaic.version = 11 : i64} {
  func.func @_mlp_kernel(%arg0: i32, %arg1: memref<8x9xf32, #tpu.memory_space<vmem>>, %arg2: memref<9x256xbf16, #tpu.memory_space<vmem>>, %arg3: memref<1x256xf32, #tpu.memory_space<vmem>>, %arg4: memref<256x512xbf16, #tpu.memory_space<vmem>>, %arg5: memref<1x512xf32, #tpu.memory_space<vmem>>, %arg6: memref<512x1024xbf16, #tpu.memory_space<vmem>>, %arg7: memref<1x1024xf32, #tpu.memory_space<vmem>>, %arg8: memref<1024x256xbf16, #tpu.memory_space<vmem>>, %arg9: memref<1x256xf32, #tpu.memory_space<vmem>>, %arg10: memref<256x128xbf16, #tpu.memory_space<vmem>>, %arg11: memref<1x128xf32, #tpu.memory_space<vmem>>, %arg12: memref<1x128xbf16, #tpu.memory_space<vmem>>, %arg13: memref<1x1xf32, #tpu.memory_space<vmem>>, %arg14: memref<1x1x8xf32, #tpu.memory_space<vmem>>) attributes {dimension_semantics = [#tpu.dimension_semantics<parallel>], iteration_bounds = array<i64: 1>, scalar_prefetch = 0 : i64, scratch_operands = 0 : i64, tpu.core_type = #tpu.core_type<tc>, window_params = [{transform_indices = @transform_0, window_bounds = array<i64: 8, 9>}, {pipeline_mode = #tpu.pipeline_mode<synchronous>, transform_indices = @transform_1, window_bounds = array<i64: 9, 256>}, {pipeline_mode = #tpu.pipeline_mode<synchronous>, transform_indices = @transform_2, window_bounds = array<i64: 1, 256>}, {pipeline_mode = #tpu.pipeline_mode<synchronous>, transform_indices = @transform_3, window_bounds = array<i64: 256, 512>}, {pipeline_mode = #tpu.pipeline_mode<synchronous>, transform_indices = @transform_4, window_bounds = array<i64: 1, 512>}, {pipeline_mode = #tpu.pipeline_mode<synchronous>, transform_indices = @transform_5, window_bounds = array<i64: 512, 1024>}, {pipeline_mode = #tpu.pipeline_mode<synchronous>, transform_indices = @transform_6, window_bounds = array<i64: 1, 1024>}, {pipeline_mode = #tpu.pipeline_mode<synchronous>, transform_indices = @transform_7, window_bounds = array<i64: 1024, 256>}, {pipeline_mode = #tpu.pipeline_mode<synchronous>, transform_indices = @transform_8, window_bounds = array<i64: 1, 256>}, {pipeline_mode = #tpu.pipeline_mode<synchronous>, transform_indices = @transform_9, window_bounds = array<i64: 256, 128>}, {pipeline_mode = #tpu.pipeline_mode<synchronous>, transform_indices = @transform_10, window_bounds = array<i64: 1, 128>}, {pipeline_mode = #tpu.pipeline_mode<synchronous>, transform_indices = @transform_11, window_bounds = array<i64: 1, 128>}, {pipeline_mode = #tpu.pipeline_mode<synchronous>, transform_indices = @transform_12, window_bounds = array<i64: 1, 1>}, {transform_indices = @transform_13, window_bounds = array<i64: 1, 1, 8>}]} {
    %c0 = arith.constant 0 : index
    %c0_0 = arith.constant 0 : index
    %0 = vector.load %arg1[%c0, %c0_0] : memref<8x9xf32, #tpu.memory_space<vmem>>, vector<8x9xf32>
    %1 = arith.truncf %0 : vector<8x9xf32> to vector<8x9xbf16>
    %c0_1 = arith.constant 0 : index
    %c0_2 = arith.constant 0 : index
    %2 = vector.load %arg2[%c0_1, %c0_2] : memref<9x256xbf16, #tpu.memory_space<vmem>>, vector<9x256xbf16>
    %cst = arith.constant dense<0.000000e+00> : vector<8x256xf32>
    %3 = tpu.matmul %1, %2, %cst {dimension_numbers = #tpu.dot_dimension_numbers<[1], [0], [0], [1], [0, 0, 1, 1], [], []>} : vector<8x9xbf16>, vector<9x256xbf16>, vector<8x256xf32> -> vector<8x256xf32>
    %c0_3 = arith.constant 0 : index
    %c0_4 = arith.constant 0 : index
    %4 = vector.load %arg3[%c0_3, %c0_4] : memref<1x256xf32, #tpu.memory_space<vmem>>, vector<1x256xf32>
    %5 = vector.broadcast %4 : vector<1x256xf32> to vector<8x256xf32>
    %6 = arith.addf %3, %5 : vector<8x256xf32>
    %cst_5 = arith.constant 0.000000e+00 : f32
    %7 = vector.broadcast %cst_5 : f32 to vector<8x256xf32>
    %8 = arith.maximumf %6, %7 : vector<8x256xf32>
    %9 = arith.truncf %8 : vector<8x256xf32> to vector<8x256xbf16>
    %c0_6 = arith.constant 0 : index
    %c0_7 = arith.constant 0 : index
    %10 = vector.load %arg4[%c0_6, %c0_7] : memref<256x512xbf16, #tpu.memory_space<vmem>>, vector<256x512xbf16>
    %cst_8 = arith.constant dense<0.000000e+00> : vector<8x512xf32>
    %11 = tpu.matmul %9, %10, %cst_8 {dimension_numbers = #tpu.dot_dimension_numbers<[1], [0], [0], [1], [0, 0, 1, 1], [], []>} : vector<8x256xbf16>, vector<256x512xbf16>, vector<8x512xf32> -> vector<8x512xf32>
    %c0_9 = arith.constant 0 : index
    %c0_10 = arith.constant 0 : index
    %12 = vector.load %arg5[%c0_9, %c0_10] : memref<1x512xf32, #tpu.memory_space<vmem>>, vector<1x512xf32>
    %13 = vector.broadcast %12 : vector<1x512xf32> to vector<8x512xf32>
    %14 = arith.addf %11, %13 : vector<8x512xf32>
    %cst_11 = arith.constant 0.000000e+00 : f32
    %15 = vector.broadcast %cst_11 : f32 to vector<8x512xf32>
    %16 = arith.maximumf %14, %15 : vector<8x512xf32>
    %17 = arith.truncf %16 : vector<8x512xf32> to vector<8x512xbf16>
    %c0_12 = arith.constant 0 : index
    %c0_13 = arith.constant 0 : index
    %18 = vector.load %arg6[%c0_12, %c0_13] : memref<512x1024xbf16, #tpu.memory_space<vmem>>, vector<512x1024xbf16>
    %cst_14 = arith.constant dense<0.000000e+00> : vector<8x1024xf32>
    %19 = tpu.matmul %17, %18, %cst_14 {dimension_numbers = #tpu.dot_dimension_numbers<[1], [0], [0], [1], [0, 0, 1, 1], [], []>} : vector<8x512xbf16>, vector<512x1024xbf16>, vector<8x1024xf32> -> vector<8x1024xf32>
    %c0_15 = arith.constant 0 : index
    %c0_16 = arith.constant 0 : index
    %20 = vector.load %arg7[%c0_15, %c0_16] : memref<1x1024xf32, #tpu.memory_space<vmem>>, vector<1x1024xf32>
    %21 = vector.broadcast %20 : vector<1x1024xf32> to vector<8x1024xf32>
    %22 = arith.addf %19, %21 : vector<8x1024xf32>
    %cst_17 = arith.constant 0.000000e+00 : f32
    %23 = vector.broadcast %cst_17 : f32 to vector<8x1024xf32>
    %24 = arith.maximumf %22, %23 : vector<8x1024xf32>
    %25 = arith.truncf %24 : vector<8x1024xf32> to vector<8x1024xbf16>
    %c0_18 = arith.constant 0 : index
    %c0_19 = arith.constant 0 : index
    %26 = vector.load %arg8[%c0_18, %c0_19] : memref<1024x256xbf16, #tpu.memory_space<vmem>>, vector<1024x256xbf16>
    %cst_20 = arith.constant dense<0.000000e+00> : vector<8x256xf32>
    %27 = tpu.matmul %25, %26, %cst_20 {dimension_numbers = #tpu.dot_dimension_numbers<[1], [0], [0], [1], [0, 0, 1, 1], [], []>} : vector<8x1024xbf16>, vector<1024x256xbf16>, vector<8x256xf32> -> vector<8x256xf32>
    %c0_21 = arith.constant 0 : index
    %c0_22 = arith.constant 0 : index
    %28 = vector.load %arg9[%c0_21, %c0_22] : memref<1x256xf32, #tpu.memory_space<vmem>>, vector<1x256xf32>
    %29 = vector.broadcast %28 : vector<1x256xf32> to vector<8x256xf32>
    %30 = arith.addf %27, %29 : vector<8x256xf32>
    %cst_23 = arith.constant 0.000000e+00 : f32
    %31 = vector.broadcast %cst_23 : f32 to vector<8x256xf32>
    %32 = arith.maximumf %30, %31 : vector<8x256xf32>
    %33 = arith.truncf %32 : vector<8x256xf32> to vector<8x256xbf16>
    %c0_24 = arith.constant 0 : index
    %c0_25 = arith.constant 0 : index
    %34 = vector.load %arg10[%c0_24, %c0_25] : memref<256x128xbf16, #tpu.memory_space<vmem>>, vector<256x128xbf16>
    %cst_26 = arith.constant dense<0.000000e+00> : vector<8x128xf32>
    %35 = tpu.matmul %33, %34, %cst_26 {dimension_numbers = #tpu.dot_dimension_numbers<[1], [0], [0], [1], [0, 0, 1, 1], [], []>} : vector<8x256xbf16>, vector<256x128xbf16>, vector<8x128xf32> -> vector<8x128xf32>
    %c0_27 = arith.constant 0 : index
    %c0_28 = arith.constant 0 : index
    %36 = vector.load %arg11[%c0_27, %c0_28] : memref<1x128xf32, #tpu.memory_space<vmem>>, vector<1x128xf32>
    %37 = vector.broadcast %36 : vector<1x128xf32> to vector<8x128xf32>
    %38 = arith.addf %35, %37 : vector<8x128xf32>
    %cst_29 = arith.constant 0.000000e+00 : f32
    %39 = vector.broadcast %cst_29 : f32 to vector<8x128xf32>
    %40 = arith.maximumf %38, %39 : vector<8x128xf32>
    %41 = arith.truncf %40 : vector<8x128xf32> to vector<8x128xbf16>
    %c0_30 = arith.constant 0 : index
    %c0_31 = arith.constant 0 : index
    %42 = vector.load %arg12[%c0_30, %c0_31] : memref<1x128xbf16, #tpu.memory_space<vmem>>, vector<1x128xbf16>
    %cst_32 = arith.constant dense<0.000000e+00> : vector<1x8xf32>
    %43 = tpu.matmul %42, %41, %cst_32 {dimension_numbers = #tpu.dot_dimension_numbers<[1], [1], [0], [0], [0, 0, 1, 0], [], []>} : vector<1x128xbf16>, vector<8x128xbf16>, vector<1x8xf32> -> vector<1x8xf32>
    %c0_33 = arith.constant 0 : index
    %c0_34 = arith.constant 0 : index
    %44 = vector.load %arg13[%c0_33, %c0_34] : memref<1x1xf32, #tpu.memory_space<vmem>>, vector<1x1xf32>
    %45 = vector.broadcast %44 : vector<1x1xf32> to vector<1x8xf32>
    %46 = arith.addf %43, %45 : vector<1x8xf32>
    %c0_35 = arith.constant 0 : index
    %c0_36 = arith.constant 0 : index
    %c0_37 = arith.constant 0 : index
    %47 = vector.load %arg14[%c0_35, %c0_36, %c0_37] : memref<1x1x8xf32, #tpu.memory_space<vmem>>, vector<1x1x8xf32>
    %48 = vector.shape_cast %47 : vector<1x1x8xf32> to vector<1x8xf32>
    %49 = vector.shape_cast %46 : vector<1x8xf32> to vector<1x1x8xf32>
    tpu.vector_store %arg14[%c0_35, %c0_36, %c0_37], %49 {strides = array<i32>} : memref<1x1x8xf32, #tpu.memory_space<vmem>>, vector<1x1x8xf32>,
    return
  }
  func.func @transform_0(%arg0: i32) -> (i32, i32) {
    %c0_i32 = arith.constant 0 : i32
    %c0_i32_0 = arith.constant 0 : i32
    return %arg0, %c0_i32 : i32, i32
  }
  func.func @transform_1(%arg0: i32) -> (i32, i32) {
    %c0_i32 = arith.constant 0 : i32
    %c0_i32_0 = arith.constant 0 : i32
    %c0_i32_1 = arith.constant 0 : i32
    return %c0_i32, %c0_i32_0 : i32, i32
  }
  func.func @transform_2(%arg0: i32) -> (i32, i32) {
    %c0_i32 = arith.constant 0 : i32
    %c0_i32_0 = arith.constant 0 : i32
    %c0_i32_1 = arith.constant 0 : i32
    return %c0_i32, %c0_i32_0 : i32, i32
  }
  func.func @transform_3(%arg0: i32) -> (i32, i32) {
    %c0_i32 = arith.constant 0 : i32
    %c0_i32_0 = arith.constant 0 : i32
    %c0_i32_1 = arith.constant 0 : i32
    return %c0_i32, %c0_i32_0 : i32, i32
  }
  func.func @transform_4(%arg0: i32) -> (i32, i32) {
    %c0_i32 = arith.constant 0 : i32
    %c0_i32_0 = arith.constant 0 : i32
    %c0_i32_1 = arith.constant 0 : i32
    return %c0_i32, %c0_i32_0 : i32, i32
  }
  func.func @transform_5(%arg0: i32) -> (i32, i32) {
    %c0_i32 = arith.constant 0 : i32
    %c0_i32_0 = arith.constant 0 : i32
    %c0_i32_1 = arith.constant 0 : i32
    return %c0_i32, %c0_i32_0 : i32, i32
  }
  func.func @transform_6(%arg0: i32) -> (i32, i32) {
    %c0_i32 = arith.constant 0 : i32
    %c0_i32_0 = arith.constant 0 : i32
    %c0_i32_1 = arith.constant 0 : i32
    return %c0_i32, %c0_i32_0 : i32, i32
  }
  func.func @transform_7(%arg0: i32) -> (i32, i32) {
    %c0_i32 = arith.constant 0 : i32
    %c0_i32_0 = arith.constant 0 : i32
    %c0_i32_1 = arith.constant 0 : i32
    return %c0_i32, %c0_i32_0 : i32, i32
  }
  func.func @transform_8(%arg0: i32) -> (i32, i32) {
    %c0_i32 = arith.constant 0 : i32
    %c0_i32_0 = arith.constant 0 : i32
    %c0_i32_1 = arith.constant 0 : i32
    return %c0_i32, %c0_i32_0 : i32, i32
  }
  func.func @transform_9(%arg0: i32) -> (i32, i32) {
    %c0_i32 = arith.constant 0 : i32
    %c0_i32_0 = arith.constant 0 : i32
    %c0_i32_1 = arith.constant 0 : i32
    return %c0_i32, %c0_i32_0 : i32, i32
  }
  func.func @transform_10(%arg0: i32) -> (i32, i32) {
    %c0_i32 = arith.constant 0 : i32
    %c0_i32_0 = arith.constant 0 : i32
    %c0_i32_1 = arith.constant 0 : i32
    return %c0_i32, %c0_i32_0 : i32, i32
  }
  func.func @transform_11(%arg0: i32) -> (i32, i32) {
    %c0_i32 = arith.constant 0 : i32
    %c0_i32_0 = arith.constant 0 : i32
    %c0_i32_1 = arith.constant 0 : i32
    return %c0_i32, %c0_i32_0 : i32, i32
  }
  func.func @transform_12(%arg0: i32) -> (i32, i32) {
    %c0_i32 = arith.constant 0 : i32
    %c0_i32_0 = arith.constant 0 : i32
    %c0_i32_1 = arith.constant 0 : i32
    return %c0_i32, %c0_i32_0 : i32, i32
  }
  func.func @transform_13(%arg0: i32) -> (i32, i32, i32) {
    %c0_i32 = arith.constant 0 : i32
    %c0_i32_0 = arith.constant 0 : i32
    %c0_i32_1 = arith.constant 0 : i32
    return %arg0, %c0_i32, %c0_i32_0 : i32, i32, i32
  }
}

</mosaic_0001>

<llo_original>
// kernel: tpu_custom_call.1
$region0: #{tpu_custom_call.1}
  #allocation0 [shape = 'u32[]', space=smem, size = 0x4, offset = 0x4, fixed_abs, tag = 'smem constant byte address 0x4 - core index']
  #allocation1 [shape = 'u32[72,128]{1,0:T(1,128)}', space=vmem, size = 0x9000, scoped, tag = 'internal scratch']
  #allocation2 [shape = 'f32[1,1]{1,0:T(1,128)S(1)}', space=vmem, size = 0x200, scoped, tag = 'scoped memory for tpu_custom_call.1']
  %s0 = inlined_call_operand.hbm [shape: f32[8,9], index: 0, kind: input, shape index: {}]
  %s1 = inlined_call_operand.hbm [shape: bf16[9,256], index: 1, kind: input, shape index: {}]
  %s2 = inlined_call_operand.hbm [shape: f32[1,256], index: 2, kind: input, shape index: {}]
  %s3 = inlined_call_operand.hbm [shape: bf16[256,512], index: 3, kind: input, shape index: {}]
  %s4 = inlined_call_operand.vmem [shape: f32[1,512], index: 4, kind: input, shape index: {}]
  %s5 = inlined_call_operand.hbm [shape: bf16[512,1024], index: 5, kind: input, shape index: {}]
  %s6 = inlined_call_operand.hbm [shape: f32[1,1024], index: 6, kind: input, shape index: {}]
  %s7 = inlined_call_operand.hbm [shape: bf16[1024,256], index: 7, kind: input, shape index: {}]
  %s8 = inlined_call_operand.vmem [shape: f32[1,256], index: 8, kind: input, shape index: {}]
  %s9 = inlined_call_operand.hbm [shape: bf16[256,128], index: 9, kind: input, shape index: {}]
  %s10 = inlined_call_operand.vmem [shape: f32[1,128], index: 10, kind: input, shape index: {}]
  %s11 = inlined_call_operand.vmem [shape: bf16[1,128], index: 11, kind: input, shape index: {}]
  %s12 = inlined_call_operand.<no memory space> [shape: f32[1,1], index: 12, kind: input, shape index: {}]
  %s13 = inlined_call_operand.hbm [shape: f32[1,1,8], index: 13, kind: output, shape index: {}]
  %s14 = sld [smem:[#allocation0]]
  $region94: #{tpu_custom_call.1} parent=0
    _
  %s16 = ssub.s32 1, %s14
  %s17 = scalar_select 0, %s16, %s14
  %v18 = vstv %s12
  %19 = vst [vmem:[#allocation2] sm:$0x1] %v18
  $region1: #{tpu_custom_call.1} parent=0
    #allocation3 [shape = 'u8[4096]{0}', space=vmem, size = 0x1000, scoped, tag = 'input window, operand 0, single buffered']
    #allocation4 [shape = 's32[1]{0}', space=sflag, size = 0x4, scoped, tag = 'scoped memory for tpu_custom_call.1']
    #allocation5 [shape = 's32[1]{0}', space=sflag, size = 0x4, scoped, tag = 'scoped memory for tpu_custom_call.1']
    #allocation6 [shape = 'u8[8192]{0}', space=vmem, size = 0x2000, scoped, tag = 'input window, operand 1, single buffered']
    #allocation7 [shape = 's32[1]{0}', space=sflag, size = 0x4, scoped, tag = 'scoped memory for tpu_custom_call.1']
    #allocation8 [shape = 'u8[1024]{0}', space=vmem, size = 0x400, scoped, tag = 'input window, operand 2, single buffered']
    #allocation9 [shape = 'u8[262144]{0}', space=vmem, size = 0x40000, scoped, tag = 'input window, operand 3, single buffered']
    #allocation10 [shape = 's32[1]{0}', space=sflag, size = 0x4, scoped, tag = 'scoped memory for tpu_custom_call.1']
    #allocation11 [shape = 'u8[1048576]{0}', space=vmem, size = 0x100000, scoped, tag = 'input window, operand 5, single buffered']
    #allocation12 [shape = 'u8[4096]{0}', space=vmem, size = 0x1000, scoped, tag = 'input window, operand 6, single buffered']
    #allocation13 [shape = 's32[1]{0}', space=sflag, size = 0x4, scoped, tag = 'scoped memory for tpu_custom_call.1']
    #allocation14 [shape = 'u8[524288]{0}', space=vmem, size = 0x80000, scoped, tag = 'input window, operand 7, single buffered']
    #allocation15 [shape = 'u8[65536]{0}', space=vmem, size = 0x10000, scoped, tag = 'input window, operand 9, single buffered']
    #allocation16 [shape = 's32[1]{0}', space=sflag, size = 0x4, scoped, tag = 'scoped memory for tpu_custom_call.1']
    #allocation17 [shape = 'u8[512]{0}', space=vmem, size = 0x400, scoped, tag = 'output window, operand 0, single buffered']
    %20 = vsyncpa [#allocation4], 0
    %21 = vsyncpa [#allocation7], 0
    %22 = vsyncpa [#allocation10], 0
    %23 = vsyncpa [#allocation13], 0
    %24 = vsyncpa [#allocation16], 0
    %25 = vsyncpa [#allocation5], 0
    // Predicated region
    $region2: #{tpu_custom_call.1} parent=1 // pred_check
      _
    $region3: #{tpu_custom_call.1} parent=1 // pred_check_branch
      %27 = sbr.rel (0) target = $region5
    $region4: #{tpu_custom_call.1} parent=1 // pred_region
      %29 = vsyncadd [#allocation4], 0
      %s31 = sshll.u32 %s0, 4
      %s32 = int_to_ptr.hbm [resolvable:$true] %s31
      %s33 = sshll.u32 [#allocation3], 4
      %s34 = int_to_ptr.vmem [resolvable:$true] %s33
      %36 = dma.hbm_to_vmem [thread:$0]  %s32, 128, %s34, [#allocation4]
    $region5: #{tpu_custom_call.1} parent=1 // pred_fallthru
      _
    // Predicated region
    $region6: #{tpu_custom_call.1} parent=1 // pred_check
      _
    $region7: #{tpu_custom_call.1} parent=1 // pred_check_branch
      %38 = sbr.rel (0) target = $region9
    $region8: #{tpu_custom_call.1} parent=1 // pred_region
      %40 = vsyncadd [#allocation7], 0
      %s41 = sshll.u32 %s1, 4
      %s42 = int_to_ptr.hbm [resolvable:$true] %s41
      %s43 = sshll.u32 [#allocation6], 4
      %s44 = int_to_ptr.vmem [resolvable:$true] %s43
      %49 = dma.hbm_to_vmem [thread:$0]  %s42, 256, %s44, [#allocation7], 128, 128, 8
    $region9: #{tpu_custom_call.1} parent=1 // pred_fallthru
      _
    // Predicated region
    $region10: #{tpu_custom_call.1} parent=1 // pred_check
      _
    $region11: #{tpu_custom_call.1} parent=1 // pred_check_branch
      %51 = sbr.rel (0) target = $region13
    $region12: #{tpu_custom_call.1} parent=1 // pred_region
      %53 = vsyncadd [#allocation7], 0
      %s55 = sshll.u32 %s2, 4
      %s56 = int_to_ptr.hbm [resolvable:$true] %s55
      %s57 = sshll.u32 [#allocation8], 4
      %s58 = int_to_ptr.vmem [resolvable:$true] %s57
      %60 = dma.hbm_to_vmem [thread:$0]  %s56, 32, %s58, [#allocation7]
    $region13: #{tpu_custom_call.1} parent=1 // pred_fallthru
      _
    // Predicated region
    $region14: #{tpu_custom_call.1} parent=1 // pred_check
      _
    $region15: #{tpu_custom_call.1} parent=1 // pred_check_branch
      %62 = sbr.rel (0) target = $region17
    $region16: #{tpu_custom_call.1} parent=1 // pred_region
      %64 = vsyncadd [#allocation10], 0
      %s65 = sshll.u32 %s3, 4
      %s66 = int_to_ptr.hbm [resolvable:$true] %s65
      %s67 = sshll.u32 [#allocation9], 4
      %s68 = int_to_ptr.vmem [resolvable:$true] %s67
      %73 = dma.hbm_to_vmem [thread:$0]  %s66, 8192, %s68, [#allocation10], 256, 256, 16
    $region17: #{tpu_custom_call.1} parent=1 // pred_fallthru
      _
    // Predicated region
    $region18: #{tpu_custom_call.1} parent=1 // pred_check
      _
    $region19: #{tpu_custom_call.1} parent=1 // pred_check_branch
      %75 = sbr.rel (0) target = $region21
    $region20: #{tpu_custom_call.1} parent=1 // pred_region
      _
    $region21: #{tpu_custom_call.1} parent=1 // pred_fallthru
      _
    // Predicated region
    $region22: #{tpu_custom_call.1} parent=1 // pred_check
      _
    $region23: #{tpu_custom_call.1} parent=1 // pred_check_branch
      %77 = sbr.rel (0) target = $region25
    $region24: #{tpu_custom_call.1} parent=1 // pred_region
      %79 = vsyncadd [#allocation10], 0
      %s80 = sshll.u32 %s5, 4
      %s81 = int_to_ptr.hbm [resolvable:$true] %s80
      %s82 = sshll.u32 [#allocation11], 4
      %s83 = int_to_ptr.vmem [resolvable:$true] %s82
      %88 = dma.hbm_to_vmem [thread:$0]  %s81, 32768, %s83, [#allocation10], 512, 512, 32
    $region25: #{tpu_custom_call.1} parent=1 // pred_fallthru
      _
    // Predicated region
    $region26: #{tpu_custom_call.1} parent=1 // pred_check
      _
    $region27: #{tpu_custom_call.1} parent=1 // pred_check_branch
      %90 = sbr.rel (0) target = $region29
    $region28: #{tpu_custom_call.1} parent=1 // pred_region
      %92 = vsyncadd [#allocation13], 0
      %s94 = sshll.u32 %s6, 4
      %s95 = int_to_ptr.hbm [resolvable:$true] %s94
      %s96 = sshll.u32 [#allocation12], 4
      %s97 = int_to_ptr.vmem [resolvable:$true] %s96
      %99 = dma.hbm_to_vmem [thread:$0]  %s95, 128, %s97, [#allocation13]
    $region29: #{tpu_custom_call.1} parent=1 // pred_fallthru
      _
    // Predicated region
    $region30: #{tpu_custom_call.1} parent=1 // pred_check
      _
    $region31: #{tpu_custom_call.1} parent=1 // pred_check_branch
      %101 = sbr.rel (0) target = $region33
    $region32: #{tpu_custom_call.1} parent=1 // pred_region
      %103 = vsyncadd [#allocation13], 0
      %s104 = sshll.u32 %s7, 4
      %s105 = int_to_ptr.hbm [resolvable:$true] %s104
      %s106 = sshll.u32 [#allocation14], 4
      %s107 = int_to_ptr.vmem [resolvable:$true] %s106
      %112 = dma.hbm_to_vmem [thread:$0]  %s105, 16384, %s107, [#allocation13], 128, 128, 8
    $region33: #{tpu_custom_call.1} parent=1 // pred_fallthru
      _
    // Predicated region
    $region34: #{tpu_custom_call.1} parent=1 // pred_check
      _
    $region35: #{tpu_custom_call.1} parent=1 // pred_check_branch
      %114 = sbr.rel (0) target = $region37
    $region36: #{tpu_custom_call.1} parent=1 // pred_region
      _
    $region37: #{tpu_custom_call.1} parent=1 // pred_fallthru
      _
    // Predicated region
    $region38: #{tpu_custom_call.1} parent=1 // pred_check
      _
    $region39: #{tpu_custom_call.1} parent=1 // pred_check_branch
      %116 = sbr.rel (0) target = $region41
    $region40: #{tpu_custom_call.1} parent=1 // pred_region
      %118 = vsyncadd [#allocation16], 0
      %s119 = sshll.u32 %s9, 4
      %s120 = int_to_ptr.hbm [resolvable:$true] %s119
      %s121 = sshll.u32 [#allocation15], 4
      %s122 = int_to_ptr.vmem [resolvable:$true] %s121
      %127 = dma.hbm_to_vmem [thread:$0]  %s120, 2048, %s122, [#allocation16], 64, 64, 4
    $region41: #{tpu_custom_call.1} parent=1 // pred_fallthru
      _
    // Predicated region
    $region42: #{tpu_custom_call.1} parent=1 // pred_check
      _
    $region43: #{tpu_custom_call.1} parent=1 // pred_check_branch
      %129 = sbr.rel (0) target = $region45
    $region44: #{tpu_custom_call.1} parent=1 // pred_region
      _
    $region45: #{tpu_custom_call.1} parent=1 // pred_fallthru
      _
    // Predicated region
    $region46: #{tpu_custom_call.1} parent=1 // pred_check
      _
    $region47: #{tpu_custom_call.1} parent=1 // pred_check_branch
      %131 = sbr.rel (0) target = $region49
    $region48: #{tpu_custom_call.1} parent=1 // pred_region
      _
    $region49: #{tpu_custom_call.1} parent=1 // pred_fallthru
      _
    // Predicated region
    $region50: #{tpu_custom_call.1} parent=1 // pred_check
      _
    $region51: #{tpu_custom_call.1} parent=1 // pred_check_branch
      %133 = sbr.rel (0) target = $region53
    $region52: #{tpu_custom_call.1} parent=1 // pred_region
      _
    $region53: #{tpu_custom_call.1} parent=1 // pred_fallthru
      _
    // Predicated region
    $region54: #{tpu_custom_call.1} parent=1 // pred_check
      _
    $region55: #{tpu_custom_call.1} parent=1 // pred_check_branch
      %135 = sbr.rel (0) target = $region57
    $region56: #{tpu_custom_call.1} parent=1 // pred_region
      %137 = dma.done [#allocation4], 128
    $region57: #{tpu_custom_call.1} parent=1 // pred_fallthru
      _
    // Predicated region
    $region58: #{tpu_custom_call.1} parent=1 // pred_check
      _
    $region59: #{tpu_custom_call.1} parent=1 // pred_check_branch
      %139 = sbr.rel (0) target = $region61
    $region60: #{tpu_custom_call.1} parent=1 // pred_region
      %141 = dma.done [#allocation7], 256
    $region61: #{tpu_custom_call.1} parent=1 // pred_fallthru
      _
    // Predicated region
    $region62: #{tpu_custom_call.1} parent=1 // pred_check
      _
    $region63: #{tpu_custom_call.1} parent=1 // pred_check_branch
      %143 = sbr.rel (0) target = $region65
    $region64: #{tpu_custom_call.1} parent=1 // pred_region
      %145 = dma.done [#allocation7], 32
    $region65: #{tpu_custom_call.1} parent=1 // pred_fallthru
      _
    // Predicated region
    $region66: #{tpu_custom_call.1} parent=1 // pred_check
      _
    $region67: #{tpu_custom_call.1} parent=1 // pred_check_branch
      %147 = sbr.rel (0) target = $region69
    $region68: #{tpu_custom_call.1} parent=1 // pred_region
      %149 = dma.done [#allocation10], 8192
    $region69: #{tpu_custom_call.1} parent=1 // pred_fallthru
      _
    // Predicated region
    $region70: #{tpu_custom_call.1} parent=1 // pred_check
      _
    $region71: #{tpu_custom_call.1} parent=1 // pred_check_branch
      %151 = sbr.rel (0) target = $region73
    $region72: #{tpu_custom_call.1} parent=1 // pred_region
      %153 = dma.done [#allocation10], 32768
    $region73: #{tpu_custom_call.1} parent=1 // pred_fallthru
      _
    // Predicated region
    $region74: #{tpu_custom_call.1} parent=1 // pred_check
      _
    $region75: #{tpu_custom_call.1} parent=1 // pred_check_branch
      %155 = sbr.rel (0) target = $region77
    $region76: #{tpu_custom_call.1} parent=1 // pred_region
      %157 = dma.done [#allocation13], 128
    $region77: #{tpu_custom_call.1} parent=1 // pred_fallthru
      _
    // Predicated region
    $region78: #{tpu_custom_call.1} parent=1 // pred_check
      _
    $region79: #{tpu_custom_call.1} parent=1 // pred_check_branch
      %159 = sbr.rel (0) target = $region81
    $region80: #{tpu_custom_call.1} parent=1 // pred_region
      %161 = dma.done [#allocation13], 16384
    $region81: #{tpu_custom_call.1} parent=1 // pred_fallthru
      _
    // Predicated region
    $region82: #{tpu_custom_call.1} parent=1 // pred_check
      _
    $region83: #{tpu_custom_call.1} parent=1 // pred_check_branch
      %163 = sbr.rel (0) target = $region85
    $region84: #{tpu_custom_call.1} parent=1 // pred_region
      %165 = dma.done [#allocation16], 2048
    $region85: #{tpu_custom_call.1} parent=1 // pred_fallthru
      _
    %v167 = vld [vmem:[#allocation3] sm:$0xff]
    %v168 = vpack.c.bf16 %v167, %v167
    %v169 = vld [vmem:[#allocation6] sm:$0xff]
    %v170 = vld [vmem:[#allocation6 + $0x8] sm:$0x11]
    %v171 = vld [vmem:[#allocation8] sm:$0x3]
    %v173 = vperm.slane %v171, 0
    %v174 = vperm.slane %v171, 1
    %v179 = vunpack.c.l.b16 %v169
    %v180 = vunpack.c.h.b16 %v169
    %v181 = vunpack.c.l.b16 %v170
    %v182 = vunpack.c.h.b16 %v170
    %v183 = vpack.c.b16 %v181, %v179
    %v184 = vpack.c.b16 %v182, %v180
    %vm185 = vcmask 72704
    %v187 = vsel %vm185, %v168, 0
    %vm189 = vcmask 1043456
    %vm190 = vcmask 1044480
    %v191 = vsel %vm189, 4294967295, 65535
    %v192 = vsel %vm190, %v191, 0
    %v194 = vand.u32 %v183, %v192
    %v197 = vand.u32 %v184, %v192
    %199 = vmatpush.bf16.msra.mxu0 0
    %200 = vmatpush.bf16.msra.mxu0 0
    %201 = vmatpush.bf16.msra.mxu0 0
    %202 = vmatpush.bf16.msra.mxu0 0
    %203 = vmatpush.bf16.msra.mxu0 0
    %204 = vmatpush.bf16.msra.mxu0 0
    %205 = vmatpush.bf16.msra.mxu0 0
    %206 = vmatpush.bf16.msra.mxu0 %v194
    %207 = vmatmul.bf16.gmra.mxu0 %v187
    %v208 = vpop.f32.mrf.mxu0
    %v209 = vadd.f32 %v173, %v208
    %v210 = vpop.f32.mrf.mxu0
    %211 = vdwg.mxu0
    %212 = vmatpush.bf16.msra.mxu0 0
    %213 = vmatpush.bf16.msra.mxu0 0
    %214 = vmatpush.bf16.msra.mxu0 0
    %215 = vmatpush.bf16.msra.mxu0 0
    %216 = vmatpush.bf16.msra.mxu0 0
    %217 = vmatpush.bf16.msra.mxu0 0
    %218 = vmatpush.bf16.msra.mxu0 0
    %219 = vmatpush.bf16.msra.mxu0 %v197
    %220 = vmatmul.bf16.gmra.mxu0 %v187
    %v221 = vpop.f32.mrf.mxu0
    %v222 = vadd.f32 %v174, %v221
    %v223 = vpop.f32.mrf.mxu0
    %224 = vdwg.mxu0
    %v225 = vmax.f32 %v209, 0.0
    %v226 = vmax.f32 %v222, 0.0
    %v227 = vpack.c.bf16 %v225, %v225
    %v228 = vpack.c.bf16 %v226, %v226
    %v229 = vld [vmem:[#allocation9] sm:$0xff]
    %v230 = vld [vmem:[#allocation9 + $0x8] sm:$0xff]
    %v231 = vld [vmem:[#allocation9 + $0x10] sm:$0xff]
    %v232 = vld [vmem:[#allocation9 + $0x18] sm:$0xff]
    %v233 = vld [vmem:[#allocation9 + $0x20] sm:$0xff]
    %v234 = vld [vmem:[#allocation9 + $0x28] sm:$0xff]
    %v235 = vld [vmem:[#allocation9 + $0x30] sm:$0xff]
    %v236 = vld [vmem:[#allocation9 + $0x38] sm:$0xff]
    %v237 = vld [vmem:[#allocation9 + $0x40] sm:$0xff]
    %v238 = vld [vmem:[#allocation9 + $0x48] sm:$0xff]
    %v239 = vld [vmem:[#allocation9 + $0x50] sm:$0xff]
    %v240 = vld [vmem:[#allocation9 + $0x58] sm:$0xff]
    %v241 = vld [vmem:[#allocation9 + $0x60] sm:$0xff]
    %v242 = vld [vmem:[#allocation9 + $0x68] sm:$0xff]
    %v243 = vld [vmem:[#allocation9 + $0x70] sm:$0xff]
    %v244 = vld [vmem:[#allocation9 + $0x78] sm:$0xff]
    %v245 = vld [vmem:[#allocation9 + $0x80] sm:$0xff]
    %v246 = vld [vmem:[#allocation9 + $0x88] sm:$0xff]
    %v247 = vld [vmem:[#allocation9 + $0x90] sm:$0xff]
    %v248 = vld [vmem:[#allocation9 + $0x98] sm:$0xff]
    %v249 = vld [vmem:[#allocation9 + $0xa0] sm:$0xff]
    %v250 = vld [vmem:[#allocation9 + $0xa8] sm:$0xff]
    %v251 = vld [vmem:[#allocation9 + $0xb0] sm:$0xff]
    %v252 = vld [vmem:[#allocation9 + $0xb8] sm:$0xff]
    %v253 = vld [vmem:[#allocation9 + $0xc0] sm:$0xff]
    %v254 = vld [vmem:[#allocation9 + $0xc8] sm:$0xff]
    %v255 = vld [vmem:[#allocation9 + $0xd0] sm:$0xff]
    %v256 = vld [vmem:[#allocation9 + $0xd8] sm:$0xff]
    %v257 = vld [vmem:[#allocation9 + $0xe0] sm:$0xff]
    %v258 = vld [vmem:[#allocation9 + $0xe8] sm:$0xff]
    %v259 = vld [vmem:[#allocation9 + $0xf0] sm:$0xff]
    %v260 = vld [vmem:[#allocation9 + $0xf8] sm:$0xff]
    %v261 = vld [vmem:[#allocation9 + $0x100] sm:$0xff]
    %v262 = vld [vmem:[#allocation9 + $0x108] sm:$0xff]
    %v263 = vld [vmem:[#allocation9 + $0x110] sm:$0xff]
    %v264 = vld [vmem:[#allocation9 + $0x118] sm:$0xff]
    %v265 = vld [vmem:[#allocation9 + $0x120] sm:$0xff]
    %v266 = vld [vmem:[#allocation9 + $0x128] sm:$0xff]
    %v267 = vld [vmem:[#allocation9 + $0x130] sm:$0xff]
    %v268 = vld [vmem:[#allocation9 + $0x138] sm:$0xff]
    %v269 = vld [vmem:[#allocation9 + $0x140] sm:$0xff]
    %v270 = vld [vmem:[#allocation9 + $0x148] sm:$0xff]
    %v271 = vld [vmem:[#allocation9 + $0x150] sm:$0xff]
    %v272 = vld [vmem:[#allocation9 + $0x158] sm:$0xff]
    %v273 = vld [vmem:[#allocation9 + $0x160] sm:$0xff]
    %v274 = vld [vmem:[#allocation9 + $0x168] sm:$0xff]
    %v275 = vld [vmem:[#allocation9 + $0x170] sm:$0xff]
    %v276 = vld [vmem:[#allocation9 + $0x178] sm:$0xff]
    %v277 = vld [vmem:[#allocation9 + $0x180] sm:$0xff]
    %v278 = vld [vmem:[#allocation9 + $0x188] sm:$0xff]
    %v279 = vld [vmem:[#allocation9 + $0x190] sm:$0xff]
    %v280 = vld [vmem:[#allocation9 + $0x198] sm:$0xff]
    %v281 = vld [vmem:[#allocation9 + $0x1a0] sm:$0xff]
    %v282 = vld [vmem:[#allocation9 + $0x1a8] sm:$0xff]
    %v283 = vld [vmem:[#allocation9 + $0x1b0] sm:$0xff]
    %v284 = vld [vmem:[#allocation9 + $0x1b8] sm:$0xff]
    %v285 = vld [vmem:[#allocation9 + $0x1c0] sm:$0xff]
    %v286 = vld [vmem:[#allocation9 + $0x1c8] sm:$0xff]
    %v287 = vld [vmem:[#allocation9 + $0x1d0] sm:$0xff]
    %v288 = vld [vmem:[#allocation9 + $0x1d8] sm:$0xff]
    %v289 = vld [vmem:[#allocation9 + $0x1e0] sm:$0xff]
    %v290 = vld [vmem:[#allocation9 + $0x1e8] sm:$0xff]
    %v291 = vld [vmem:[#allocation9 + $0x1f0] sm:$0xff]
    %v292 = vld [vmem:[#allocation9 + $0x1f8] sm:$0xff]
    %v293 = vld [vmem:[%s4] sm:$0xf]
    %v295 = vperm.slane %v293, 0
    %v296 = vperm.slane %v293, 1
    %v297 = vperm.slane %v293, 2
    %v298 = vperm.slane %v293, 3
    %v367 = vunpack.c.l.b16 %v229
    %v368 = vunpack.c.h.b16 %v229
    %v369 = vunpack.c.l.b16 %v230
    %v370 = vunpack.c.h.b16 %v230
    %v371 = vunpack.c.l.b16 %v231
    %v372 = vunpack.c.h.b16 %v231
    %v373 = vunpack.c.l.b16 %v232
    %v374 = vunpack.c.h.b16 %v232
    %v375 = vunpack.c.l.b16 %v233
    %v376 = vunpack.c.h.b16 %v233
    %v377 = vunpack.c.l.b16 %v234
    %v378 = vunpack.c.h.b16 %v234
    %v379 = vunpack.c.l.b16 %v235
    %v380 = vunpack.c.h.b16 %v235
    %v381 = vunpack.c.l.b16 %v236
    %v382 = vunpack.c.h.b16 %v236
    %v383 = vunpack.c.l.b16 %v237
    %v384 = vunpack.c.h.b16 %v237
    %v385 = vunpack.c.l.b16 %v238
    %v386 = vunpack.c.h.b16 %v238
    %v387 = vunpack.c.l.b16 %v239
    %v388 = vunpack.c.h.b16 %v239
    %v389 = vunpack.c.l.b16 %v240
    %v390 = vunpack.c.h.b16 %v240
    %v391 = vunpack.c.l.b16 %v241
    %v392 = vunpack.c.h.b16 %v241
    %v393 = vunpack.c.l.b16 %v242
    %v394 = vunpack.c.h.b16 %v242
    %v395 = vunpack.c.l.b16 %v243
    %v396 = vunpack.c.h.b16 %v243
    %v397 = vunpack.c.l.b16 %v244
    %v398 = vunpack.c.h.b16 %v244
    %v399 = vunpack.c.l.b16 %v245
    %v400 = vunpack.c.h.b16 %v245
    %v401 = vunpack.c.l.b16 %v246
    %v402 = vunpack.c.h.b16 %v246
    %v403 = vunpack.c.l.b16 %v247
    %v404 = vunpack.c.h.b16 %v247
    %v405 = vunpack.c.l.b16 %v248
    %v406 = vunpack.c.h.b16 %v248
    %v407 = vunpack.c.l.b16 %v249
    %v408 = vunpack.c.h.b16 %v249
    %v409 = vunpack.c.l.b16 %v250
    %v410 = vunpack.c.h.b16 %v250
    %v411 = vunpack.c.l.b16 %v251
    %v412 = vunpack.c.h.b16 %v251
    %v413 = vunpack.c.l.b16 %v252
    %v414 = vunpack.c.h.b16 %v252
    %v415 = vunpack.c.l.b16 %v253
    %v416 = vunpack.c.h.b16 %v253
    %v417 = vunpack.c.l.b16 %v254
    %v418 = vunpack.c.h.b16 %v254
    %v419 = vunpack.c.l.b16 %v255
    %v420 = vunpack.c.h.b16 %v255
    %v421 = vunpack.c.l.b16 %v256
    %v422 = vunpack.c.h.b16 %v256
    %v423 = vunpack.c.l.b16 %v257
    %v424 = vunpack.c.h.b16 %v257
    %v425 = vunpack.c.l.b16 %v258
    %v426 = vunpack.c.h.b16 %v258
    %v427 = vunpack.c.l.b16 %v259
    %v428 = vunpack.c.h.b16 %v259
    %v429 = vunpack.c.l.b16 %v260
    %v430 = vunpack.c.h.b16 %v260
    %v431 = vunpack.c.l.b16 %v261
    %v432 = vunpack.c.h.b16 %v261
    %v433 = vunpack.c.l.b16 %v262
    %v434 = vunpack.c.h.b16 %v262
    %v435 = vunpack.c.l.b16 %v263
    %v436 = vunpack.c.h.b16 %v263
    %v437 = vunpack.c.l.b16 %v264
    %v438 = vunpack.c.h.b16 %v264
    %v439 = vunpack.c.l.b16 %v265
    %v440 = vunpack.c.h.b16 %v265
    %v441 = vunpack.c.l.b16 %v266
    %v442 = vunpack.c.h.b16 %v266
    %v443 = vunpack.c.l.b16 %v267
    %v444 = vunpack.c.h.b16 %v267
    %v445 = vunpack.c.l.b16 %v268
    %v446 = vunpack.c.h.b16 %v268
    %v447 = vunpack.c.l.b16 %v269
    %v448 = vunpack.c.h.b16 %v269
    %v449 = vunpack.c.l.b16 %v270
    %v450 = vunpack.c.h.b16 %v270
    %v451 = vunpack.c.l.b16 %v271
    %v452 = vunpack.c.h.b16 %v271
    %v453 = vunpack.c.l.b16 %v272
    %v454 = vunpack.c.h.b16 %v272
    %v455 = vunpack.c.l.b16 %v273
    %v456 = vunpack.c.h.b16 %v273
    %v457 = vunpack.c.l.b16 %v274
    %v458 = vunpack.c.h.b16 %v274
    %v459 = vunpack.c.l.b16 %v275
    %v460 = vunpack.c.h.b16 %v275
    %v461 = vunpack.c.l.b16 %v276
    %v462 = vunpack.c.h.b16 %v276
    %v463 = vunpack.c.l.b16 %v277
    %v464 = vunpack.c.h.b16 %v277
    %v465 = vunpack.c.l.b16 %v278
    %v466 = vunpack.c.h.b16 %v278
    %v467 = vunpack.c.l.b16 %v279
    %v468 = vunpack.c.h.b16 %v279
    %v469 = vunpack.c.l.b16 %v280
    %v470 = vunpack.c.h.b16 %v280
    %v471 = vunpack.c.l.b16 %v281
    %v472 = vunpack.c.h.b16 %v281
    %v473 = vunpack.c.l.b16 %v282
    %v474 = vunpack.c.h.b16 %v282
    %v475 = vunpack.c.l.b16 %v283
    %v476 = vunpack.c.h.b16 %v283
    %v477 = vunpack.c.l.b16 %v284
    %v478 = vunpack.c.h.b16 %v284
    %v479 = vunpack.c.l.b16 %v285
    %v480 = vunpack.c.h.b16 %v285
    %v481 = vunpack.c.l.b16 %v286
    %v482 = vunpack.c.h.b16 %v286
    %v483 = vunpack.c.l.b16 %v287
    %v484 = vunpack.c.h.b16 %v287
    %v485 = vunpack.c.l.b16 %v288
    %v486 = vunpack.c.h.b16 %v288
    %v487 = vunpack.c.l.b16 %v289
    %v488 = vunpack.c.h.b16 %v289
    %v489 = vunpack.c.l.b16 %v290
    %v490 = vunpack.c.h.b16 %v290
    %v491 = vunpack.c.l.b16 %v291
    %v492 = vunpack.c.h.b16 %v291
    %v493 = vunpack.c.l.b16 %v292
    %v494 = vunpack.c.h.b16 %v292
    %v495 = vpack.c.b16 %v371, %v367
    %v496 = vpack.c.b16 %v372, %v368
    %v497 = vpack.c.b16 %v373, %v369
    %v498 = vpack.c.b16 %v374, %v370
    %v499 = vpack.c.b16 %v379, %v375
    %v500 = vpack.c.b16 %v380, %v376
    %v501 = vpack.c.b16 %v381, %v377
    %v502 = vpack.c.b16 %v382, %v378
    %v503 = vpack.c.b16 %v387, %v383
    %v504 = vpack.c.b16 %v388, %v384
    %v505 = vpack.c.b16 %v389, %v385
    %v506 = vpack.c.b16 %v390, %v386
    %v507 = vpack.c.b16 %v395, %v391
    %v508 = vpack.c.b16 %v396, %v392
    %v509 = vpack.c.b16 %v397, %v393
    %v510 = vpack.c.b16 %v398, %v394
    %v511 = vpack.c.b16 %v403, %v399
    %v512 = vpack.c.b16 %v404, %v400
    %v513 = vpack.c.b16 %v405, %v401
    %v514 = vpack.c.b16 %v406, %v402
    %v515 = vpack.c.b16 %v411, %v407
    %v516 = vpack.c.b16 %v412, %v408
    %v517 = vpack.c.b16 %v413, %v409
    %v518 = vpack.c.b16 %v414, %v410
    %v519 = vpack.c.b16 %v419, %v415
    %v520 = vpack.c.b16 %v420, %v416
    %v521 = vpack.c.b16 %v421, %v417
    %v522 = vpack.c.b16 %v422, %v418
    %v523 = vpack.c.b16 %v427, %v423
    %v524 = vpack.c.b16 %v428, %v424
    %v525 = vpack.c.b16 %v429, %v425
    %v526 = vpack.c.b16 %v430, %v426
    %v527 = vpack.c.b16 %v435, %v431
    %v528 = vpack.c.b16 %v436, %v432
    %v529 = vpack.c.b16 %v437, %v433
    %v530 = vpack.c.b16 %v438, %v434
    %v531 = vpack.c.b16 %v443, %v439
    %v532 = vpack.c.b16 %v444, %v440
    %v533 = vpack.c.b16 %v445, %v441
    %v534 = vpack.c.b16 %v446, %v442
    %v535 = vpack.c.b16 %v451, %v447
    %v536 = vpack.c.b16 %v452, %v448
    %v537 = vpack.c.b16 %v453, %v449
    %v538 = vpack.c.b16 %v454, %v450
    %v539 = vpack.c.b16 %v459, %v455
    %v540 = vpack.c.b16 %v460, %v456
    %v541 = vpack.c.b16 %v461, %v457
    %v542 = vpack.c.b16 %v462, %v458
    %v543 = vpack.c.b16 %v467, %v463
    %v544 = vpack.c.b16 %v468, %v464
    %v545 = vpack.c.b16 %v469, %v465
    %v546 = vpack.c.b16 %v470, %v466
    %v547 = vpack.c.b16 %v475, %v471
    %v548 = vpack.c.b16 %v476, %v472
    %v549 = vpack.c.b16 %v477, %v473
    %v550 = vpack.c.b16 %v478, %v474
    %v551 = vpack.c.b16 %v483, %v479
    %v552 = vpack.c.b16 %v484, %v480
    %v553 = vpack.c.b16 %v485, %v481
    %v554 = vpack.c.b16 %v486, %v482
    %v555 = vpack.c.b16 %v491, %v487
    %v556 = vpack.c.b16 %v492, %v488
    %v557 = vpack.c.b16 %v493, %v489
    %v558 = vpack.c.b16 %v494, %v490
    %623 = vmatpush.bf16.msra.mxu0 %v523
    %624 = vmatpush.bf16.msra.mxu0 %v519
    %625 = vmatpush.bf16.msra.mxu0 %v515
    %626 = vmatpush.bf16.msra.mxu0 %v511
    %627 = vmatpush.bf16.msra.mxu0 %v507
    %628 = vmatpush.bf16.msra.mxu0 %v503
    %629 = vmatpush.bf16.msra.mxu0 %v499
    %630 = vmatpush.bf16.msra.mxu0 %v495
    %631 = vmatmul.bf16.gmra.mxu0 %v227
    %v632 = vpop.f32.mrf.mxu0
    %v633 = vadd.f32 %v295, %v632
    %v634 = vpop.f32.mrf.mxu0
    %635 = vdwg.mxu0
    %636 = vmatpush.bf16.msra.mxu0 %v555
    %637 = vmatpush.bf16.msra.mxu0 %v551
    %638 = vmatpush.bf16.msra.mxu0 %v547
    %639 = vmatpush.bf16.msra.mxu0 %v543
    %640 = vmatpush.bf16.msra.mxu0 %v539
    %641 = vmatpush.bf16.msra.mxu0 %v535
    %642 = vmatpush.bf16.msra.mxu0 %v531
    %643 = vmatpush.bf16.msra.mxu0 %v527
    %644 = vmatmul.bf16.gmra.mxu0 %v228
    %v645 = vpop.f32.mrf.mxu0
    %v646 = vadd.f32 %v633, %v645
    %v647 = vpop.f32.mrf.mxu0
    %648 = vdwg.mxu0
    %649 = vmatpush.bf16.msra.mxu0 %v524
    %650 = vmatpush.bf16.msra.mxu0 %v520
    %651 = vmatpush.bf16.msra.mxu0 %v516
    %652 = vmatpush.bf16.msra.mxu0 %v512
    %653 = vmatpush.bf16.msra.mxu0 %v508
    %654 = vmatpush.bf16.msra.mxu0 %v504
    %655 = vmatpush.bf16.msra.mxu0 %v500
    %656 = vmatpush.bf16.msra.mxu0 %v496
    %657 = vmatmul.bf16.gmra.mxu0 %v227
    %v658 = vpop.f32.mrf.mxu0
    %v659 = vadd.f32 %v296, %v658
    %v660 = vpop.f32.mrf.mxu0
    %661 = vdwg.mxu0
    %662 = vmatpush.bf16.msra.mxu0 %v556
    %663 = vmatpush.bf16.msra.mxu0 %v552
    %664 = vmatpush.bf16.msra.mxu0 %v548
    %665 = vmatpush.bf16.msra.mxu0 %v544
    %666 = vmatpush.bf16.msra.mxu0 %v540
    %667 = vmatpush.bf16.msra.mxu0 %v536
    %668 = vmatpush.bf16.msra.mxu0 %v532
    %669 = vmatpush.bf16.msra.mxu0 %v528
    %670 = vmatmul.bf16.gmra.mxu0 %v228
    %v671 = vpop.f32.mrf.mxu0
    %v672 = vadd.f32 %v659, %v671
    %v673 = vpop.f32.mrf.mxu0
    %674 = vdwg.mxu0
    %675 = vmatpush.bf16.msra.mxu0 %v525
    %676 = vmatpush.bf16.msra.mxu0 %v521
    %677 = vmatpush.bf16.msra.mxu0 %v517
    %678 = vmatpush.bf16.msra.mxu0 %v513
    %679 = vmatpush.bf16.msra.mxu0 %v509
    %680 = vmatpush.bf16.msra.mxu0 %v505
    %681 = vmatpush.bf16.msra.mxu0 %v501
    %682 = vmatpush.bf16.msra.mxu0 %v497
    %683 = vmatmul.bf16.gmra.mxu0 %v227
    %v684 = vpop.f32.mrf.mxu0
    %v685 = vadd.f32 %v297, %v684
    %v686 = vpop.f32.mrf.mxu0
    %687 = vdwg.mxu0
    %688 = vmatpush.bf16.msra.mxu0 %v557
    %689 = vmatpush.bf16.msra.mxu0 %v553
    %690 = vmatpush.bf16.msra.mxu0 %v549
    %691 = vmatpush.bf16.msra.mxu0 %v545
    %692 = vmatpush.bf16.msra.mxu0 %v541
    %693 = vmatpush.bf16.msra.mxu0 %v537
    %694 = vmatpush.bf16.msra.mxu0 %v533
    %695 = vmatpush.bf16.msra.mxu0 %v529
    %696 = vmatmul.bf16.gmra.mxu0 %v228
    %v697 = vpop.f32.mrf.mxu0
    %v698 = vadd.f32 %v685, %v697
    %v699 = vpop.f32.mrf.mxu0
    %700 = vdwg.mxu0
    %701 = vmatpush.bf16.msra.mxu0 %v526
    %702 = vmatpush.bf16.msra.mxu0 %v522
    %703 = vmatpush.bf16.msra.mxu0 %v518
    %704 = vmatpush.bf16.msra.mxu0 %v514
    %705 = vmatpush.bf16.msra.mxu0 %v510
    %706 = vmatpush.bf16.msra.mxu0 %v506
    %707 = vmatpush.bf16.msra.mxu0 %v502
    %708 = vmatpush.bf16.msra.mxu0 %v498
    %709 = vmatmul.bf16.gmra.mxu0 %v227
    %v710 = vpop.f32.mrf.mxu0
    %v711 = vadd.f32 %v298, %v710
    %v712 = vpop.f32.mrf.mxu0
    %713 = vdwg.mxu0
    %714 = vmatpush.bf16.msra.mxu0 %v558
    %715 = vmatpush.bf16.msra.mxu0 %v554
    %716 = vmatpush.bf16.msra.mxu0 %v550
    %717 = vmatpush.bf16.msra.mxu0 %v546
    %718 = vmatpush.bf16.msra.mxu0 %v542
    %719 = vmatpush.bf16.msra.mxu0 %v538
    %720 = vmatpush.bf16.msra.mxu0 %v534
    %721 = vmatpush.bf16.msra.mxu0 %v530
    %722 = vmatmul.bf16.gmra.mxu0 %v228
    %v723 = vpop.f32.mrf.mxu0
    %v724 = vadd.f32 %v711, %v723
    %v725 = vpop.f32.mrf.mxu0
    %726 = vdwg.mxu0
    %v727 = vmax.f32 %v646, 0.0
    %v728 = vmax.f32 %v672, 0.0
    %v729 = vmax.f32 %v698, 0.0
    %v730 = vmax.f32 %v724, 0.0
    %v731 = vpack.c.bf16 %v727, %v727
    %v732 = vpack.c.bf16 %v728, %v728
    %v733 = vpack.c.bf16 %v729, %v729
    %v734 = vpack.c.bf16 %v730, %v730
    %v735 = vld [vmem:[#allocation11] sm:$0xff]
    %v736 = vld [vmem:[#allocation11 + $0x8] sm:$0xff]
    %v737 = vld [vmem:[#allocation11 + $0x10] sm:$0xff]
    %v738 = vld [vmem:[#allocation11 + $0x18] sm:$0xff]
    %v739 = vld [vmem:[#allocation11 + $0x20] sm:$0xff]
    %v740 = vld [vmem:[#allocation11 + $0x28] sm:$0xff]
    %v741 = vld [vmem:[#allocation11 + $0x30] sm:$0xff]
    %v742 = vld [vmem:[#allocation11 + $0x38] sm:$0xff]
    %v743 = vld [vmem:[#allocation11 + $0x40] sm:$0xff]
    %v744 = vld [vmem:[#allocation11 + $0x48] sm:$0xff]
    %v745 = vld [vmem:[#allocation11 + $0x50] sm:$0xff]
    %v746 = vld [vmem:[#allocation11 + $0x58] sm:$0xff]
    %v747 = vld [vmem:[#allocation11 + $0x60] sm:$0xff]
    %v748 = vld [vmem:[#allocation11 + $0x68] sm:$0xff]
    %v749 = vld [vmem:[#allocation11 + $0x70] sm:$0xff]
    %v750 = vld [vmem:[#allocation11 + $0x78] sm:$0xff]
    %v751 = vld [vmem:[#allocation11 + $0x80] sm:$0xff]
    %v752 = vld [vmem:[#allocation11 + $0x88] sm:$0xff]
    %v753 = vld [vmem:[#allocation11 + $0x90] sm:$0xff]
    %v754 = vld [vmem:[#allocation11 + $0x98] sm:$0xff]
    %v755 = vld [vmem:[#allocation11 + $0xa0] sm:$0xff]
    %v756 = vld [vmem:[#allocation11 + $0xa8] sm:$0xff]
    %v757 = vld [vmem:[#allocation11 + $0xb0] sm:$0xff]
    %v758 = vld [vmem:[#allocation11 + $0xb8] sm:$0xff]
    %v759 = vld [vmem:[#allocation11 + $0xc0] sm:$0xff]
    %v760 = vld [vmem:[#allocation11 + $0xc8] sm:$0xff]
    %v761 = vld [vmem:[#allocation11 + $0xd0] sm:$0xff]
    %v762 = vld [vmem:[#allocation11 + $0xd8] sm:$0xff]
    %v763 = vld [vmem:[#allocation11 + $0xe0] sm:$0xff]
    %v764 = vld [vmem:[#allocation11 + $0xe8] sm:$0xff]
    %v765 = vld [vmem:[#allocation11 + $0xf0] sm:$0xff]
    %v766 = vld [vmem:[#allocation11 + $0xf8] sm:$0xff]
    %v767 = vld [vmem:[#allocation11 + $0x100] sm:$0xff]
    %v768 = vld [vmem:[#allocation11 + $0x108] sm:$0xff]
    %v769 = vld [vmem:[#allocation11 + $0x110] sm:$0xff]
    %v770 = vld [vmem:[#allocation11 + $0x118] sm:$0xff]
    %v771 = vld [vmem:[#allocation11 + $0x120] sm:$0xff]
    %v772 = vld [vmem:[#allocation11 + $0x128] sm:$0xff]
    %v773 = vld [vmem:[#allocation11 + $0x130] sm:$0xff]
    %v774 = vld [vmem:[#allocation11 + $0x138] sm:$0xff]
    %v775 = vld [vmem:[#allocation11 + $0x140] sm:$0xff]
    %v776 = vld [vmem:[#allocation11 + $0x148] sm:$0xff]
    %v777 = vld [vmem:[#allocation11 + $0x150] sm:$0xff]
    %v778 = vld [vmem:[#allocation11 + $0x158] sm:$0xff]
    %v779 = vld [vmem:[#allocation11 + $0x160] sm:$0xff]
    %v780 = vld [vmem:[#allocation11 + $0x168] sm:$0xff]
    %v781 = vld [vmem:[#allocation11 + $0x170] sm:$0xff]
    %v782 = vld [vmem:[#allocation11 + $0x178] sm:$0xff]
    %v783 = vld [vmem:[#allocation11 + $0x180] sm:$0xff]
    %v784 = vld [vmem:[#allocation11 + $0x188] sm:$0xff]
    %v785 = vld [vmem:[#allocation11 + $0x190] sm:$0xff]
    %v786 = vld [vmem:[#allocation11 + $0x198] sm:$0xff]
    %v787 = vld [vmem:[#allocation11 + $0x1a0] sm:$0xff]
    %v788 = vld [vmem:[#allocation11 + $0x1a8] sm:$0xff]
    %v789 = vld [vmem:[#allocation11 + $0x1b0] sm:$0xff]
    %v790 = vld [vmem:[#allocation11 + $0x1b8] sm:$0xff]
    %v791 = vld [vmem:[#allocation11 + $0x1c0] sm:$0xff]
    %v792 = vld [vmem:[#allocation11 + $0x1c8] sm:$0xff]
    %v793 = vld [vmem:[#allocation11 + $0x1d0] sm:$0xff]
    %v794 = vld [vmem:[#allocation11 + $0x1d8] sm:$0xff]
    %v795 = vld [vmem:[#allocation11 + $0x1e0] sm:$0xff]
    %v796 = vld [vmem:[#allocation11 + $0x1e8] sm:$0xff]
    %v797 = vld [vmem:[#allocation11 + $0x1f0] sm:$0xff]
    %v798 = vld [vmem:[#allocation11 + $0x1f8] sm:$0xff]
    %v799 = vld [vmem:[#allocation11 + $0x200] sm:$0xff]
    %v800 = vld [vmem:[#allocation11 + $0x208] sm:$0xff]
    %v801 = vld [vmem:[#allocation11 + $0x210] sm:$0xff]
    %v802 = vld [vmem:[#allocation11 + $0x218] sm:$0xff]
    %v803 = vld [vmem:[#allocation11 + $0x220] sm:$0xff]
    %v804 = vld [vmem:[#allocation11 + $0x228] sm:$0xff]
    %v805 = vld [vmem:[#allocation11 + $0x230] sm:$0xff]
    %v806 = vld [vmem:[#allocation11 + $0x238] sm:$0xff]
    %v807 = vld [vmem:[#allocation11 + $0x240] sm:$0xff]
    %v808 = vld [vmem:[#allocation11 + $0x248] sm:$0xff]
    %v809 = vld [vmem:[#allocation11 + $0x250] sm:$0xff]
    %v810 = vld [vmem:[#allocation11 + $0x258] sm:$0xff]
    %v811 = vld [vmem:[#allocation11 + $0x260] sm:$0xff]
    %v812 = vld [vmem:[#allocation11 + $0x268] sm:$0xff]
    %v813 = vld [vmem:[#allocation11 + $0x270] sm:$0xff]
    %v814 = vld [vmem:[#allocation11 + $0x278] sm:$0xff]
    %v815 = vld [vmem:[#allocation11 + $0x280] sm:$0xff]
    %v816 = vld [vmem:[#allocation11 + $0x288] sm:$0xff]
    %v817 = vld [vmem:[#allocation11 + $0x290] sm:$0xff]
    %v818 = vld [vmem:[#allocation11 + $0x298] sm:$0xff]
    %v819 = vld [vmem:[#allocation11 + $0x2a0] sm:$0xff]
    %v820 = vld [vmem:[#allocation11 + $0x2a8] sm:$0xff]
    %v821 = vld [vmem:[#allocation11 + $0x2b0] sm:$0xff]
    %v822 = vld [vmem:[#allocation11 + $0x2b8] sm:$0xff]
    %v823 = vld [vmem:[#allocation11 + $0x2c0] sm:$0xff]
    %v824 = vld [vmem:[#allocation11 + $0x2c8] sm:$0xff]
    %v825 = vld [vmem:[#allocation11 + $0x2d0] sm:$0xff]
    %v826 = vld [vmem:[#allocation11 + $0x2d8] sm:$0xff]
    %v827 = vld [vmem:[#allocation11 + $0x2e0] sm:$0xff]
    %v828 = vld [vmem:[#allocation11 + $0x2e8] sm:$0xff]
    %v829 = vld [vmem:[#allocation11 + $0x2f0] sm:$0xff]
    %v830 = vld [vmem:[#allocation11 + $0x2f8] sm:$0xff]
    %v831 = vld [vmem:[#allocation11 + $0x300] sm:$0xff]
    %v832 = vld [vmem:[#allocation11 + $0x308] sm:$0xff]
    %v833 = vld [vmem:[#allocation11 + $0x310] sm:$0xff]
    %v834 = vld [vmem:[#allocation11 + $0x318] sm:$0xff]
    %v835 = vld [vmem:[#allocation11 + $0x320] sm:$0xff]
    %v836 = vld [vmem:[#allocation11 + $0x328] sm:$0xff]
    %v837 = vld [vmem:[#allocation11 + $0x330] sm:$0xff]
    %v838 = vld [vmem:[#allocation11 + $0x338] sm:$0xff]
    %v839 = vld [vmem:[#allocation11 + $0x340] sm:$0xff]
    %v840 = vld [vmem:[#allocation11 + $0x348] sm:$0xff]
    %v841 = vld [vmem:[#allocation11 + $0x350] sm:$0xff]
    %v842 = vld [vmem:[#allocation11 + $0x358] sm:$0xff]
    %v843 = vld [vmem:[#allocation11 + $0x360] sm:$0xff]
    %v844 = vld [vmem:[#allocation11 + $0x368] sm:$0xff]
    %v845 = vld [vmem:[#allocation11 + $0x370] sm:$0xff]
    %v846 = vld [vmem:[#allocation11 + $0x378] sm:$0xff]
    %v847 = vld [vmem:[#allocation11 + $0x380] sm:$0xff]
    %v848 = vld [vmem:[#allocation11 + $0x388] sm:$0xff]
    %v849 = vld [vmem:[#allocation11 + $0x390] sm:$0xff]
    %v850 = vld [vmem:[#allocation11 + $0x398] sm:$0xff]
    %v851 = vld [vmem:[#allocation11 + $0x3a0] sm:$0xff]
    %v852 = vld [vmem:[#allocation11 + $0x3a8] sm:$0xff]
    %v853 = vld [vmem:[#allocation11 + $0x3b0] sm:$0xff]
    %v854 = vld [vmem:[#allocation11 + $0x3b8] sm:$0xff]
    %v855 = vld [vmem:[#allocation11 + $0x3c0] sm:$0xff]
    %v856 = vld [vmem:[#allocation11 + $0x3c8] sm:$0xff]
    %v857 = vld [vmem:[#allocation11 + $0x3d0] sm:$0xff]
    %v858 = vld [vmem:[#allocation11 + $0x3d8] sm:$0xff]
    %v859 = vld [vmem:[#allocation11 + $0x3e0] sm:$0xff]
    %v860 = vld [vmem:[#allocation11 + $0x3e8] sm:$0xff]
    %v861 = vld [vmem:[#allocation11 + $0x3f0] sm:$0xff]
    %v862 = vld [vmem:[#allocation11 + $0x3f8] sm:$0xff]
    %v863 = vld [vmem:[#allocation11 + $0x400] sm:$0xff]
    %v864 = vld [vmem:[#allocation11 + $0x408] sm:$0xff]
    %v865 = vld [vmem:[#allocation11 + $0x410] sm:$0xff]
    %v866 = vld [vmem:[#allocation11 + $0x418] sm:$0xff]
    %v867 = vld [vmem:[#allocation11 + $0x420] sm:$0xff]
    %v868 = vld [vmem:[#allocation11 + $0x428] sm:$0xff]
    %v869 = vld [vmem:[#allocation11 + $0x430] sm:$0xff]
    %v870 = vld [vmem:[#allocation11 + $0x438] sm:$0xff]
    %v871 = vld [vmem:[#allocation11 + $0x440] sm:$0xff]
    %v872 = vld [vmem:[#allocation11 + $0x448] sm:$0xff]
    %v873 = vld [vmem:[#allocation11 + $0x450] sm:$0xff]
    %v874 = vld [vmem:[#allocation11 + $0x458] sm:$0xff]
    %v875 = vld [vmem:[#allocation11 + $0x460] sm:$0xff]
    %v876 = vld [vmem:[#allocation11 + $0x468] sm:$0xff]
    %v877 = vld [vmem:[#allocation11 + $0x470] sm:$0xff]
    %v878 = vld [vmem:[#allocation11 + $0x478] sm:$0xff]
    %v879 = vld [vmem:[#allocation11 + $0x480] sm:$0xff]
    %v880 = vld [vmem:[#allocation11 + $0x488] sm:$0xff]
    %v881 = vld [vmem:[#allocation11 + $0x490] sm:$0xff]
    %v882 = vld [vmem:[#allocation11 + $0x498] sm:$0xff]
    %v883 = vld [vmem:[#allocation11 + $0x4a0] sm:$0xff]
    %v884 = vld [vmem:[#allocation11 + $0x4a8] sm:$0xff]
    %v885 = vld [vmem:[#allocation11 + $0x4b0] sm:$0xff]
    %v886 = vld [vmem:[#allocation11 + $0x4b8] sm:$0xff]
    %v887 = vld [vmem:[#allocation11 + $0x4c0] sm:$0xff]
    %v888 = vld [vmem:[#allocation11 + $0x4c8] sm:$0xff]
    %v889 = vld [vmem:[#allocation11 + $0x4d0] sm:$0xff]
    %v890 = vld [vmem:[#allocation11 + $0x4d8] sm:$0xff]
    %v891 = vld [vmem:[#allocation11 + $0x4e0] sm:$0xff]
    %v892 = vld [vmem:[#allocation11 + $0x4e8] sm:$0xff]
    %v893 = vld [vmem:[#allocation11 + $0x4f0] sm:$0xff]
    %v894 = vld [vmem:[#allocation11 + $0x4f8] sm:$0xff]
    %v895 = vld [vmem:[#allocation11 + $0x500] sm:$0xff]
    %v896 = vld [vmem:[#allocation11 + $0x508] sm:$0xff]
    %v897 = vld [vmem:[#allocation11 + $0x510] sm:$0xff]
    %v898 = vld [vmem:[#allocation11 + $0x518] sm:$0xff]
    %v899 = vld [vmem:[#allocation11 + $0x520] sm:$0xff]
    %v900 = vld [vmem:[#allocation11 + $0x528] sm:$0xff]
    %v901 = vld [vmem:[#allocation11 + $0x530] sm:$0xff]
    %v902 = vld [vmem:[#allocation11 + $0x538] sm:$0xff]
    %v903 = vld [vmem:[#allocation11 + $0x540] sm:$0xff]
    %v904 = vld [vmem:[#allocation11 + $0x548] sm:$0xff]
    %v905 = vld [vmem:[#allocation11 + $0x550] sm:$0xff]
    %v906 = vld [vmem:[#allocation11 + $0x558] sm:$0xff]
    %v907 = vld [vmem:[#allocation11 + $0x560] sm:$0xff]
    %v908 = vld [vmem:[#allocation11 + $0x568] sm:$0xff]
    %v909 = vld [vmem:[#allocation11 + $0x570] sm:$0xff]
    %v910 = vld [vmem:[#allocation11 + $0x578] sm:$0xff]
    %v911 = vld [vmem:[#allocation11 + $0x580] sm:$0xff]
    %v912 = vld [vmem:[#allocation11 + $0x588] sm:$0xff]
    %v913 = vld [vmem:[#allocation11 + $0x590] sm:$0xff]
    %v914 = vld [vmem:[#allocation11 + $0x598] sm:$0xff]
    %v915 = vld [vmem:[#allocation11 + $0x5a0] sm:$0xff]
    %v916 = vld [vmem:[#allocation11 + $0x5a8] sm:$0xff]
    %v917 = vld [vmem:[#allocation11 + $0x5b0] sm:$0xff]
    %v918 = vld [vmem:[#allocation11 + $0x5b8] sm:$0xff]
    %v919 = vld [vmem:[#allocation11 + $0x5c0] sm:$0xff]
    %v920 = vld [vmem:[#allocation11 + $0x5c8] sm:$0xff]
    %v921 = vld [vmem:[#allocation11 + $0x5d0] sm:$0xff]
    %v922 = vld [vmem:[#allocation11 + $0x5d8] sm:$0xff]
    %v923 = vld [vmem:[#allocation11 + $0x5e0] sm:$0xff]
    %v924 = vld [vmem:[#allocation11 + $0x5e8] sm:$0xff]
    %v925 = vld [vmem:[#allocation11 + $0x5f0] sm:$0xff]
    %v926 = vld [vmem:[#allocation11 + $0x5f8] sm:$0xff]
    %v927 = vld [vmem:[#allocation11 + $0x600] sm:$0xff]
    %v928 = vld [vmem:[#allocation11 + $0x608] sm:$0xff]
    %v929 = vld [vmem:[#allocation11 + $0x610] sm:$0xff]
    %v930 = vld [vmem:[#allocation11 + $0x618] sm:$0xff]
    %v931 = vld [vmem:[#allocation11 + $0x620] sm:$0xff]
    %v932 = vld [vmem:[#allocation11 + $0x628] sm:$0xff]
    %v933 = vld [vmem:[#allocation11 + $0x630] sm:$0xff]
    %v934 = vld [vmem:[#allocation11 + $0x638] sm:$0xff]
    %v935 = vld [vmem:[#allocation11 + $0x640] sm:$0xff]
    %v936 = vld [vmem:[#allocation11 + $0x648] sm:$0xff]
    %v937 = vld [vmem:[#allocation11 + $0x650] sm:$0xff]
    %v938 = vld [vmem:[#allocation11 + $0x658] sm:$0xff]
    %v939 = vld [vmem:[#allocation11 + $0x660] sm:$0xff]
    %v940 = vld [vmem:[#allocation11 + $0x668] sm:$0xff]
    %v941 = vld [vmem:[#allocation11 + $0x670] sm:$0xff]
    %v942 = vld [vmem:[#allocation11 + $0x678] sm:$0xff]
    %v943 = vld [vmem:[#allocation11 + $0x680] sm:$0xff]
    %v944 = vld [vmem:[#allocation11 + $0x688] sm:$0xff]
    %v945 = vld [vmem:[#allocation11 + $0x690] sm:$0xff]
    %v946 = vld [vmem:[#allocation11 + $0x698] sm:$0xff]
    %v947 = vld [vmem:[#allocation11 + $0x6a0] sm:$0xff]
    %v948 = vld [vmem:[#allocation11 + $0x6a8] sm:$0xff]
    %v949 = vld [vmem:[#allocation11 + $0x6b0] sm:$0xff]
    %v950 = vld [vmem:[#allocation11 + $0x6b8] sm:$0xff]
    %v951 = vld [vmem:[#allocation11 + $0x6c0] sm:$0xff]
    %v952 = vld [vmem:[#allocation11 + $0x6c8] sm:$0xff]
    %v953 = vld [vmem:[#allocation11 + $0x6d0] sm:$0xff]
    %v954 = vld [vmem:[#allocation11 + $0x6d8] sm:$0xff]
    %v955 = vld [vmem:[#allocation11 + $0x6e0] sm:$0xff]
    %v956 = vld [vmem:[#allocation11 + $0x6e8] sm:$0xff]
    %v957 = vld [vmem:[#allocation11 + $0x6f0] sm:$0xff]
    %v958 = vld [vmem:[#allocation11 + $0x6f8] sm:$0xff]
    %v959 = vld [vmem:[#allocation11 + $0x700] sm:$0xff]
    %v960 = vld [vmem:[#allocation11 + $0x708] sm:$0xff]
    %v961 = vld [vmem:[#allocation11 + $0x710] sm:$0xff]
    %v962 = vld [vmem:[#allocation11 + $0x718] sm:$0xff]
    %v963 = vld [vmem:[#allocation11 + $0x720] sm:$0xff]
    %v964 = vld [vmem:[#allocation11 + $0x728] sm:$0xff]
    %v965 = vld [vmem:[#allocation11 + $0x730] sm:$0xff]
    %v966 = vld [vmem:[#allocation11 + $0x738] sm:$0xff]
    %v967 = vld [vmem:[#allocation11 + $0x740] sm:$0xff]
    %v968 = vld [vmem:[#allocation11 + $0x748] sm:$0xff]
    %v969 = vld [vmem:[#allocation11 + $0x750] sm:$0xff]
    %v970 = vld [vmem:[#allocation11 + $0x758] sm:$0xff]
    %v971 = vld [vmem:[#allocation11 + $0x760] sm:$0xff]
    %v972 = vld [vmem:[#allocation11 + $0x768] sm:$0xff]
    %v973 = vld [vmem:[#allocation11 + $0x770] sm:$0xff]
    %v974 = vld [vmem:[#allocation11 + $0x778] sm:$0xff]
    %v975 = vld [vmem:[#allocation11 + $0x780] sm:$0xff]
    %v976 = vld [vmem:[#allocation11 + $0x788] sm:$0xff]
    %v977 = vld [vmem:[#allocation11 + $0x790] sm:$0xff]
    %v978 = vld [vmem:[#allocation11 + $0x798] sm:$0xff]
    %v979 = vld [vmem:[#allocation11 + $0x7a0] sm:$0xff]
    %v980 = vld [vmem:[#allocation11 + $0x7a8] sm:$0xff]
    %v981 = vld [vmem:[#allocation11 + $0x7b0] sm:$0xff]
    %v982 = vld [vmem:[#allocation11 + $0x7b8] sm:$0xff]
    %v983 = vld [vmem:[#allocation11 + $0x7c0] sm:$0xff]
    %v984 = vld [vmem:[#allocation11 + $0x7c8] sm:$0xff]
    %v985 = vld [vmem:[#allocation11 + $0x7d0] sm:$0xff]
    %v986 = vld [vmem:[#allocation11 + $0x7d8] sm:$0xff]
    %v987 = vld [vmem:[#allocation11 + $0x7e0] sm:$0xff]
    %v988 = vld [vmem:[#allocation11 + $0x7e8] sm:$0xff]
    %v989 = vld [vmem:[#allocation11 + $0x7f0] sm:$0xff]
    %v990 = vld [vmem:[#allocation11 + $0x7f8] sm:$0xff]
    %v991 = vld [vmem:[#allocation12] sm:$0xff]
    %v993 = vperm.slane %v991, 0
    %v994 = vperm.slane %v991, 1
    %v995 = vperm.slane %v991, 2
    %v996 = vperm.slane %v991, 3
    %v997 = vperm.slane %v991, 4
    %v998 = vperm.slane %v991, 5
    %v999 = vperm.slane %v991, 6
    %v1000 = vperm.slane %v991, 7
    %v1265 = vunpack.c.l.b16 %v735
    %v1266 = vunpack.c.h.b16 %v735
    %v1267 = vunpack.c.l.b16 %v736
    %v1268 = vunpack.c.h.b16 %v736
    %v1269 = vunpack.c.l.b16 %v737
    %v1270 = vunpack.c.h.b16 %v737
    %v1271 = vunpack.c.l.b16 %v738
    %v1272 = vunpack.c.h.b16 %v738
    %v1273 = vunpack.c.l.b16 %v739
    %v1274 = vunpack.c.h.b16 %v739
    %v1275 = vunpack.c.l.b16 %v740
    %v1276 = vunpack.c.h.b16 %v740
    %v1277 = vunpack.c.l.b16 %v741
    %v1278 = vunpack.c.h.b16 %v741
    %v1279 = vunpack.c.l.b16 %v742
    %v1280 = vunpack.c.h.b16 %v742
    %v1281 = vunpack.c.l.b16 %v743
    %v1282 = vunpack.c.h.b16 %v743
    %v1283 = vunpack.c.l.b16 %v744
    %v1284 = vunpack.c.h.b16 %v744
    %v1285 = vunpack.c.l.b16 %v745
    %v1286 = vunpack.c.h.b16 %v745
    %v1287 = vunpack.c.l.b16 %v746
    %v1288 = vunpack.c.h.b16 %v746
    %v1289 = vunpack.c.l.b16 %v747
    %v1290 = vunpack.c.h.b16 %v747
    %v1291 = vunpack.c.l.b16 %v748
    %v1292 = vunpack.c.h.b16 %v748
    %v1293 = vunpack.c.l.b16 %v749
    %v1294 = vunpack.c.h.b16 %v749
    %v1295 = vunpack.c.l.b16 %v750
    %v1296 = vunpack.c.h.b16 %v750
    %v1297 = vunpack.c.l.b16 %v751
    %v1298 = vunpack.c.h.b16 %v751
    %v1299 = vunpack.c.l.b16 %v752
    %v1300 = vunpack.c.h.b16 %v752
    %v1301 = vunpack.c.l.b16 %v753
    %v1302 = vunpack.c.h.b16 %v753
    %v1303 = vunpack.c.l.b16 %v754
    %v1304 = vunpack.c.h.b16 %v754
    %v1305 = vunpack.c.l.b16 %v755
    %v1306 = vunpack.c.h.b16 %v755
    %v1307 = vunpack.c.l.b16 %v756
    %v1308 = vunpack.c.h.b16 %v756
    %v1309 = vunpack.c.l.b16 %v757
    %v1310 = vunpack.c.h.b16 %v757
    %v1311 = vunpack.c.l.b16 %v758
    %v1312 = vunpack.c.h.b16 %v758
    %v1313 = vunpack.c.l.b16 %v759
    %v1314 = vunpack.c.h.b16 %v759
    %v1315 = vunpack.c.l.b16 %v760
    %v1316 = vunpack.c.h.b16 %v760
    %v1317 = vunpack.c.l.b16 %v761
    %v1318 = vunpack.c.h.b16 %v761
    %v1319 = vunpack.c.l.b16 %v762
    %v1320 = vunpack.c.h.b16 %v762
    %v1321 = vunpack.c.l.b16 %v763
    %v1322 = vunpack.c.h.b16 %v763
    %v1323 = vunpack.c.l.b16 %v764
    %v1324 = vunpack.c.h.b16 %v764
    %v1325 = vunpack.c.l.b16 %v765
    %v1326 = vunpack.c.h.b16 %v765
    %v1327 = vunpack.c.l.b16 %v766
    %v1328 = vunpack.c.h.b16 %v766
    %v1329 = vunpack.c.l.b16 %v767
    %v1330 = vunpack.c.h.b16 %v767
    %v1331 = vunpack.c.l.b16 %v768
    %v1332 = vunpack.c.h.b16 %v768
    %v1333 = vunpack.c.l.b16 %v769
    %v1334 = vunpack.c.h.b16 %v769
    %v1335 = vunpack.c.l.b16 %v770
    %v1336 = vunpack.c.h.b16 %v770
    %v1337 = vunpack.c.l.b16 %v771
    %v1338 = vunpack.c.h.b16 %v771
    %v1339 = vunpack.c.l.b16 %v772
    %v1340 = vunpack.c.h.b16 %v772
    %v1341 = vunpack.c.l.b16 %v773
    %v1342 = vunpack.c.h.b16 %v773
    %v1343 = vunpack.c.l.b16 %v774
    %v1344 = vunpack.c.h.b16 %v774
    %v1345 = vunpack.c.l.b16 %v775
    %v1346 = vunpack.c.h.b16 %v775
    %v1347 = vunpack.c.l.b16 %v776
    %v1348 = vunpack.c.h.b16 %v776
    %v1349 = vunpack.c.l.b16 %v777
    %v1350 = vunpack.c.h.b16 %v777
    %v1351 = vunpack.c.l.b16 %v778
    %v1352 = vunpack.c.h.b16 %v778
    %v1353 = vunpack.c.l.b16 %v779
    %v1354 = vunpack.c.h.b16 %v779
    %v1355 = vunpack.c.l.b16 %v780
    %v1356 = vunpack.c.h.b16 %v780
    %v1357 = vunpack.c.l.b16 %v781
    %v1358 = vunpack.c.h.b16 %v781
    %v1359 = vunpack.c.l.b16 %v782
    %v1360 = vunpack.c.h.b16 %v782
    %v1361 = vunpack.c.l.b16 %v783
    %v1362 = vunpack.c.h.b16 %v783
    %v1363 = vunpack.c.l.b16 %v784
    %v1364 = vunpack.c.h.b16 %v784
    %v1365 = vunpack.c.l.b16 %v785
    %v1366 = vunpack.c.h.b16 %v785
    %v1367 = vunpack.c.l.b16 %v786
    %v1368 = vunpack.c.h.b16 %v786
    %v1369 = vunpack.c.l.b16 %v787
    %v1370 = vunpack.c.h.b16 %v787
    %v1371 = vunpack.c.l.b16 %v788
    %v1372 = vunpack.c.h.b16 %v788
    %v1373 = vunpack.c.l.b16 %v789
    %v1374 = vunpack.c.h.b16 %v789
    %v1375 = vunpack.c.l.b16 %v790
    %v1376 = vunpack.c.h.b16 %v790
    %v1377 = vunpack.c.l.b16 %v791
    %v1378 = vunpack.c.h.b16 %v791
    %v1379 = vunpack.c.l.b16 %v792
    %v1380 = vunpack.c.h.b16 %v792
    %v1381 = vunpack.c.l.b16 %v793
    %v1382 = vunpack.c.h.b16 %v793
    %v1383 = vunpack.c.l.b16 %v794
    %v1384 = vunpack.c.h.b16 %v794
    %v1385 = vunpack.c.l.b16 %v795
    %v1386 = vunpack.c.h.b16 %v795
    %v1387 = vunpack.c.l.b16 %v796
    %v1388 = vunpack.c.h.b16 %v796
    %v1389 = vunpack.c.l.b16 %v797
    %v1390 = vunpack.c.h.b16 %v797
    %v1391 = vunpack.c.l.b16 %v798
    %v1392 = vunpack.c.h.b16 %v798
    %v1393 = vunpack.c.l.b16 %v799
    %v1394 = vunpack.c.h.b16 %v799
    %v1395 = vunpack.c.l.b16 %v800
    %v1396 = vunpack.c.h.b16 %v800
    %v1397 = vunpack.c.l.b16 %v801
    %v1398 = vunpack.c.h.b16 %v801
    %v1399 = vunpack.c.l.b16 %v802
    %v1400 = vunpack.c.h.b16 %v802
    %v1401 = vunpack.c.l.b16 %v803
    %v1402 = vunpack.c.h.b16 %v803
    %v1403 = vunpack.c.l.b16 %v804
    %v1404 = vunpack.c.h.b16 %v804
    %v1405 = vunpack.c.l.b16 %v805
    %v1406 = vunpack.c.h.b16 %v805
    %v1407 = vunpack.c.l.b16 %v806
    %v1408 = vunpack.c.h.b16 %v806
    %v1409 = vunpack.c.l.b16 %v807
    %v1410 = vunpack.c.h.b16 %v807
    %v1411 = vunpack.c.l.b16 %v808
    %v1412 = vunpack.c.h.b16 %v808
    %v1413 = vunpack.c.l.b16 %v809
    %v1414 = vunpack.c.h.b16 %v809
    %v1415 = vunpack.c.l.b16 %v810
    %v1416 = vunpack.c.h.b16 %v810
    %v1417 = vunpack.c.l.b16 %v811
    %v1418 = vunpack.c.h.b16 %v811
    %v1419 = vunpack.c.l.b16 %v812
    %v1420 = vunpack.c.h.b16 %v812
    %v1421 = vunpack.c.l.b16 %v813
    %v1422 = vunpack.c.h.b16 %v813
    %v1423 = vunpack.c.l.b16 %v814
    %v1424 = vunpack.c.h.b16 %v814
    %v1425 = vunpack.c.l.b16 %v815
    %v1426 = vunpack.c.h.b16 %v815
    %v1427 = vunpack.c.l.b16 %v816
    %v1428 = vunpack.c.h.b16 %v816
    %v1429 = vunpack.c.l.b16 %v817
    %v1430 = vunpack.c.h.b16 %v817
    %v1431 = vunpack.c.l.b16 %v818
    %v1432 = vunpack.c.h.b16 %v818
    %v1433 = vunpack.c.l.b16 %v819
    %v1434 = vunpack.c.h.b16 %v819
    %v1435 = vunpack.c.l.b16 %v820
    %v1436 = vunpack.c.h.b16 %v820
    %v1437 = vunpack.c.l.b16 %v821
    %v1438 = vunpack.c.h.b16 %v821
    %v1439 = vunpack.c.l.b16 %v822
    %v1440 = vunpack.c.h.b16 %v822
    %v1441 = vunpack.c.l.b16 %v823
    %v1442 = vunpack.c.h.b16 %v823
    %v1443 = vunpack.c.l.b16 %v824
    %v1444 = vunpack.c.h.b16 %v824
    %v1445 = vunpack.c.l.b16 %v825
    %v1446 = vunpack.c.h.b16 %v825
    %v1447 = vunpack.c.l.b16 %v826
    %v1448 = vunpack.c.h.b16 %v826
    %v1449 = vunpack.c.l.b16 %v827
    %v1450 = vunpack.c.h.b16 %v827
    %v1451 = vunpack.c.l.b16 %v828
    %v1452 = vunpack.c.h.b16 %v828
    %v1453 = vunpack.c.l.b16 %v829
    %v1454 = vunpack.c.h.b16 %v829
    %v1455 = vunpack.c.l.b16 %v830
    %v1456 = vunpack.c.h.b16 %v830
    %v1457 = vunpack.c.l.b16 %v831
    %v1458 = vunpack.c.h.b16 %v831
    %v1459 = vunpack.c.l.b16 %v832
    %v1460 = vunpack.c.h.b16 %v832
    %v1461 = vunpack.c.l.b16 %v833
    %v1462 = vunpack.c.h.b16 %v833
    %v1463 = vunpack.c.l.b16 %v834
    %v1464 = vunpack.c.h.b16 %v834
    %v1465 = vunpack.c.l.b16 %v835
    %v1466 = vunpack.c.h.b16 %v835
    %v1467 = vunpack.c.l.b16 %v836
    %v1468 = vunpack.c.h.b16 %v836
    %v1469 = vunpack.c.l.b16 %v837
    %v1470 = vunpack.c.h.b16 %v837
    %v1471 = vunpack.c.l.b16 %v838
    %v1472 = vunpack.c.h.b16 %v838
    %v1473 = vunpack.c.l.b16 %v839
    %v1474 = vunpack.c.h.b16 %v839
    %v1475 = vunpack.c.l.b16 %v840
    %v1476 = vunpack.c.h.b16 %v840
    %v1477 = vunpack.c.l.b16 %v841
    %v1478 = vunpack.c.h.b16 %v841
    %v1479 = vunpack.c.l.b16 %v842
    %v1480 = vunpack.c.h.b16 %v842
    %v1481 = vunpack.c.l.b16 %v843
    %v1482 = vunpack.c.h.b16 %v843
    %v1483 = vunpack.c.l.b16 %v844
    %v1484 = vunpack.c.h.b16 %v844
    %v1485 = vunpack.c.l.b16 %v845
    %v1486 = vunpack.c.h.b16 %v845
    %v1487 = vunpack.c.l.b16 %v846
    %v1488 = vunpack.c.h.b16 %v846
    %v1489 = vunpack.c.l.b16 %v847
    %v1490 = vunpack.c.h.b16 %v847
    %v1491 = vunpack.c.l.b16 %v848
    %v1492 = vunpack.c.h.b16 %v848
    %v1493 = vunpack.c.l.b16 %v849
    %v1494 = vunpack.c.h.b16 %v849
    %v1495 = vunpack.c.l.b16 %v850
    %v1496 = vunpack.c.h.b16 %v850
    %v1497 = vunpack.c.l.b16 %v851
    %v1498 = vunpack.c.h.b16 %v851
    %v1499 = vunpack.c.l.b16 %v852
    %v1500 = vunpack.c.h.b16 %v852
    %v1501 = vunpack.c.l.b16 %v853
    %v1502 = vunpack.c.h.b16 %v853
    %v1503 = vunpack.c.l.b16 %v854
    %v1504 = vunpack.c.h.b16 %v854
    %v1505 = vunpack.c.l.b16 %v855
    %v1506 = vunpack.c.h.b16 %v855
    %v1507 = vunpack.c.l.b16 %v856
    %v1508 = vunpack.c.h.b16 %v856
    %v1509 = vunpack.c.l.b16 %v857
    %v1510 = vunpack.c.h.b16 %v857
    %v1511 = vunpack.c.l.b16 %v858
    %v1512 = vunpack.c.h.b16 %v858
    %v1513 = vunpack.c.l.b16 %v859
    %v1514 = vunpack.c.h.b16 %v859
    %v1515 = vunpack.c.l.b16 %v860
    %v1516 = vunpack.c.h.b16 %v860
    %v1517 = vunpack.c.l.b16 %v861
    %v1518 = vunpack.c.h.b16 %v861
    %v1519 = vunpack.c.l.b16 %v862
    %v1520 = vunpack.c.h.b16 %v862
    %v1521 = vunpack.c.l.b16 %v863
    %v1522 = vunpack.c.h.b16 %v863
    %v1523 = vunpack.c.l.b16 %v864
    %v1524 = vunpack.c.h.b16 %v864
    %v1525 = vunpack.c.l.b16 %v865
    %v1526 = vunpack.c.h.b16 %v865
    %v1527 = vunpack.c.l.b16 %v866
    %v1528 = vunpack.c.h.b16 %v866
    %v1529 = vunpack.c.l.b16 %v867
    %v1530 = vunpack.c.h.b16 %v867
    %v1531 = vunpack.c.l.b16 %v868
    %v1532 = vunpack.c.h.b16 %v868
    %v1533 = vunpack.c.l.b16 %v869
    %v1534 = vunpack.c.h.b16 %v869
    %v1535 = vunpack.c.l.b16 %v870
    %v1536 = vunpack.c.h.b16 %v870
    %v1537 = vunpack.c.l.b16 %v871
    %v1538 = vunpack.c.h.b16 %v871
    %v1539 = vunpack.c.l.b16 %v872
    %v1540 = vunpack.c.h.b16 %v872
    %v1541 = vunpack.c.l.b16 %v873
    %v1542 = vunpack.c.h.b16 %v873
    %v1543 = vunpack.c.l.b16 %v874
    %v1544 = vunpack.c.h.b16 %v874
    %v1545 = vunpack.c.l.b16 %v875
    %v1546 = vunpack.c.h.b16 %v875
    %v1547 = vunpack.c.l.b16 %v876
    %v1548 = vunpack.c.h.b16 %v876
    %v1549 = vunpack.c.l.b16 %v877
    %v1550 = vunpack.c.h.b16 %v877
    %v1551 = vunpack.c.l.b16 %v878
    %v1552 = vunpack.c.h.b16 %v878
    %v1553 = vunpack.c.l.b16 %v879
    %v1554 = vunpack.c.h.b16 %v879
    %v1555 = vunpack.c.l.b16 %v880
    %v1556 = vunpack.c.h.b16 %v880
    %v1557 = vunpack.c.l.b16 %v881
    %v1558 = vunpack.c.h.b16 %v881
    %v1559 = vunpack.c.l.b16 %v882
    %v1560 = vunpack.c.h.b16 %v882
    %v1561 = vunpack.c.l.b16 %v883
    %v1562 = vunpack.c.h.b16 %v883
    %v1563 = vunpack.c.l.b16 %v884
    %v1564 = vunpack.c.h.b16 %v884
    %v1565 = vunpack.c.l.b16 %v885
    %v1566 = vunpack.c.h.b16 %v885
    %v1567 = vunpack.c.l.b16 %v886
    %v1568 = vunpack.c.h.b16 %v886
    %v1569 = vunpack.c.l.b16 %v887
    %v1570 = vunpack.c.h.b16 %v887
    %v1571 = vunpack.c.l.b16 %v888
    %v1572 = vunpack.c.h.b16 %v888
    %v1573 = vunpack.c.l.b16 %v889
    %v1574 = vunpack.c.h.b16 %v889
    %v1575 = vunpack.c.l.b16 %v890
    %v1576 = vunpack.c.h.b16 %v890
    %v1577 = vunpack.c.l.b16 %v891
    %v1578 = vunpack.c.h.b16 %v891
    %v1579 = vunpack.c.l.b16 %v892
    %v1580 = vunpack.c.h.b16 %v892
    %v1581 = vunpack.c.l.b16 %v893
    %v1582 = vunpack.c.h.b16 %v893
    %v1583 = vunpack.c.l.b16 %v894
    %v1584 = vunpack.c.h.b16 %v894
    %v1585 = vunpack.c.l.b16 %v895
    %v1586 = vunpack.c.h.b16 %v895
    %v1587 = vunpack.c.l.b16 %v896
    %v1588 = vunpack.c.h.b16 %v896
    %v1589 = vunpack.c.l.b16 %v897
    %v1590 = vunpack.c.h.b16 %v897
    %v1591 = vunpack.c.l.b16 %v898
    %v1592 = vunpack.c.h.b16 %v898
    %v1593 = vunpack.c.l.b16 %v899
    %v1594 = vunpack.c.h.b16 %v899
    %v1595 = vunpack.c.l.b16 %v900
    %v1596 = vunpack.c.h.b16 %v900
    %v1597 = vunpack.c.l.b16 %v901
    %v1598 = vunpack.c.h.b16 %v901
    %v1599 = vunpack.c.l.b16 %v902
    %v1600 = vunpack.c.h.b16 %v902
    %v1601 = vunpack.c.l.b16 %v903
    %v1602 = vunpack.c.h.b16 %v903
    %v1603 = vunpack.c.l.b16 %v904
    %v1604 = vunpack.c.h.b16 %v904
    %v1605 = vunpack.c.l.b16 %v905
    %v1606 = vunpack.c.h.b16 %v905
    %v1607 = vunpack.c.l.b16 %v906
    %v1608 = vunpack.c.h.b16 %v906
    %v1609 = vunpack.c.l.b16 %v907
    %v1610 = vunpack.c.h.b16 %v907
    %v1611 = vunpack.c.l.b16 %v908
    %v1612 = vunpack.c.h.b16 %v908
    %v1613 = vunpack.c.l.b16 %v909
    %v1614 = vunpack.c.h.b16 %v909
    %v1615 = vunpack.c.l.b16 %v910
    %v1616 = vunpack.c.h.b16 %v910
    %v1617 = vunpack.c.l.b16 %v911
    %v1618 = vunpack.c.h.b16 %v911
    %v1619 = vunpack.c.l.b16 %v912
    %v1620 = vunpack.c.h.b16 %v912
    %v1621 = vunpack.c.l.b16 %v913
    %v1622 = vunpack.c.h.b16 %v913
    %v1623 = vunpack.c.l.b16 %v914
    %v1624 = vunpack.c.h.b16 %v914
    %v1625 = vunpack.c.l.b16 %v915
    %v1626 = vunpack.c.h.b16 %v915
    %v1627 = vunpack.c.l.b16 %v916
    %v1628 = vunpack.c.h.b16 %v916
    %v1629 = vunpack.c.l.b16 %v917
    %v1630 = vunpack.c.h.b16 %v917
    %v1631 = vunpack.c.l.b16 %v918
    %v1632 = vunpack.c.h.b16 %v918
    %v1633 = vunpack.c.l.b16 %v919
    %v1634 = vunpack.c.h.b16 %v919
    %v1635 = vunpack.c.l.b16 %v920
    %v1636 = vunpack.c.h.b16 %v920
    %v1637 = vunpack.c.l.b16 %v921
    %v1638 = vunpack.c.h.b16 %v921
    %v1639 = vunpack.c.l.b16 %v922
    %v1640 = vunpack.c.h.b16 %v922
    %v1641 = vunpack.c.l.b16 %v923
    %v1642 = vunpack.c.h.b16 %v923
    %v1643 = vunpack.c.l.b16 %v924
    %v1644 = vunpack.c.h.b16 %v924
    %v1645 = vunpack.c.l.b16 %v925
    %v1646 = vunpack.c.h.b16 %v925
    %v1647 = vunpack.c.l.b16 %v926
    %v1648 = vunpack.c.h.b16 %v926
    %v1649 = vunpack.c.l.b16 %v927
    %v1650 = vunpack.c.h.b16 %v927
    %v1651 = vunpack.c.l.b16 %v928
    %v1652 = vunpack.c.h.b16 %v928
    %v1653 = vunpack.c.l.b16 %v929
    %v1654 = vunpack.c.h.b16 %v929
    %v1655 = vunpack.c.l.b16 %v930
    %v1656 = vunpack.c.h.b16 %v930
    %v1657 = vunpack.c.l.b16 %v931
    %v1658 = vunpack.c.h.b16 %v931
    %v1659 = vunpack.c.l.b16 %v932
    %v1660 = vunpack.c.h.b16 %v932
    %v1661 = vunpack.c.l.b16 %v933
    %v1662 = vunpack.c.h.b16 %v933
    %v1663 = vunpack.c.l.b16 %v934
    %v1664 = vunpack.c.h.b16 %v934
    %v1665 = vunpack.c.l.b16 %v935
    %v1666 = vunpack.c.h.b16 %v935
    %v1667 = vunpack.c.l.b16 %v936
    %v1668 = vunpack.c.h.b16 %v936
    %v1669 = vunpack.c.l.b16 %v937
    %v1670 = vunpack.c.h.b16 %v937
    %v1671 = vunpack.c.l.b16 %v938
    %v1672 = vunpack.c.h.b16 %v938
    %v1673 = vunpack.c.l.b16 %v939
    %v1674 = vunpack.c.h.b16 %v939
    %v1675 = vunpack.c.l.b16 %v940
    %v1676 = vunpack.c.h.b16 %v940
    %v1677 = vunpack.c.l.b16 %v941
    %v1678 = vunpack.c.h.b16 %v941
    %v1679 = vunpack.c.l.b16 %v942
    %v1680 = vunpack.c.h.b16 %v942
    %v1681 = vunpack.c.l.b16 %v943
    %v1682 = vunpack.c.h.b16 %v943
    %v1683 = vunpack.c.l.b16 %v944
    %v1684 = vunpack.c.h.b16 %v944
    %v1685 = vunpack.c.l.b16 %v945
    %v1686 = vunpack.c.h.b16 %v945
    %v1687 = vunpack.c.l.b16 %v946
    %v1688 = vunpack.c.h.b16 %v946
    %v1689 = vunpack.c.l.b16 %v947
    %v1690 = vunpack.c.h.b16 %v947
    %v1691 = vunpack.c.l.b16 %v948
    %v1692 = vunpack.c.h.b16 %v948
    %v1693 = vunpack.c.l.b16 %v949
    %v1694 = vunpack.c.h.b16 %v949
    %v1695 = vunpack.c.l.b16 %v950
    %v1696 = vunpack.c.h.b16 %v950
    %v1697 = vunpack.c.l.b16 %v951
    %v1698 = vunpack.c.h.b16 %v951
    %v1699 = vunpack.c.l.b16 %v952
    %v1700 = vunpack.c.h.b16 %v952
    %v1701 = vunpack.c.l.b16 %v953
    %v1702 = vunpack.c.h.b16 %v953
    %v1703 = vunpack.c.l.b16 %v954
    %v1704 = vunpack.c.h.b16 %v954
    %v1705 = vunpack.c.l.b16 %v955
    %v1706 = vunpack.c.h.b16 %v955
    %v1707 = vunpack.c.l.b16 %v956
    %v1708 = vunpack.c.h.b16 %v956
    %v1709 = vunpack.c.l.b16 %v957
    %v1710 = vunpack.c.h.b16 %v957
    %v1711 = vunpack.c.l.b16 %v958
    %v1712 = vunpack.c.h.b16 %v958
    %v1713 = vunpack.c.l.b16 %v959
    %v1714 = vunpack.c.h.b16 %v959
    %v1715 = vunpack.c.l.b16 %v960
    %v1716 = vunpack.c.h.b16 %v960
    %v1717 = vunpack.c.l.b16 %v961
    %v1718 = vunpack.c.h.b16 %v961
    %v1719 = vunpack.c.l.b16 %v962
    %v1720 = vunpack.c.h.b16 %v962
    %v1721 = vunpack.c.l.b16 %v963
    %v1722 = vunpack.c.h.b16 %v963
    %v1723 = vunpack.c.l.b16 %v964
    %v1724 = vunpack.c.h.b16 %v964
    %v1725 = vunpack.c.l.b16 %v965
    %v1726 = vunpack.c.h.b16 %v965
    %v1727 = vunpack.c.l.b16 %v966
    %v1728 = vunpack.c.h.b16 %v966
    %v1729 = vunpack.c.l.b16 %v967
    %v1730 = vunpack.c.h.b16 %v967
    %v1731 = vunpack.c.l.b16 %v968
    %v1732 = vunpack.c.h.b16 %v968
    %v1733 = vunpack.c.l.b16 %v969
    %v1734 = vunpack.c.h.b16 %v969
    %v1735 = vunpack.c.l.b16 %v970
    %v1736 = vunpack.c.h.b16 %v970
    %v1737 = vunpack.c.l.b16 %v971
    %v1738 = vunpack.c.h.b16 %v971
    %v1739 = vunpack.c.l.b16 %v972
    %v1740 = vunpack.c.h.b16 %v972
    %v1741 = vunpack.c.l.b16 %v973
    %v1742 = vunpack.c.h.b16 %v973
    %v1743 = vunpack.c.l.b16 %v974
    %v1744 = vunpack.c.h.b16 %v974
    %v1745 = vunpack.c.l.b16 %v975
    %v1746 = vunpack.c.h.b16 %v975
    %v1747 = vunpack.c.l.b16 %v976
    %v1748 = vunpack.c.h.b16 %v976
    %v1749 = vunpack.c.l.b16 %v977
    %v1750 = vunpack.c.h.b16 %v977
    %v1751 = vunpack.c.l.b16 %v978
    %v1752 = vunpack.c.h.b16 %v978
    %v1753 = vunpack.c.l.b16 %v979
    %v1754 = vunpack.c.h.b16 %v979
    %v1755 = vunpack.c.l.b16 %v980
    %v1756 = vunpack.c.h.b16 %v980
    %v1757 = vunpack.c.l.b16 %v981
    %v1758 = vunpack.c.h.b16 %v981
    %v1759 = vunpack.c.l.b16 %v982
    %v1760 = vunpack.c.h.b16 %v982
    %v1761 = vunpack.c.l.b16 %v983
    %v1762 = vunpack.c.h.b16 %v983
    %v1763 = vunpack.c.l.b16 %v984
    %v1764 = vunpack.c.h.b16 %v984
    %v1765 = vunpack.c.l.b16 %v985
    %v1766 = vunpack.c.h.b16 %v985
    %v1767 = vunpack.c.l.b16 %v986
    %v1768 = vunpack.c.h.b16 %v986
    %v1769 = vunpack.c.l.b16 %v987
    %v1770 = vunpack.c.h.b16 %v987
    %v1771 = vunpack.c.l.b16 %v988
    %v1772 = vunpack.c.h.b16 %v988
    %v1773 = vunpack.c.l.b16 %v989
    %v1774 = vunpack.c.h.b16 %v989
    %v1775 = vunpack.c.l.b16 %v990
    %v1776 = vunpack.c.h.b16 %v990
    %v1777 = vpack.c.b16 %v1273, %v1265
    %v1778 = vpack.c.b16 %v1274, %v1266
    %v1779 = vpack.c.b16 %v1275, %v1267
    %v1780 = vpack.c.b16 %v1276, %v1268
    %v1781 = vpack.c.b16 %v1277, %v1269
    %v1782 = vpack.c.b16 %v1278, %v1270
    %v1783 = vpack.c.b16 %v1279, %v1271
    %v1784 = vpack.c.b16 %v1280, %v1272
    %v1785 = vpack.c.b16 %v1289, %v1281
    %v1786 = vpack.c.b16 %v1290, %v1282
    %v1787 = vpack.c.b16 %v1291, %v1283
    %v1788 = vpack.c.b16 %v1292, %v1284
    %v1789 = vpack.c.b16 %v1293, %v1285
    %v1790 = vpack.c.b16 %v1294, %v1286
    %v1791 = vpack.c.b16 %v1295, %v1287
    %v1792 = vpack.c.b16 %v1296, %v1288
    %v1793 = vpack.c.b16 %v1305, %v1297
    %v1794 = vpack.c.b16 %v1306, %v1298
    %v1795 = vpack.c.b16 %v1307, %v1299
    %v1796 = vpack.c.b16 %v1308, %v1300
    %v1797 = vpack.c.b16 %v1309, %v1301
    %v1798 = vpack.c.b16 %v1310, %v1302
    %v1799 = vpack.c.b16 %v1311, %v1303
    %v1800 = vpack.c.b16 %v1312, %v1304
    %v1801 = vpack.c.b16 %v1321, %v1313
    %v1802 = vpack.c.b16 %v1322, %v1314
    %v1803 = vpack.c.b16 %v1323, %v1315
    %v1804 = vpack.c.b16 %v1324, %v1316
    %v1805 = vpack.c.b16 %v1325, %v1317
    %v1806 = vpack.c.b16 %v1326, %v1318
    %v1807 = vpack.c.b16 %v1327, %v1319
    %v1808 = vpack.c.b16 %v1328, %v1320
    %v1809 = vpack.c.b16 %v1337, %v1329
    %v1810 = vpack.c.b16 %v1338, %v1330
    %v1811 = vpack.c.b16 %v1339, %v1331
    %v1812 = vpack.c.b16 %v1340, %v1332
    %v1813 = vpack.c.b16 %v1341, %v1333
    %v1814 = vpack.c.b16 %v1342, %v1334
    %v1815 = vpack.c.b16 %v1343, %v1335
    %v1816 = vpack.c.b16 %v1344, %v1336
    %v1817 = vpack.c.b16 %v1353, %v1345
    %v1818 = vpack.c.b16 %v1354, %v1346
    %v1819 = vpack.c.b16 %v1355, %v1347
    %v1820 = vpack.c.b16 %v1356, %v1348
    %v1821 = vpack.c.b16 %v1357, %v1349
    %v1822 = vpack.c.b16 %v1358, %v1350
    %v1823 = vpack.c.b16 %v1359, %v1351
    %v1824 = vpack.c.b16 %v1360, %v1352
    %v1825 = vpack.c.b16 %v1369, %v1361
    %v1826 = vpack.c.b16 %v1370, %v1362
    %v1827 = vpack.c.b16 %v1371, %v1363
    %v1828 = vpack.c.b16 %v1372, %v1364
    %v1829 = vpack.c.b16 %v1373, %v1365
    %v1830 = vpack.c.b16 %v1374, %v1366
    %v1831 = vpack.c.b16 %v1375, %v1367
    %v1832 = vpack.c.b16 %v1376, %v1368
    %v1833 = vpack.c.b16 %v1385, %v1377
    %v1834 = vpack.c.b16 %v1386, %v1378
    %v1835 = vpack.c.b16 %v1387, %v1379
    %v1836 = vpack.c.b16 %v1388, %v1380
    %v1837 = vpack.c.b16 %v1389, %v1381
    %v1838 = vpack.c.b16 %v1390, %v1382
    %v1839 = vpack.c.b16 %v1391, %v1383
    %v1840 = vpack.c.b16 %v1392, %v1384
    %v1841 = vpack.c.b16 %v1401, %v1393
    %v1842 = vpack.c.b16 %v1402, %v1394
    %v1843 = vpack.c.b16 %v1403, %v1395
    %v1844 = vpack.c.b16 %v1404, %v1396
    %v1845 = vpack.c.b16 %v1405, %v1397
    %v1846 = vpack.c.b16 %v1406, %v1398
    %v1847 = vpack.c.b16 %v1407, %v1399
    %v1848 = vpack.c.b16 %v1408, %v1400
    %v1849 = vpack.c.b16 %v1417, %v1409
    %v1850 = vpack.c.b16 %v1418, %v1410
    %v1851 = vpack.c.b16 %v1419, %v1411
    %v1852 = vpack.c.b16 %v1420, %v1412
    %v1853 = vpack.c.b16 %v1421, %v1413
    %v1854 = vpack.c.b16 %v1422, %v1414
    %v1855 = vpack.c.b16 %v1423, %v1415
    %v1856 = vpack.c.b16 %v1424, %v1416
    %v1857 = vpack.c.b16 %v1433, %v1425
    %v1858 = vpack.c.b16 %v1434, %v1426
    %v1859 = vpack.c.b16 %v1435, %v1427
    %v1860 = vpack.c.b16 %v1436, %v1428
    %v1861 = vpack.c.b16 %v1437, %v1429
    %v1862 = vpack.c.b16 %v1438, %v1430
    %v1863 = vpack.c.b16 %v1439, %v1431
    %v1864 = vpack.c.b16 %v1440, %v1432
    %v1865 = vpack.c.b16 %v1449, %v1441
    %v1866 = vpack.c.b16 %v1450, %v1442
    %v1867 = vpack.c.b16 %v1451, %v1443
    %v1868 = vpack.c.b16 %v1452, %v1444
    %v1869 = vpack.c.b16 %v1453, %v1445
    %v1870 = vpack.c.b16 %v1454, %v1446
    %v1871 = vpack.c.b16 %v1455, %v1447
    %v1872 = vpack.c.b16 %v1456, %v1448
    %v1873 = vpack.c.b16 %v1465, %v1457
    %v1874 = vpack.c.b16 %v1466, %v1458
    %v1875 = vpack.c.b16 %v1467, %v1459
    %v1876 = vpack.c.b16 %v1468, %v1460
    %v1877 = vpack.c.b16 %v1469, %v1461
    %v1878 = vpack.c.b16 %v1470, %v1462
    %v1879 = vpack.c.b16 %v1471, %v1463
    %v1880 = vpack.c.b16 %v1472, %v1464
    %v1881 = vpack.c.b16 %v1481, %v1473
    %v1882 = vpack.c.b16 %v1482, %v1474
    %v1883 = vpack.c.b16 %v1483, %v1475
    %v1884 = vpack.c.b16 %v1484, %v1476
    %v1885 = vpack.c.b16 %v1485, %v1477
    %v1886 = vpack.c.b16 %v1486, %v1478
    %v1887 = vpack.c.b16 %v1487, %v1479
    %v1888 = vpack.c.b16 %v1488, %v1480
    %v1889 = vpack.c.b16 %v1497, %v1489
    %v1890 = vpack.c.b16 %v1498, %v1490
    %v1891 = vpack.c.b16 %v1499, %v1491
    %v1892 = vpack.c.b16 %v1500, %v1492
    %v1893 = vpack.c.b16 %v1501, %v1493
    %v1894 = vpack.c.b16 %v1502, %v1494
    %v1895 = vpack.c.b16 %v1503, %v1495
    %v1896 = vpack.c.b16 %v1504, %v1496
    %v1897 = vpack.c.b16 %v1513, %v1505
    %v1898 = vpack.c.b16 %v1514, %v1506
    %v1899 = vpack.c.b16 %v1515, %v1507
    %v1900 = vpack.c.b16 %v1516, %v1508
    %v1901 = vpack.c.b16 %v1517, %v1509
    %v1902 = vpack.c.b16 %v1518, %v1510
    %v1903 = vpack.c.b16 %v1519, %v1511
    %v1904 = vpack.c.b16 %v1520, %v1512
    %v1905 = vpack.c.b16 %v1529, %v1521
    %v1906 = vpack.c.b16 %v1530, %v1522
    %v1907 = vpack.c.b16 %v1531, %v1523
    %v1908 = vpack.c.b16 %v1532, %v1524
    %v1909 = vpack.c.b16 %v1533, %v1525
    %v1910 = vpack.c.b16 %v1534, %v1526
    %v1911 = vpack.c.b16 %v1535, %v1527
    %v1912 = vpack.c.b16 %v1536, %v1528
    %v1913 = vpack.c.b16 %v1545, %v1537
    %v1914 = vpack.c.b16 %v1546, %v1538
    %v1915 = vpack.c.b16 %v1547, %v1539
    %v1916 = vpack.c.b16 %v1548, %v1540
    %v1917 = vpack.c.b16 %v1549, %v1541
    %v1918 = vpack.c.b16 %v1550, %v1542
    %v1919 = vpack.c.b16 %v1551, %v1543
    %v1920 = vpack.c.b16 %v1552, %v1544
    %v1921 = vpack.c.b16 %v1561, %v1553
    %v1922 = vpack.c.b16 %v1562, %v1554
    %v1923 = vpack.c.b16 %v1563, %v1555
    %v1924 = vpack.c.b16 %v1564, %v1556
    %v1925 = vpack.c.b16 %v1565, %v1557
    %v1926 = vpack.c.b16 %v1566, %v1558
    %v1927 = vpack.c.b16 %v1567, %v1559
    %v1928 = vpack.c.b16 %v1568, %v1560
    %v1929 = vpack.c.b16 %v1577, %v1569
    %v1930 = vpack.c.b16 %v1578, %v1570
    %v1931 = vpack.c.b16 %v1579, %v1571
    %v1932 = vpack.c.b16 %v1580, %v1572
    %v1933 = vpack.c.b16 %v1581, %v1573
    %v1934 = vpack.c.b16 %v1582, %v1574
    %v1935 = vpack.c.b16 %v1583, %v1575
    %v1936 = vpack.c.b16 %v1584, %v1576
    %v1937 = vpack.c.b16 %v1593, %v1585
    %v1938 = vpack.c.b16 %v1594, %v1586
    %v1939 = vpack.c.b16 %v1595, %v1587
    %v1940 = vpack.c.b16 %v1596, %v1588
    %v1941 = vpack.c.b16 %v1597, %v1589
    %v1942 = vpack.c.b16 %v1598, %v1590
    %v1943 = vpack.c.b16 %v1599, %v1591
    %v1944 = vpack.c.b16 %v1600, %v1592
    %v1945 = vpack.c.b16 %v1609, %v1601
    %v1946 = vpack.c.b16 %v1610, %v1602
    %v1947 = vpack.c.b16 %v1611, %v1603
    %v1948 = vpack.c.b16 %v1612, %v1604
    %v1949 = vpack.c.b16 %v1613, %v1605
    %v1950 = vpack.c.b16 %v1614, %v1606
    %v1951 = vpack.c.b16 %v1615, %v1607
    %v1952 = vpack.c.b16 %v1616, %v1608
    %v1953 = vpack.c.b16 %v1625, %v1617
    %v1954 = vpack.c.b16 %v1626, %v1618
    %v1955 = vpack.c.b16 %v1627, %v1619
    %v1956 = vpack.c.b16 %v1628, %v1620
    %v1957 = vpack.c.b16 %v1629, %v1621
    %v1958 = vpack.c.b16 %v1630, %v1622
    %v1959 = vpack.c.b16 %v1631, %v1623
    %v1960 = vpack.c.b16 %v1632, %v1624
    %v1961 = vpack.c.b16 %v1641, %v1633
    %v1962 = vpack.c.b16 %v1642, %v1634
    %v1963 = vpack.c.b16 %v1643, %v1635
    %v1964 = vpack.c.b16 %v1644, %v1636
    %v1965 = vpack.c.b16 %v1645, %v1637
    %v1966 = vpack.c.b16 %v1646, %v1638
    %v1967 = vpack.c.b16 %v1647, %v1639
    %v1968 = vpack.c.b16 %v1648, %v1640
    %v1969 = vpack.c.b16 %v1657, %v1649
    %v1970 = vpack.c.b16 %v1658, %v1650
    %v1971 = vpack.c.b16 %v1659, %v1651
    %v1972 = vpack.c.b16 %v1660, %v1652
    %v1973 = vpack.c.b16 %v1661, %v1653
    %v1974 = vpack.c.b16 %v1662, %v1654
    %v1975 = vpack.c.b16 %v1663, %v1655
    %v1976 = vpack.c.b16 %v1664, %v1656
    %v1977 = vpack.c.b16 %v1673, %v1665
    %v1978 = vpack.c.b16 %v1674, %v1666
    %v1979 = vpack.c.b16 %v1675, %v1667
    %v1980 = vpack.c.b16 %v1676, %v1668
    %v1981 = vpack.c.b16 %v1677, %v1669
    %v1982 = vpack.c.b16 %v1678, %v1670
    %v1983 = vpack.c.b16 %v1679, %v1671
    %v1984 = vpack.c.b16 %v1680, %v1672
    %v1985 = vpack.c.b16 %v1689, %v1681
    %v1986 = vpack.c.b16 %v1690, %v1682
    %v1987 = vpack.c.b16 %v1691, %v1683
    %v1988 = vpack.c.b16 %v1692, %v1684
    %v1989 = vpack.c.b16 %v1693, %v1685
    %v1990 = vpack.c.b16 %v1694, %v1686
    %v1991 = vpack.c.b16 %v1695, %v1687
    %v1992 = vpack.c.b16 %v1696, %v1688
    %v1993 = vpack.c.b16 %v1705, %v1697
    %v1994 = vpack.c.b16 %v1706, %v1698
    %v1995 = vpack.c.b16 %v1707, %v1699
    %v1996 = vpack.c.b16 %v1708, %v1700
    %v1997 = vpack.c.b16 %v1709, %v1701
    %v1998 = vpack.c.b16 %v1710, %v1702
    %v1999 = vpack.c.b16 %v1711, %v1703
    %v2000 = vpack.c.b16 %v1712, %v1704
    %v2001 = vpack.c.b16 %v1721, %v1713
    %v2002 = vpack.c.b16 %v1722, %v1714
    %v2003 = vpack.c.b16 %v1723, %v1715
    %v2004 = vpack.c.b16 %v1724, %v1716
    %v2005 = vpack.c.b16 %v1725, %v1717
    %v2006 = vpack.c.b16 %v1726, %v1718
    %v2007 = vpack.c.b16 %v1727, %v1719
    %v2008 = vpack.c.b16 %v1728, %v1720
    %v2009 = vpack.c.b16 %v1737, %v1729
    %v2010 = vpack.c.b16 %v1738, %v1730
    %v2011 = vpack.c.b16 %v1739, %v1731
    %v2012 = vpack.c.b16 %v1740, %v1732
    %v2013 = vpack.c.b16 %v1741, %v1733
    %v2014 = vpack.c.b16 %v1742, %v1734
    %v2015 = vpack.c.b16 %v1743, %v1735
    %v2016 = vpack.c.b16 %v1744, %v1736
    %v2017 = vpack.c.b16 %v1753, %v1745
    %v2018 = vpack.c.b16 %v1754, %v1746
    %v2019 = vpack.c.b16 %v1755, %v1747
    %v2020 = vpack.c.b16 %v1756, %v1748
    %v2021 = vpack.c.b16 %v1757, %v1749
    %v2022 = vpack.c.b16 %v1758, %v1750
    %v2023 = vpack.c.b16 %v1759, %v1751
    %v2024 = vpack.c.b16 %v1760, %v1752
    %v2025 = vpack.c.b16 %v1769, %v1761
    %v2026 = vpack.c.b16 %v1770, %v1762
    %v2027 = vpack.c.b16 %v1771, %v1763
    %v2028 = vpack.c.b16 %v1772, %v1764
    %v2029 = vpack.c.b16 %v1773, %v1765
    %v2030 = vpack.c.b16 %v1774, %v1766
    %v2031 = vpack.c.b16 %v1775, %v1767
    %v2032 = vpack.c.b16 %v1776, %v1768
    %2289 = vmatpush.bf16.msra.mxu0 %v1833
    %2290 = vmatpush.bf16.msra.mxu0 %v1825
    %2291 = vmatpush.bf16.msra.mxu0 %v1817
    %2292 = vmatpush.bf16.msra.mxu0 %v1809
    %2293 = vmatpush.bf16.msra.mxu0 %v1801
    %2294 = vmatpush.bf16.msra.mxu0 %v1793
    %2295 = vmatpush.bf16.msra.mxu0 %v1785
    %2296 = vmatpush.bf16.msra.mxu0 %v1777
    %2297 = vmatmul.bf16.gmra.mxu0 %v731
    %v2298 = vpop.f32.mrf.mxu0
    %v2299 = vadd.f32 %v993, %v2298
    %v2300 = vpop.f32.mrf.mxu0
    %2301 = vdwg.mxu0
    %2302 = vmatpush.bf16.msra.mxu0 %v1897
    %2303 = vmatpush.bf16.msra.mxu0 %v1889
    %2304 = vmatpush.bf16.msra.mxu0 %v1881
    %2305 = vmatpush.bf16.msra.mxu0 %v1873
    %2306 = vmatpush.bf16.msra.mxu0 %v1865
    %2307 = vmatpush.bf16.msra.mxu0 %v1857
    %2308 = vmatpush.bf16.msra.mxu0 %v1849
    %2309 = vmatpush.bf16.msra.mxu0 %v1841
    %2310 = vmatmul.bf16.gmra.mxu0 %v732
    %v2311 = vpop.f32.mrf.mxu0
    %v2312 = vadd.f32 %v2299, %v2311
    %v2313 = vpop.f32.mrf.mxu0
    %2314 = vdwg.mxu0
    %2315 = vmatpush.bf16.msra.mxu0 %v1961
    %2316 = vmatpush.bf16.msra.mxu0 %v1953
    %2317 = vmatpush.bf16.msra.mxu0 %v1945
    %2318 = vmatpush.bf16.msra.mxu0 %v1937
    %2319 = vmatpush.bf16.msra.mxu0 %v1929
    %2320 = vmatpush.bf16.msra.mxu0 %v1921
    %2321 = vmatpush.bf16.msra.mxu0 %v1913
    %2322 = vmatpush.bf16.msra.mxu0 %v1905
    %2323 = vmatmul.bf16.gmra.mxu0 %v733
    %v2324 = vpop.f32.mrf.mxu0
    %v2325 = vadd.f32 %v2312, %v2324
    %v2326 = vpop.f32.mrf.mxu0
    %2327 = vdwg.mxu0
    %2328 = vmatpush.bf16.msra.mxu0 %v2025
    %2329 = vmatpush.bf16.msra.mxu0 %v2017
    %2330 = vmatpush.bf16.msra.mxu0 %v2009
    %2331 = vmatpush.bf16.msra.mxu0 %v2001
    %2332 = vmatpush.bf16.msra.mxu0 %v1993
    %2333 = vmatpush.bf16.msra.mxu0 %v1985
    %2334 = vmatpush.bf16.msra.mxu0 %v1977
    %2335 = vmatpush.bf16.msra.mxu0 %v1969
    %2336 = vmatmul.bf16.gmra.mxu0 %v734
    %v2337 = vpop.f32.mrf.mxu0
    %v2338 = vadd.f32 %v2325, %v2337
    %v2339 = vpop.f32.mrf.mxu0
    %2340 = vdwg.mxu0
    %2341 = vmatpush.bf16.msra.mxu0 %v1834
    %2342 = vmatpush.bf16.msra.mxu0 %v1826
    %2343 = vmatpush.bf16.msra.mxu0 %v1818
    %2344 = vmatpush.bf16.msra.mxu0 %v1810
    %2345 = vmatpush.bf16.msra.mxu0 %v1802
    %2346 = vmatpush.bf16.msra.mxu0 %v1794
    %2347 = vmatpush.bf16.msra.mxu0 %v1786
    %2348 = vmatpush.bf16.msra.mxu0 %v1778
    %2349 = vmatmul.bf16.gmra.mxu0 %v731
    %v2350 = vpop.f32.mrf.mxu0
    %v2351 = vadd.f32 %v994, %v2350
    %v2352 = vpop.f32.mrf.mxu0
    %2353 = vdwg.mxu0
    %2354 = vmatpush.bf16.msra.mxu0 %v1898
    %2355 = vmatpush.bf16.msra.mxu0 %v1890
    %2356 = vmatpush.bf16.msra.mxu0 %v1882
    %2357 = vmatpush.bf16.msra.mxu0 %v1874
    %2358 = vmatpush.bf16.msra.mxu0 %v1866
    %2359 = vmatpush.bf16.msra.mxu0 %v1858
    %2360 = vmatpush.bf16.msra.mxu0 %v1850
    %2361 = vmatpush.bf16.msra.mxu0 %v1842
    %2362 = vmatmul.bf16.gmra.mxu0 %v732
    %v2363 = vpop.f32.mrf.mxu0
    %v2364 = vadd.f32 %v2351, %v2363
    %v2365 = vpop.f32.mrf.mxu0
    %2366 = vdwg.mxu0
    %2367 = vmatpush.bf16.msra.mxu0 %v1962
    %2368 = vmatpush.bf16.msra.mxu0 %v1954
    %2369 = vmatpush.bf16.msra.mxu0 %v1946
    %2370 = vmatpush.bf16.msra.mxu0 %v1938
    %2371 = vmatpush.bf16.msra.mxu0 %v1930
    %2372 = vmatpush.bf16.msra.mxu0 %v1922
    %2373 = vmatpush.bf16.msra.mxu0 %v1914
    %2374 = vmatpush.bf16.msra.mxu0 %v1906
    %2375 = vmatmul.bf16.gmra.mxu0 %v733
    %v2376 = vpop.f32.mrf.mxu0
    %v2377 = vadd.f32 %v2364, %v2376
    %v2378 = vpop.f32.mrf.mxu0
    %2379 = vdwg.mxu0
    %2380 = vmatpush.bf16.msra.mxu0 %v2026
    %2381 = vmatpush.bf16.msra.mxu0 %v2018
    %2382 = vmatpush.bf16.msra.mxu0 %v2010
    %2383 = vmatpush.bf16.msra.mxu0 %v2002
    %2384 = vmatpush.bf16.msra.mxu0 %v1994
    %2385 = vmatpush.bf16.msra.mxu0 %v1986
    %2386 = vmatpush.bf16.msra.mxu0 %v1978
    %2387 = vmatpush.bf16.msra.mxu0 %v1970
    %2388 = vmatmul.bf16.gmra.mxu0 %v734
    %v2389 = vpop.f32.mrf.mxu0
    %v2390 = vadd.f32 %v2377, %v2389
    %v2391 = vpop.f32.mrf.mxu0
    %2392 = vdwg.mxu0
    %2393 = vmatpush.bf16.msra.mxu0 %v1835
    %2394 = vmatpush.bf16.msra.mxu0 %v1827
    %2395 = vmatpush.bf16.msra.mxu0 %v1819
    %2396 = vmatpush.bf16.msra.mxu0 %v1811
    %2397 = vmatpush.bf16.msra.mxu0 %v1803
    %2398 = vmatpush.bf16.msra.mxu0 %v1795
    %2399 = vmatpush.bf16.msra.mxu0 %v1787
    %2400 = vmatpush.bf16.msra.mxu0 %v1779
    %2401 = vmatmul.bf16.gmra.mxu0 %v731
    %v2402 = vpop.f32.mrf.mxu0
    %v2403 = vadd.f32 %v995, %v2402
    %v2404 = vpop.f32.mrf.mxu0
    %2405 = vdwg.mxu0
    %2406 = vmatpush.bf16.msra.mxu0 %v1899
    %2407 = vmatpush.bf16.msra.mxu0 %v1891
    %2408 = vmatpush.bf16.msra.mxu0 %v1883
    %2409 = vmatpush.bf16.msra.mxu0 %v1875
    %2410 = vmatpush.bf16.msra.mxu0 %v1867
    %2411 = vmatpush.bf16.msra.mxu0 %v1859
    %2412 = vmatpush.bf16.msra.mxu0 %v1851
    %2413 = vmatpush.bf16.msra.mxu0 %v1843
    %2414 = vmatmul.bf16.gmra.mxu0 %v732
    %v2415 = vpop.f32.mrf.mxu0
    %v2416 = vadd.f32 %v2403, %v2415
    %v2417 = vpop.f32.mrf.mxu0
    %2418 = vdwg.mxu0
    %2419 = vmatpush.bf16.msra.mxu0 %v1963
    %2420 = vmatpush.bf16.msra.mxu0 %v1955
    %2421 = vmatpush.bf16.msra.mxu0 %v1947
    %2422 = vmatpush.bf16.msra.mxu0 %v1939
    %2423 = vmatpush.bf16.msra.mxu0 %v1931
    %2424 = vmatpush.bf16.msra.mxu0 %v1923
    %2425 = vmatpush.bf16.msra.mxu0 %v1915
    %2426 = vmatpush.bf16.msra.mxu0 %v1907
    %2427 = vmatmul.bf16.gmra.mxu0 %v733
    %v2428 = vpop.f32.mrf.mxu0
    %v2429 = vadd.f32 %v2416, %v2428
    %v2430 = vpop.f32.mrf.mxu0
    %2431 = vdwg.mxu0
    %2432 = vmatpush.bf16.msra.mxu0 %v2027
    %2433 = vmatpush.bf16.msra.mxu0 %v2019
    %2434 = vmatpush.bf16.msra.mxu0 %v2011
    %2435 = vmatpush.bf16.msra.mxu0 %v2003
    %2436 = vmatpush.bf16.msra.mxu0 %v1995
    %2437 = vmatpush.bf16.msra.mxu0 %v1987
    %2438 = vmatpush.bf16.msra.mxu0 %v1979
    %2439 = vmatpush.bf16.msra.mxu0 %v1971
    %2440 = vmatmul.bf16.gmra.mxu0 %v734
    %v2441 = vpop.f32.mrf.mxu0
    %v2442 = vadd.f32 %v2429, %v2441
    %v2443 = vpop.f32.mrf.mxu0
    %2444 = vdwg.mxu0
    %2445 = vmatpush.bf16.msra.mxu0 %v1836
    %2446 = vmatpush.bf16.msra.mxu0 %v1828
    %2447 = vmatpush.bf16.msra.mxu0 %v1820
    %2448 = vmatpush.bf16.msra.mxu0 %v1812
    %2449 = vmatpush.bf16.msra.mxu0 %v1804
    %2450 = vmatpush.bf16.msra.mxu0 %v1796
    %2451 = vmatpush.bf16.msra.mxu0 %v1788
    %2452 = vmatpush.bf16.msra.mxu0 %v1780
    %2453 = vmatmul.bf16.gmra.mxu0 %v731
    %v2454 = vpop.f32.mrf.mxu0
    %v2455 = vadd.f32 %v996, %v2454
    %v2456 = vpop.f32.mrf.mxu0
    %2457 = vdwg.mxu0
    %2458 = vmatpush.bf16.msra.mxu0 %v1900
    %2459 = vmatpush.bf16.msra.mxu0 %v1892
    %2460 = vmatpush.bf16.msra.mxu0 %v1884
    %2461 = vmatpush.bf16.msra.mxu0 %v1876
    %2462 = vmatpush.bf16.msra.mxu0 %v1868
    %2463 = vmatpush.bf16.msra.mxu0 %v1860
    %2464 = vmatpush.bf16.msra.mxu0 %v1852
    %2465 = vmatpush.bf16.msra.mxu0 %v1844
    %2466 = vmatmul.bf16.gmra.mxu0 %v732
    %v2467 = vpop.f32.mrf.mxu0
    %v2468 = vadd.f32 %v2455, %v2467
    %v2469 = vpop.f32.mrf.mxu0
    %2470 = vdwg.mxu0
    %2471 = vmatpush.bf16.msra.mxu0 %v1964
    %2472 = vmatpush.bf16.msra.mxu0 %v1956
    %2473 = vmatpush.bf16.msra.mxu0 %v1948
    %2474 = vmatpush.bf16.msra.mxu0 %v1940
    %2475 = vmatpush.bf16.msra.mxu0 %v1932
    %2476 = vmatpush.bf16.msra.mxu0 %v1924
    %2477 = vmatpush.bf16.msra.mxu0 %v1916
    %2478 = vmatpush.bf16.msra.mxu0 %v1908
    %2479 = vmatmul.bf16.gmra.mxu0 %v733
    %v2480 = vpop.f32.mrf.mxu0
    %v2481 = vadd.f32 %v2468, %v2480
    %v2482 = vpop.f32.mrf.mxu0
    %2483 = vdwg.mxu0
    %2484 = vmatpush.bf16.msra.mxu0 %v2028
    %2485 = vmatpush.bf16.msra.mxu0 %v2020
    %2486 = vmatpush.bf16.msra.mxu0 %v2012
    %2487 = vmatpush.bf16.msra.mxu0 %v2004
    %2488 = vmatpush.bf16.msra.mxu0 %v1996
    %2489 = vmatpush.bf16.msra.mxu0 %v1988
    %2490 = vmatpush.bf16.msra.mxu0 %v1980
    %2491 = vmatpush.bf16.msra.mxu0 %v1972
    %2492 = vmatmul.bf16.gmra.mxu0 %v734
    %v2493 = vpop.f32.mrf.mxu0
    %v2494 = vadd.f32 %v2481, %v2493
    %v2495 = vpop.f32.mrf.mxu0
    %2496 = vdwg.mxu0
    %2497 = vmatpush.bf16.msra.mxu0 %v1837
    %2498 = vmatpush.bf16.msra.mxu0 %v1829
    %2499 = vmatpush.bf16.msra.mxu0 %v1821
    %2500 = vmatpush.bf16.msra.mxu0 %v1813
    %2501 = vmatpush.bf16.msra.mxu0 %v1805
    %2502 = vmatpush.bf16.msra.mxu0 %v1797
    %2503 = vmatpush.bf16.msra.mxu0 %v1789
    %2504 = vmatpush.bf16.msra.mxu0 %v1781
    %2505 = vmatmul.bf16.gmra.mxu0 %v731
    %v2506 = vpop.f32.mrf.mxu0
    %v2507 = vadd.f32 %v997, %v2506
    %v2508 = vpop.f32.mrf.mxu0
    %2509 = vdwg.mxu0
    %2510 = vmatpush.bf16.msra.mxu0 %v1901
    %2511 = vmatpush.bf16.msra.mxu0 %v1893
    %2512 = vmatpush.bf16.msra.mxu0 %v1885
    %2513 = vmatpush.bf16.msra.mxu0 %v1877
    %2514 = vmatpush.bf16.msra.mxu0 %v1869
    %2515 = vmatpush.bf16.msra.mxu0 %v1861
    %2516 = vmatpush.bf16.msra.mxu0 %v1853
    %2517 = vmatpush.bf16.msra.mxu0 %v1845
    %2518 = vmatmul.bf16.gmra.mxu0 %v732
    %v2519 = vpop.f32.mrf.mxu0
    %v2520 = vadd.f32 %v2507, %v2519
    %v2521 = vpop.f32.mrf.mxu0
    %2522 = vdwg.mxu0
    %2523 = vmatpush.bf16.msra.mxu0 %v1965
    %2524 = vmatpush.bf16.msra.mxu0 %v1957
    %2525 = vmatpush.bf16.msra.mxu0 %v1949
    %2526 = vmatpush.bf16.msra.mxu0 %v1941
    %2527 = vmatpush.bf16.msra.mxu0 %v1933
    %2528 = vmatpush.bf16.msra.mxu0 %v1925
    %2529 = vmatpush.bf16.msra.mxu0 %v1917
    %2530 = vmatpush.bf16.msra.mxu0 %v1909
    %2531 = vmatmul.bf16.gmra.mxu0 %v733
    %v2532 = vpop.f32.mrf.mxu0
    %v2533 = vadd.f32 %v2520, %v2532
    %v2534 = vpop.f32.mrf.mxu0
    %2535 = vdwg.mxu0
    %2536 = vmatpush.bf16.msra.mxu0 %v2029
    %2537 = vmatpush.bf16.msra.mxu0 %v2021
    %2538 = vmatpush.bf16.msra.mxu0 %v2013
    %2539 = vmatpush.bf16.msra.mxu0 %v2005
    %2540 = vmatpush.bf16.msra.mxu0 %v1997
    %2541 = vmatpush.bf16.msra.mxu0 %v1989
    %2542 = vmatpush.bf16.msra.mxu0 %v1981
    %2543 = vmatpush.bf16.msra.mxu0 %v1973
    %2544 = vmatmul.bf16.gmra.mxu0 %v734
    %v2545 = vpop.f32.mrf.mxu0
    %v2546 = vadd.f32 %v2533, %v2545
    %v2547 = vpop.f32.mrf.mxu0
    %2548 = vdwg.mxu0
    %2549 = vmatpush.bf16.msra.mxu0 %v1838
    %2550 = vmatpush.bf16.msra.mxu0 %v1830
    %2551 = vmatpush.bf16.msra.mxu0 %v1822
    %2552 = vmatpush.bf16.msra.mxu0 %v1814
    %2553 = vmatpush.bf16.msra.mxu0 %v1806
    %2554 = vmatpush.bf16.msra.mxu0 %v1798
    %2555 = vmatpush.bf16.msra.mxu0 %v1790
    %2556 = vmatpush.bf16.msra.mxu0 %v1782
    %2557 = vmatmul.bf16.gmra.mxu0 %v731
    %v2558 = vpop.f32.mrf.mxu0
    %v2559 = vadd.f32 %v998, %v2558
    %v2560 = vpop.f32.mrf.mxu0
    %2561 = vdwg.mxu0
    %2562 = vmatpush.bf16.msra.mxu0 %v1902
    %2563 = vmatpush.bf16.msra.mxu0 %v1894
    %2564 = vmatpush.bf16.msra.mxu0 %v1886
    %2565 = vmatpush.bf16.msra.mxu0 %v1878
    %2566 = vmatpush.bf16.msra.mxu0 %v1870
    %2567 = vmatpush.bf16.msra.mxu0 %v1862
    %2568 = vmatpush.bf16.msra.mxu0 %v1854
    %2569 = vmatpush.bf16.msra.mxu0 %v1846
    %2570 = vmatmul.bf16.gmra.mxu0 %v732
    %v2571 = vpop.f32.mrf.mxu0
    %v2572 = vadd.f32 %v2559, %v2571
    %v2573 = vpop.f32.mrf.mxu0
    %2574 = vdwg.mxu0
    %2575 = vmatpush.bf16.msra.mxu0 %v1966
    %2576 = vmatpush.bf16.msra.mxu0 %v1958
    %2577 = vmatpush.bf16.msra.mxu0 %v1950
    %2578 = vmatpush.bf16.msra.mxu0 %v1942
    %2579 = vmatpush.bf16.msra.mxu0 %v1934
    %2580 = vmatpush.bf16.msra.mxu0 %v1926
    %2581 = vmatpush.bf16.msra.mxu0 %v1918
    %2582 = vmatpush.bf16.msra.mxu0 %v1910
    %2583 = vmatmul.bf16.gmra.mxu0 %v733
    %v2584 = vpop.f32.mrf.mxu0
    %v2585 = vadd.f32 %v2572, %v2584
    %v2586 = vpop.f32.mrf.mxu0
    %2587 = vdwg.mxu0
    %2588 = vmatpush.bf16.msra.mxu0 %v2030
    %2589 = vmatpush.bf16.msra.mxu0 %v2022
    %2590 = vmatpush.bf16.msra.mxu0 %v2014
    %2591 = vmatpush.bf16.msra.mxu0 %v2006
    %2592 = vmatpush.bf16.msra.mxu0 %v1998
    %2593 = vmatpush.bf16.msra.mxu0 %v1990
    %2594 = vmatpush.bf16.msra.mxu0 %v1982
    %2595 = vmatpush.bf16.msra.mxu0 %v1974
    %2596 = vmatmul.bf16.gmra.mxu0 %v734
    %v2597 = vpop.f32.mrf.mxu0
    %v2598 = vadd.f32 %v2585, %v2597
    %v2599 = vpop.f32.mrf.mxu0
    %2600 = vdwg.mxu0
    %2601 = vmatpush.bf16.msra.mxu0 %v1839
    %2602 = vmatpush.bf16.msra.mxu0 %v1831
    %2603 = vmatpush.bf16.msra.mxu0 %v1823
    %2604 = vmatpush.bf16.msra.mxu0 %v1815
    %2605 = vmatpush.bf16.msra.mxu0 %v1807
    %2606 = vmatpush.bf16.msra.mxu0 %v1799
    %2607 = vmatpush.bf16.msra.mxu0 %v1791
    %2608 = vmatpush.bf16.msra.mxu0 %v1783
    %2609 = vmatmul.bf16.gmra.mxu0 %v731
    %v2610 = vpop.f32.mrf.mxu0
    %v2611 = vadd.f32 %v999, %v2610
    %v2612 = vpop.f32.mrf.mxu0
    %2613 = vdwg.mxu0
    %2614 = vmatpush.bf16.msra.mxu0 %v1903
    %2615 = vmatpush.bf16.msra.mxu0 %v1895
    %2616 = vmatpush.bf16.msra.mxu0 %v1887
    %2617 = vmatpush.bf16.msra.mxu0 %v1879
    %2618 = vmatpush.bf16.msra.mxu0 %v1871
    %2619 = vmatpush.bf16.msra.mxu0 %v1863
    %2620 = vmatpush.bf16.msra.mxu0 %v1855
    %2621 = vmatpush.bf16.msra.mxu0 %v1847
    %2622 = vmatmul.bf16.gmra.mxu0 %v732
    %v2623 = vpop.f32.mrf.mxu0
    %v2624 = vadd.f32 %v2611, %v2623
    %v2625 = vpop.f32.mrf.mxu0
    %2626 = vdwg.mxu0
    %2627 = vmatpush.bf16.msra.mxu0 %v1967
    %2628 = vmatpush.bf16.msra.mxu0 %v1959
    %2629 = vmatpush.bf16.msra.mxu0 %v1951
    %2630 = vmatpush.bf16.msra.mxu0 %v1943
    %2631 = vmatpush.bf16.msra.mxu0 %v1935
    %2632 = vmatpush.bf16.msra.mxu0 %v1927
    %2633 = vmatpush.bf16.msra.mxu0 %v1919
    %2634 = vmatpush.bf16.msra.mxu0 %v1911
    %2635 = vmatmul.bf16.gmra.mxu0 %v733
    %v2636 = vpop.f32.mrf.mxu0
    %v2637 = vadd.f32 %v2624, %v2636
    %v2638 = vpop.f32.mrf.mxu0
    %2639 = vdwg.mxu0
    %2640 = vmatpush.bf16.msra.mxu0 %v2031
    %2641 = vmatpush.bf16.msra.mxu0 %v2023
    %2642 = vmatpush.bf16.msra.mxu0 %v2015
    %2643 = vmatpush.bf16.msra.mxu0 %v2007
    %2644 = vmatpush.bf16.msra.mxu0 %v1999
    %2645 = vmatpush.bf16.msra.mxu0 %v1991
    %2646 = vmatpush.bf16.msra.mxu0 %v1983
    %2647 = vmatpush.bf16.msra.mxu0 %v1975
    %2648 = vmatmul.bf16.gmra.mxu0 %v734
    %v2649 = vpop.f32.mrf.mxu0
    %v2650 = vadd.f32 %v2637, %v2649
    %v2651 = vpop.f32.mrf.mxu0
    %2652 = vdwg.mxu0
    %2653 = vmatpush.bf16.msra.mxu0 %v1840
    %2654 = vmatpush.bf16.msra.mxu0 %v1832
    %2655 = vmatpush.bf16.msra.mxu0 %v1824
    %2656 = vmatpush.bf16.msra.mxu0 %v1816
    %2657 = vmatpush.bf16.msra.mxu0 %v1808
    %2658 = vmatpush.bf16.msra.mxu0 %v1800
    %2659 = vmatpush.bf16.msra.mxu0 %v1792
    %2660 = vmatpush.bf16.msra.mxu0 %v1784
    %2661 = vmatmul.bf16.gmra.mxu0 %v731
    %v2662 = vpop.f32.mrf.mxu0
    %v2663 = vadd.f32 %v1000, %v2662
    %v2664 = vpop.f32.mrf.mxu0
    %2665 = vdwg.mxu0
    %2666 = vmatpush.bf16.msra.mxu0 %v1904
    %2667 = vmatpush.bf16.msra.mxu0 %v1896
    %2668 = vmatpush.bf16.msra.mxu0 %v1888
    %2669 = vmatpush.bf16.msra.mxu0 %v1880
    %2670 = vmatpush.bf16.msra.mxu0 %v1872
    %2671 = vmatpush.bf16.msra.mxu0 %v1864
    %2672 = vmatpush.bf16.msra.mxu0 %v1856
    %2673 = vmatpush.bf16.msra.mxu0 %v1848
    %2674 = vmatmul.bf16.gmra.mxu0 %v732
    %v2675 = vpop.f32.mrf.mxu0
    %v2676 = vadd.f32 %v2663, %v2675
    %v2677 = vpop.f32.mrf.mxu0
    %2678 = vdwg.mxu0
    %2679 = vmatpush.bf16.msra.mxu0 %v1968
    %2680 = vmatpush.bf16.msra.mxu0 %v1960
    %2681 = vmatpush.bf16.msra.mxu0 %v1952
    %2682 = vmatpush.bf16.msra.mxu0 %v1944
    %2683 = vmatpush.bf16.msra.mxu0 %v1936
    %2684 = vmatpush.bf16.msra.mxu0 %v1928
    %2685 = vmatpush.bf16.msra.mxu0 %v1920
    %2686 = vmatpush.bf16.msra.mxu0 %v1912
    %2687 = vmatmul.bf16.gmra.mxu0 %v733
    %v2688 = vpop.f32.mrf.mxu0
    %v2689 = vadd.f32 %v2676, %v2688
    %v2690 = vpop.f32.mrf.mxu0
    %2691 = vdwg.mxu0
    %2692 = vmatpush.bf16.msra.mxu0 %v2032
    %2693 = vmatpush.bf16.msra.mxu0 %v2024
    %2694 = vmatpush.bf16.msra.mxu0 %v2016
    %2695 = vmatpush.bf16.msra.mxu0 %v2008
    %2696 = vmatpush.bf16.msra.mxu0 %v2000
    %2697 = vmatpush.bf16.msra.mxu0 %v1992
    %2698 = vmatpush.bf16.msra.mxu0 %v1984
    %2699 = vmatpush.bf16.msra.mxu0 %v1976
    %2700 = vmatmul.bf16.gmra.mxu0 %v734
    %v2701 = vpop.f32.mrf.mxu0
    %v2702 = vadd.f32 %v2689, %v2701
    %v2703 = vpop.f32.mrf.mxu0
    %2704 = vdwg.mxu0
    %v2705 = vmax.f32 %v2338, 0.0
    %v2706 = vmax.f32 %v2390, 0.0
    %v2707 = vmax.f32 %v2442, 0.0
    %v2708 = vmax.f32 %v2494, 0.0
    %v2709 = vmax.f32 %v2546, 0.0
    %v2710 = vmax.f32 %v2598, 0.0
    %v2711 = vmax.f32 %v2650, 0.0
    %v2712 = vmax.f32 %v2702, 0.0
    %v2713 = vpack.c.bf16 %v2705, %v2705
    %v2714 = vpack.c.bf16 %v2706, %v2706
    %v2715 = vpack.c.bf16 %v2707, %v2707
    %v2716 = vpack.c.bf16 %v2708, %v2708
    %v2717 = vpack.c.bf16 %v2709, %v2709
    %v2718 = vpack.c.bf16 %v2710, %v2710
    %v2719 = vpack.c.bf16 %v2711, %v2711
    %v2720 = vpack.c.bf16 %v2712, %v2712
    %v2721 = vld [vmem:[#allocation14] sm:$0xff]
    %v2722 = vld [vmem:[#allocation14 + $0x8] sm:$0xff]
    %v2723 = vld [vmem:[#allocation14 + $0x10] sm:$0xff]
    %v2724 = vld [vmem:[#allocation14 + $0x18] sm:$0xff]
    %v2725 = vld [vmem:[#allocation14 + $0x20] sm:$0xff]
    %v2726 = vld [vmem:[#allocation14 + $0x28] sm:$0xff]
    %v2727 = vld [vmem:[#allocation14 + $0x30] sm:$0xff]
    %v2728 = vld [vmem:[#allocation14 + $0x38] sm:$0xff]
    %v2729 = vld [vmem:[#allocation14 + $0x40] sm:$0xff]
    %v2730 = vld [vmem:[#allocation14 + $0x48] sm:$0xff]
    %v2731 = vld [vmem:[#allocation14 + $0x50] sm:$0xff]
    %v2732 = vld [vmem:[#allocation14 + $0x58] sm:$0xff]
    %v2733 = vld [vmem:[#allocation14 + $0x60] sm:$0xff]
    %v2734 = vld [vmem:[#allocation14 + $0x68] sm:$0xff]
    %v2735 = vld [vmem:[#allocation14 + $0x70] sm:$0xff]
    %v2736 = vld [vmem:[#allocation14 + $0x78] sm:$0xff]
    %v2737 = vld [vmem:[#allocation14 + $0x80] sm:$0xff]
    %v2738 = vld [vmem:[#allocation14 + $0x88] sm:$0xff]
    %v2739 = vld [vmem:[#allocation14 + $0x90] sm:$0xff]
    %v2740 = vld [vmem:[#allocation14 + $0x98] sm:$0xff]
    %v2741 = vld [vmem:[#allocation14 + $0xa0] sm:$0xff]
    %v2742 = vld [vmem:[#allocation14 + $0xa8] sm:$0xff]
    %v2743 = vld [vmem:[#allocation14 + $0xb0] sm:$0xff]
    %v2744 = vld [vmem:[#allocation14 + $0xb8] sm:$0xff]
    %v2745 = vld [vmem:[#allocation14 + $0xc0] sm:$0xff]
    %v2746 = vld [vmem:[#allocation14 + $0xc8] sm:$0xff]
    %v2747 = vld [vmem:[#allocation14 + $0xd0] sm:$0xff]
    %v2748 = vld [vmem:[#allocation14 + $0xd8] sm:$0xff]
    %v2749 = vld [vmem:[#allocation14 + $0xe0] sm:$0xff]
    %v2750 = vld [vmem:[#allocation14 + $0xe8] sm:$0xff]
    %v2751 = vld [vmem:[#allocation14 + $0xf0] sm:$0xff]
    %v2752 = vld [vmem:[#allocation14 + $0xf8] sm:$0xff]
    %v2753 = vld [vmem:[#allocation14 + $0x100] sm:$0xff]
    %v2754 = vld [vmem:[#allocation14 + $0x108] sm:$0xff]
    %v2755 = vld [vmem:[#allocation14 + $0x110] sm:$0xff]
    %v2756 = vld [vmem:[#allocation14 + $0x118] sm:$0xff]
    %v2757 = vld [vmem:[#allocation14 + $0x120] sm:$0xff]
    %v2758 = vld [vmem:[#allocation14 + $0x128] sm:$0xff]
    %v2759 = vld [vmem:[#allocation14 + $0x130] sm:$0xff]
    %v2760 = vld [vmem:[#allocation14 + $0x138] sm:$0xff]
    %v2761 = vld [vmem:[#allocation14 + $0x140] sm:$0xff]
    %v2762 = vld [vmem:[#allocation14 + $0x148] sm:$0xff]
    %v2763 = vld [vmem:[#allocation14 + $0x150] sm:$0xff]
    %v2764 = vld [vmem:[#allocation14 + $0x158] sm:$0xff]
    %v2765 = vld [vmem:[#allocation14 + $0x160] sm:$0xff]
    %v2766 = vld [vmem:[#allocation14 + $0x168] sm:$0xff]
    %v2767 = vld [vmem:[#allocation14 + $0x170] sm:$0xff]
    %v2768 = vld [vmem:[#allocation14 + $0x178] sm:$0xff]
    %v2769 = vld [vmem:[#allocation14 + $0x180] sm:$0xff]
    %v2770 = vld [vmem:[#allocation14 + $0x188] sm:$0xff]
    %v2771 = vld [vmem:[#allocation14 + $0x190] sm:$0xff]
    %v2772 = vld [vmem:[#allocation14 + $0x198] sm:$0xff]
    %v2773 = vld [vmem:[#allocation14 + $0x1a0] sm:$0xff]
    %v2774 = vld [vmem:[#allocation14 + $0x1a8] sm:$0xff]
    %v2775 = vld [vmem:[#allocation14 + $0x1b0] sm:$0xff]
    %v2776 = vld [vmem:[#allocation14 + $0x1b8] sm:$0xff]
    %v2777 = vld [vmem:[#allocation14 + $0x1c0] sm:$0xff]
    %v2778 = vld [vmem:[#allocation14 + $0x1c8] sm:$0xff]
    %v2779 = vld [vmem:[#allocation14 + $0x1d0] sm:$0xff]
    %v2780 = vld [vmem:[#allocation14 + $0x1d8] sm:$0xff]
    %v2781 = vld [vmem:[#allocation14 + $0x1e0] sm:$0xff]
    %v2782 = vld [vmem:[#allocation14 + $0x1e8] sm:$0xff]
    %v2783 = vld [vmem:[#allocation14 + $0x1f0] sm:$0xff]
    %v2784 = vld [vmem:[#allocation14 + $0x1f8] sm:$0xff]
    %v2785 = vld [vmem:[#allocation14 + $0x200] sm:$0xff]
    %v2786 = vld [vmem:[#allocation14 + $0x208] sm:$0xff]
    %v2787 = vld [vmem:[#allocation14 + $0x210] sm:$0xff]
    %v2788 = vld [vmem:[#allocation14 + $0x218] sm:$0xff]
    %v2789 = vld [vmem:[#allocation14 + $0x220] sm:$0xff]
    %v2790 = vld [vmem:[#allocation14 + $0x228] sm:$0xff]
    %v2791 = vld [vmem:[#allocation14 + $0x230] sm:$0xff]
    %v2792 = vld [vmem:[#allocation14 + $0x238] sm:$0xff]
    %v2793 = vld [vmem:[#allocation14 + $0x240] sm:$0xff]
    %v2794 = vld [vmem:[#allocation14 + $0x248] sm:$0xff]
    %v2795 = vld [vmem:[#allocation14 + $0x250] sm:$0xff]
    %v2796 = vld [vmem:[#allocation14 + $0x258] sm:$0xff]
    %v2797 = vld [vmem:[#allocation14 + $0x260] sm:$0xff]
    %v2798 = vld [vmem:[#allocation14 + $0x268] sm:$0xff]
    %v2799 = vld [vmem:[#allocation14 + $0x270] sm:$0xff]
    %v2800 = vld [vmem:[#allocation14 + $0x278] sm:$0xff]
    %v2801 = vld [vmem:[#allocation14 + $0x280] sm:$0xff]
    %v2802 = vld [vmem:[#allocation14 + $0x288] sm:$0xff]
    %v2803 = vld [vmem:[#allocation14 + $0x290] sm:$0xff]
    %v2804 = vld [vmem:[#allocation14 + $0x298] sm:$0xff]
    %v2805 = vld [vmem:[#allocation14 + $0x2a0] sm:$0xff]
    %v2806 = vld [vmem:[#allocation14 + $0x2a8] sm:$0xff]
    %v2807 = vld [vmem:[#allocation14 + $0x2b0] sm:$0xff]
    %v2808 = vld [vmem:[#allocation14 + $0x2b8] sm:$0xff]
    %v2809 = vld [vmem:[#allocation14 + $0x2c0] sm:$0xff]
    %v2810 = vld [vmem:[#allocation14 + $0x2c8] sm:$0xff]
    %v2811 = vld [vmem:[#allocation14 + $0x2d0] sm:$0xff]
    %v2812 = vld [vmem:[#allocation14 + $0x2d8] sm:$0xff]
    %v2813 = vld [vmem:[#allocation14 + $0x2e0] sm:$0xff]
    %v2814 = vld [vmem:[#allocation14 + $0x2e8] sm:$0xff]
    %v2815 = vld [vmem:[#allocation14 + $0x2f0] sm:$0xff]
    %v2816 = vld [vmem:[#allocation14 + $0x2f8] sm:$0xff]
    %v2817 = vld [vmem:[#allocation14 + $0x300] sm:$0xff]
    %v2818 = vld [vmem:[#allocation14 + $0x308] sm:$0xff]
    %v2819 = vld [vmem:[#allocation14 + $0x310] sm:$0xff]
    %v2820 = vld [vmem:[#allocation14 + $0x318] sm:$0xff]
    %v2821 = vld [vmem:[#allocation14 + $0x320] sm:$0xff]
    %v2822 = vld [vmem:[#allocation14 + $0x328] sm:$0xff]
    %v2823 = vld [vmem:[#allocation14 + $0x330] sm:$0xff]
    %v2824 = vld [vmem:[#allocation14 + $0x338] sm:$0xff]
    %v2825 = vld [vmem:[#allocation14 + $0x340] sm:$0xff]
    %v2826 = vld [vmem:[#allocation14 + $0x348] sm:$0xff]
    %v2827 = vld [vmem:[#allocation14 + $0x350] sm:$0xff]
    %v2828 = vld [vmem:[#allocation14 + $0x358] sm:$0xff]
    %v2829 = vld [vmem:[#allocation14 + $0x360] sm:$0xff]
    %v2830 = vld [vmem:[#allocation14 + $0x368] sm:$0xff]
    %v2831 = vld [vmem:[#allocation14 + $0x370] sm:$0xff]
    %v2832 = vld [vmem:[#allocation14 + $0x378] sm:$0xff]
    %v2833 = vld [vmem:[#allocation14 + $0x380] sm:$0xff]
    %v2834 = vld [vmem:[#allocation14 + $0x388] sm:$0xff]
    %v2835 = vld [vmem:[#allocation14 + $0x390] sm:$0xff]
    %v2836 = vld [vmem:[#allocation14 + $0x398] sm:$0xff]
    %v2837 = vld [vmem:[#allocation14 + $0x3a0] sm:$0xff]
    %v2838 = vld [vmem:[#allocation14 + $0x3a8] sm:$0xff]
    %v2839 = vld [vmem:[#allocation14 + $0x3b0] sm:$0xff]
    %v2840 = vld [vmem:[#allocation14 + $0x3b8] sm:$0xff]
    %v2841 = vld [vmem:[#allocation14 + $0x3c0] sm:$0xff]
    %v2842 = vld [vmem:[#allocation14 + $0x3c8] sm:$0xff]
    %v2843 = vld [vmem:[#allocation14 + $0x3d0] sm:$0xff]
    %v2844 = vld [vmem:[#allocation14 + $0x3d8] sm:$0xff]
    %v2845 = vld [vmem:[#allocation14 + $0x3e0] sm:$0xff]
    %v2846 = vld [vmem:[#allocation14 + $0x3e8] sm:$0xff]
    %v2847 = vld [vmem:[#allocation14 + $0x3f0] sm:$0xff]
    %v2848 = vld [vmem:[#allocation14 + $0x3f8] sm:$0xff]
    %v2849 = vld [vmem:[%s8] sm:$0x3]
    %v2851 = vperm.slane %v2849, 0
    %v2852 = vperm.slane %v2849, 1
    %v2983 = vunpack.c.l.b16 %v2721
    %v2984 = vunpack.c.h.b16 %v2721
    %v2985 = vunpack.c.l.b16 %v2722
    %v2986 = vunpack.c.h.b16 %v2722
    %v2987 = vunpack.c.l.b16 %v2723
    %v2988 = vunpack.c.h.b16 %v2723
    %v2989 = vunpack.c.l.b16 %v2724
    %v2990 = vunpack.c.h.b16 %v2724
    %v2991 = vunpack.c.l.b16 %v2725
    %v2992 = vunpack.c.h.b16 %v2725
    %v2993 = vunpack.c.l.b16 %v2726
    %v2994 = vunpack.c.h.b16 %v2726
    %v2995 = vunpack.c.l.b16 %v2727
    %v2996 = vunpack.c.h.b16 %v2727
    %v2997 = vunpack.c.l.b16 %v2728
    %v2998 = vunpack.c.h.b16 %v2728
    %v2999 = vunpack.c.l.b16 %v2729
    %v3000 = vunpack.c.h.b16 %v2729
    %v3001 = vunpack.c.l.b16 %v2730
    %v3002 = vunpack.c.h.b16 %v2730
    %v3003 = vunpack.c.l.b16 %v2731
    %v3004 = vunpack.c.h.b16 %v2731
    %v3005 = vunpack.c.l.b16 %v2732
    %v3006 = vunpack.c.h.b16 %v2732
    %v3007 = vunpack.c.l.b16 %v2733
    %v3008 = vunpack.c.h.b16 %v2733
    %v3009 = vunpack.c.l.b16 %v2734
    %v3010 = vunpack.c.h.b16 %v2734
    %v3011 = vunpack.c.l.b16 %v2735
    %v3012 = vunpack.c.h.b16 %v2735
    %v3013 = vunpack.c.l.b16 %v2736
    %v3014 = vunpack.c.h.b16 %v2736
    %v3015 = vunpack.c.l.b16 %v2737
    %v3016 = vunpack.c.h.b16 %v2737
    %v3017 = vunpack.c.l.b16 %v2738
    %v3018 = vunpack.c.h.b16 %v2738
    %v3019 = vunpack.c.l.b16 %v2739
    %v3020 = vunpack.c.h.b16 %v2739
    %v3021 = vunpack.c.l.b16 %v2740
    %v3022 = vunpack.c.h.b16 %v2740
    %v3023 = vunpack.c.l.b16 %v2741
    %v3024 = vunpack.c.h.b16 %v2741
    %v3025 = vunpack.c.l.b16 %v2742
    %v3026 = vunpack.c.h.b16 %v2742
    %v3027 = vunpack.c.l.b16 %v2743
    %v3028 = vunpack.c.h.b16 %v2743
    %v3029 = vunpack.c.l.b16 %v2744
    %v3030 = vunpack.c.h.b16 %v2744
    %v3031 = vunpack.c.l.b16 %v2745
    %v3032 = vunpack.c.h.b16 %v2745
    %v3033 = vunpack.c.l.b16 %v2746
    %v3034 = vunpack.c.h.b16 %v2746
    %v3035 = vunpack.c.l.b16 %v2747
    %v3036 = vunpack.c.h.b16 %v2747
    %v3037 = vunpack.c.l.b16 %v2748
    %v3038 = vunpack.c.h.b16 %v2748
    %v3039 = vunpack.c.l.b16 %v2749
    %v3040 = vunpack.c.h.b16 %v2749
    %v3041 = vunpack.c.l.b16 %v2750
    %v3042 = vunpack.c.h.b16 %v2750
    %v3043 = vunpack.c.l.b16 %v2751
    %v3044 = vunpack.c.h.b16 %v2751
    %v3045 = vunpack.c.l.b16 %v2752
    %v3046 = vunpack.c.h.b16 %v2752
    %v3047 = vunpack.c.l.b16 %v2753
    %v3048 = vunpack.c.h.b16 %v2753
    %v3049 = vunpack.c.l.b16 %v2754
    %v3050 = vunpack.c.h.b16 %v2754
    %v3051 = vunpack.c.l.b16 %v2755
    %v3052 = vunpack.c.h.b16 %v2755
    %v3053 = vunpack.c.l.b16 %v2756
    %v3054 = vunpack.c.h.b16 %v2756
    %v3055 = vunpack.c.l.b16 %v2757
    %v3056 = vunpack.c.h.b16 %v2757
    %v3057 = vunpack.c.l.b16 %v2758
    %v3058 = vunpack.c.h.b16 %v2758
    %v3059 = vunpack.c.l.b16 %v2759
    %v3060 = vunpack.c.h.b16 %v2759
    %v3061 = vunpack.c.l.b16 %v2760
    %v3062 = vunpack.c.h.b16 %v2760
    %v3063 = vunpack.c.l.b16 %v2761
    %v3064 = vunpack.c.h.b16 %v2761
    %v3065 = vunpack.c.l.b16 %v2762
    %v3066 = vunpack.c.h.b16 %v2762
    %v3067 = vunpack.c.l.b16 %v2763
    %v3068 = vunpack.c.h.b16 %v2763
    %v3069 = vunpack.c.l.b16 %v2764
    %v3070 = vunpack.c.h.b16 %v2764
    %v3071 = vunpack.c.l.b16 %v2765
    %v3072 = vunpack.c.h.b16 %v2765
    %v3073 = vunpack.c.l.b16 %v2766
    %v3074 = vunpack.c.h.b16 %v2766
    %v3075 = vunpack.c.l.b16 %v2767
    %v3076 = vunpack.c.h.b16 %v2767
    %v3077 = vunpack.c.l.b16 %v2768
    %v3078 = vunpack.c.h.b16 %v2768
    %v3079 = vunpack.c.l.b16 %v2769
    %v3080 = vunpack.c.h.b16 %v2769
    %v3081 = vunpack.c.l.b16 %v2770
    %v3082 = vunpack.c.h.b16 %v2770
    %v3083 = vunpack.c.l.b16 %v2771
    %v3084 = vunpack.c.h.b16 %v2771
    %v3085 = vunpack.c.l.b16 %v2772
    %v3086 = vunpack.c.h.b16 %v2772
    %v3087 = vunpack.c.l.b16 %v2773
    %v3088 = vunpack.c.h.b16 %v2773
    %v3089 = vunpack.c.l.b16 %v2774
    %v3090 = vunpack.c.h.b16 %v2774
    %v3091 = vunpack.c.l.b16 %v2775
    %v3092 = vunpack.c.h.b16 %v2775
    %v3093 = vunpack.c.l.b16 %v2776
    %v3094 = vunpack.c.h.b16 %v2776
    %v3095 = vunpack.c.l.b16 %v2777
    %v3096 = vunpack.c.h.b16 %v2777
    %v3097 = vunpack.c.l.b16 %v2778
    %v3098 = vunpack.c.h.b16 %v2778
    %v3099 = vunpack.c.l.b16 %v2779
    %v3100 = vunpack.c.h.b16 %v2779
    %v3101 = vunpack.c.l.b16 %v2780
    %v3102 = vunpack.c.h.b16 %v2780
    %v3103 = vunpack.c.l.b16 %v2781
    %v3104 = vunpack.c.h.b16 %v2781
    %v3105 = vunpack.c.l.b16 %v2782
    %v3106 = vunpack.c.h.b16 %v2782
    %v3107 = vunpack.c.l.b16 %v2783
    %v3108 = vunpack.c.h.b16 %v2783
    %v3109 = vunpack.c.l.b16 %v2784
    %v3110 = vunpack.c.h.b16 %v2784
    %v3111 = vunpack.c.l.b16 %v2785
    %v3112 = vunpack.c.h.b16 %v2785
    %v3113 = vunpack.c.l.b16 %v2786
    %v3114 = vunpack.c.h.b16 %v2786
    %v3115 = vunpack.c.l.b16 %v2787
    %v3116 = vunpack.c.h.b16 %v2787
    %v3117 = vunpack.c.l.b16 %v2788
    %v3118 = vunpack.c.h.b16 %v2788
    %v3119 = vunpack.c.l.b16 %v2789
    %v3120 = vunpack.c.h.b16 %v2789
    %v3121 = vunpack.c.l.b16 %v2790
    %v3122 = vunpack.c.h.b16 %v2790
    %v3123 = vunpack.c.l.b16 %v2791
    %v3124 = vunpack.c.h.b16 %v2791
    %v3125 = vunpack.c.l.b16 %v2792
    %v3126 = vunpack.c.h.b16 %v2792
    %v3127 = vunpack.c.l.b16 %v2793
    %v3128 = vunpack.c.h.b16 %v2793
    %v3129 = vunpack.c.l.b16 %v2794
    %v3130 = vunpack.c.h.b16 %v2794
    %v3131 = vunpack.c.l.b16 %v2795
    %v3132 = vunpack.c.h.b16 %v2795
    %v3133 = vunpack.c.l.b16 %v2796
    %v3134 = vunpack.c.h.b16 %v2796
    %v3135 = vunpack.c.l.b16 %v2797
    %v3136 = vunpack.c.h.b16 %v2797
    %v3137 = vunpack.c.l.b16 %v2798
    %v3138 = vunpack.c.h.b16 %v2798
    %v3139 = vunpack.c.l.b16 %v2799
    %v3140 = vunpack.c.h.b16 %v2799
    %v3141 = vunpack.c.l.b16 %v2800
    %v3142 = vunpack.c.h.b16 %v2800
    %v3143 = vunpack.c.l.b16 %v2801
    %v3144 = vunpack.c.h.b16 %v2801
    %v3145 = vunpack.c.l.b16 %v2802
    %v3146 = vunpack.c.h.b16 %v2802
    %v3147 = vunpack.c.l.b16 %v2803
    %v3148 = vunpack.c.h.b16 %v2803
    %v3149 = vunpack.c.l.b16 %v2804
    %v3150 = vunpack.c.h.b16 %v2804
    %v3151 = vunpack.c.l.b16 %v2805
    %v3152 = vunpack.c.h.b16 %v2805
    %v3153 = vunpack.c.l.b16 %v2806
    %v3154 = vunpack.c.h.b16 %v2806
    %v3155 = vunpack.c.l.b16 %v2807
    %v3156 = vunpack.c.h.b16 %v2807
    %v3157 = vunpack.c.l.b16 %v2808
    %v3158 = vunpack.c.h.b16 %v2808
    %v3159 = vunpack.c.l.b16 %v2809
    %v3160 = vunpack.c.h.b16 %v2809
    %v3161 = vunpack.c.l.b16 %v2810
    %v3162 = vunpack.c.h.b16 %v2810
    %v3163 = vunpack.c.l.b16 %v2811
    %v3164 = vunpack.c.h.b16 %v2811
    %v3165 = vunpack.c.l.b16 %v2812
    %v3166 = vunpack.c.h.b16 %v2812
    %v3167 = vunpack.c.l.b16 %v2813
    %v3168 = vunpack.c.h.b16 %v2813
    %v3169 = vunpack.c.l.b16 %v2814
    %v3170 = vunpack.c.h.b16 %v2814
    %v3171 = vunpack.c.l.b16 %v2815
    %v3172 = vunpack.c.h.b16 %v2815
    %v3173 = vunpack.c.l.b16 %v2816
    %v3174 = vunpack.c.h.b16 %v2816
    %v3175 = vunpack.c.l.b16 %v2817
    %v3176 = vunpack.c.h.b16 %v2817
    %v3177 = vunpack.c.l.b16 %v2818
    %v3178 = vunpack.c.h.b16 %v2818
    %v3179 = vunpack.c.l.b16 %v2819
    %v3180 = vunpack.c.h.b16 %v2819
    %v3181 = vunpack.c.l.b16 %v2820
    %v3182 = vunpack.c.h.b16 %v2820
    %v3183 = vunpack.c.l.b16 %v2821
    %v3184 = vunpack.c.h.b16 %v2821
    %v3185 = vunpack.c.l.b16 %v2822
    %v3186 = vunpack.c.h.b16 %v2822
    %v3187 = vunpack.c.l.b16 %v2823
    %v3188 = vunpack.c.h.b16 %v2823
    %v3189 = vunpack.c.l.b16 %v2824
    %v3190 = vunpack.c.h.b16 %v2824
    %v3191 = vunpack.c.l.b16 %v2825
    %v3192 = vunpack.c.h.b16 %v2825
    %v3193 = vunpack.c.l.b16 %v2826
    %v3194 = vunpack.c.h.b16 %v2826
    %v3195 = vunpack.c.l.b16 %v2827
    %v3196 = vunpack.c.h.b16 %v2827
    %v3197 = vunpack.c.l.b16 %v2828
    %v3198 = vunpack.c.h.b16 %v2828
    %v3199 = vunpack.c.l.b16 %v2829
    %v3200 = vunpack.c.h.b16 %v2829
    %v3201 = vunpack.c.l.b16 %v2830
    %v3202 = vunpack.c.h.b16 %v2830
    %v3203 = vunpack.c.l.b16 %v2831
    %v3204 = vunpack.c.h.b16 %v2831
    %v3205 = vunpack.c.l.b16 %v2832
    %v3206 = vunpack.c.h.b16 %v2832
    %v3207 = vunpack.c.l.b16 %v2833
    %v3208 = vunpack.c.h.b16 %v2833
    %v3209 = vunpack.c.l.b16 %v2834
    %v3210 = vunpack.c.h.b16 %v2834
    %v3211 = vunpack.c.l.b16 %v2835
    %v3212 = vunpack.c.h.b16 %v2835
    %v3213 = vunpack.c.l.b16 %v2836
    %v3214 = vunpack.c.h.b16 %v2836
    %v3215 = vunpack.c.l.b16 %v2837
    %v3216 = vunpack.c.h.b16 %v2837
    %v3217 = vunpack.c.l.b16 %v2838
    %v3218 = vunpack.c.h.b16 %v2838
    %v3219 = vunpack.c.l.b16 %v2839
    %v3220 = vunpack.c.h.b16 %v2839
    %v3221 = vunpack.c.l.b16 %v2840
    %v3222 = vunpack.c.h.b16 %v2840
    %v3223 = vunpack.c.l.b16 %v2841
    %v3224 = vunpack.c.h.b16 %v2841
    %v3225 = vunpack.c.l.b16 %v2842
    %v3226 = vunpack.c.h.b16 %v2842
    %v3227 = vunpack.c.l.b16 %v2843
    %v3228 = vunpack.c.h.b16 %v2843
    %v3229 = vunpack.c.l.b16 %v2844
    %v3230 = vunpack.c.h.b16 %v2844
    %v3231 = vunpack.c.l.b16 %v2845
    %v3232 = vunpack.c.h.b16 %v2845
    %v3233 = vunpack.c.l.b16 %v2846
    %v3234 = vunpack.c.h.b16 %v2846
    %v3235 = vunpack.c.l.b16 %v2847
    %v3236 = vunpack.c.h.b16 %v2847
    %v3237 = vunpack.c.l.b16 %v2848
    %v3238 = vunpack.c.h.b16 %v2848
    %v3239 = vpack.c.b16 %v2985, %v2983
    %v3240 = vpack.c.b16 %v2986, %v2984
    %v3241 = vpack.c.b16 %v2989, %v2987
    %v3242 = vpack.c.b16 %v2990, %v2988
    %v3243 = vpack.c.b16 %v2993, %v2991
    %v3244 = vpack.c.b16 %v2994, %v2992
    %v3245 = vpack.c.b16 %v2997, %v2995
    %v3246 = vpack.c.b16 %v2998, %v2996
    %v3247 = vpack.c.b16 %v3001, %v2999
    %v3248 = vpack.c.b16 %v3002, %v3000
    %v3249 = vpack.c.b16 %v3005, %v3003
    %v3250 = vpack.c.b16 %v3006, %v3004
    %v3251 = vpack.c.b16 %v3009, %v3007
    %v3252 = vpack.c.b16 %v3010, %v3008
    %v3253 = vpack.c.b16 %v3013, %v3011
    %v3254 = vpack.c.b16 %v3014, %v3012
    %v3255 = vpack.c.b16 %v3017, %v3015
    %v3256 = vpack.c.b16 %v3018, %v3016
    %v3257 = vpack.c.b16 %v3021, %v3019
    %v3258 = vpack.c.b16 %v3022, %v3020
    %v3259 = vpack.c.b16 %v3025, %v3023
    %v3260 = vpack.c.b16 %v3026, %v3024
    %v3261 = vpack.c.b16 %v3029, %v3027
    %v3262 = vpack.c.b16 %v3030, %v3028
    %v3263 = vpack.c.b16 %v3033, %v3031
    %v3264 = vpack.c.b16 %v3034, %v3032
    %v3265 = vpack.c.b16 %v3037, %v3035
    %v3266 = vpack.c.b16 %v3038, %v3036
    %v3267 = vpack.c.b16 %v3041, %v3039
    %v3268 = vpack.c.b16 %v3042, %v3040
    %v3269 = vpack.c.b16 %v3045, %v3043
    %v3270 = vpack.c.b16 %v3046, %v3044
    %v3271 = vpack.c.b16 %v3049, %v3047
    %v3272 = vpack.c.b16 %v3050, %v3048
    %v3273 = vpack.c.b16 %v3053, %v3051
    %v3274 = vpack.c.b16 %v3054, %v3052
    %v3275 = vpack.c.b16 %v3057, %v3055
    %v3276 = vpack.c.b16 %v3058, %v3056
    %v3277 = vpack.c.b16 %v3061, %v3059
    %v3278 = vpack.c.b16 %v3062, %v3060
    %v3279 = vpack.c.b16 %v3065, %v3063
    %v3280 = vpack.c.b16 %v3066, %v3064
    %v3281 = vpack.c.b16 %v3069, %v3067
    %v3282 = vpack.c.b16 %v3070, %v3068
    %v3283 = vpack.c.b16 %v3073, %v3071
    %v3284 = vpack.c.b16 %v3074, %v3072
    %v3285 = vpack.c.b16 %v3077, %v3075
    %v3286 = vpack.c.b16 %v3078, %v3076
    %v3287 = vpack.c.b16 %v3081, %v3079
    %v3288 = vpack.c.b16 %v3082, %v3080
    %v3289 = vpack.c.b16 %v3085, %v3083
    %v3290 = vpack.c.b16 %v3086, %v3084
    %v3291 = vpack.c.b16 %v3089, %v3087
    %v3292 = vpack.c.b16 %v3090, %v3088
    %v3293 = vpack.c.b16 %v3093, %v3091
    %v3294 = vpack.c.b16 %v3094, %v3092
    %v3295 = vpack.c.b16 %v3097, %v3095
    %v3296 = vpack.c.b16 %v3098, %v3096
    %v3297 = vpack.c.b16 %v3101, %v3099
    %v3298 = vpack.c.b16 %v3102, %v3100
    %v3299 = vpack.c.b16 %v3105, %v3103
    %v3300 = vpack.c.b16 %v3106, %v3104
    %v3301 = vpack.c.b16 %v3109, %v3107
    %v3302 = vpack.c.b16 %v3110, %v3108
    %v3303 = vpack.c.b16 %v3113, %v3111
    %v3304 = vpack.c.b16 %v3114, %v3112
    %v3305 = vpack.c.b16 %v3117, %v3115
    %v3306 = vpack.c.b16 %v3118, %v3116
    %v3307 = vpack.c.b16 %v3121, %v3119
    %v3308 = vpack.c.b16 %v3122, %v3120
    %v3309 = vpack.c.b16 %v3125, %v3123
    %v3310 = vpack.c.b16 %v3126, %v3124
    %v3311 = vpack.c.b16 %v3129, %v3127
    %v3312 = vpack.c.b16 %v3130, %v3128
    %v3313 = vpack.c.b16 %v3133, %v3131
    %v3314 = vpack.c.b16 %v3134, %v3132
    %v3315 = vpack.c.b16 %v3137, %v3135
    %v3316 = vpack.c.b16 %v3138, %v3136
    %v3317 = vpack.c.b16 %v3141, %v3139
    %v3318 = vpack.c.b16 %v3142, %v3140
    %v3319 = vpack.c.b16 %v3145, %v3143
    %v3320 = vpack.c.b16 %v3146, %v3144
    %v3321 = vpack.c.b16 %v3149, %v3147
    %v3322 = vpack.c.b16 %v3150, %v3148
    %v3323 = vpack.c.b16 %v3153, %v3151
    %v3324 = vpack.c.b16 %v3154, %v3152
    %v3325 = vpack.c.b16 %v3157, %v3155
    %v3326 = vpack.c.b16 %v3158, %v3156
    %v3327 = vpack.c.b16 %v3161, %v3159
    %v3328 = vpack.c.b16 %v3162, %v3160
    %v3329 = vpack.c.b16 %v3165, %v3163
    %v3330 = vpack.c.b16 %v3166, %v3164
    %v3331 = vpack.c.b16 %v3169, %v3167
    %v3332 = vpack.c.b16 %v3170, %v3168
    %v3333 = vpack.c.b16 %v3173, %v3171
    %v3334 = vpack.c.b16 %v3174, %v3172
    %v3335 = vpack.c.b16 %v3177, %v3175
    %v3336 = vpack.c.b16 %v3178, %v3176
    %v3337 = vpack.c.b16 %v3181, %v3179
    %v3338 = vpack.c.b16 %v3182, %v3180
    %v3339 = vpack.c.b16 %v3185, %v3183
    %v3340 = vpack.c.b16 %v3186, %v3184
    %v3341 = vpack.c.b16 %v3189, %v3187
    %v3342 = vpack.c.b16 %v3190, %v3188
    %v3343 = vpack.c.b16 %v3193, %v3191
    %v3344 = vpack.c.b16 %v3194, %v3192
    %v3345 = vpack.c.b16 %v3197, %v3195
    %v3346 = vpack.c.b16 %v3198, %v3196
    %v3347 = vpack.c.b16 %v3201, %v3199
    %v3348 = vpack.c.b16 %v3202, %v3200
    %v3349 = vpack.c.b16 %v3205, %v3203
    %v3350 = vpack.c.b16 %v3206, %v3204
    %v3351 = vpack.c.b16 %v3209, %v3207
    %v3352 = vpack.c.b16 %v3210, %v3208
    %v3353 = vpack.c.b16 %v3213, %v3211
    %v3354 = vpack.c.b16 %v3214, %v3212
    %v3355 = vpack.c.b16 %v3217, %v3215
    %v3356 = vpack.c.b16 %v3218, %v3216
    %v3357 = vpack.c.b16 %v3221, %v3219
    %v3358 = vpack.c.b16 %v3222, %v3220
    %v3359 = vpack.c.b16 %v3225, %v3223
    %v3360 = vpack.c.b16 %v3226, %v3224
    %v3361 = vpack.c.b16 %v3229, %v3227
    %v3362 = vpack.c.b16 %v3230, %v3228
    %v3363 = vpack.c.b16 %v3233, %v3231
    %v3364 = vpack.c.b16 %v3234, %v3232
    %v3365 = vpack.c.b16 %v3237, %v3235
    %v3366 = vpack.c.b16 %v3238, %v3236
    %3495 = vmatpush.bf16.msra.mxu0 %v3253
    %3496 = vmatpush.bf16.msra.mxu0 %v3251
    %3497 = vmatpush.bf16.msra.mxu0 %v3249
    %3498 = vmatpush.bf16.msra.mxu0 %v3247
    %3499 = vmatpush.bf16.msra.mxu0 %v3245
    %3500 = vmatpush.bf16.msra.mxu0 %v3243
    %3501 = vmatpush.bf16.msra.mxu0 %v3241
    %3502 = vmatpush.bf16.msra.mxu0 %v3239
    %3503 = vmatmul.bf16.gmra.mxu0 %v2713
    %v3504 = vpop.f32.mrf.mxu0
    %v3505 = vadd.f32 %v2851, %v3504
    %v3506 = vpop.f32.mrf.mxu0
    %3507 = vdwg.mxu0
    %3508 = vmatpush.bf16.msra.mxu0 %v3269
    %3509 = vmatpush.bf16.msra.mxu0 %v3267
    %3510 = vmatpush.bf16.msra.mxu0 %v3265
    %3511 = vmatpush.bf16.msra.mxu0 %v3263
    %3512 = vmatpush.bf16.msra.mxu0 %v3261
    %3513 = vmatpush.bf16.msra.mxu0 %v3259
    %3514 = vmatpush.bf16.msra.mxu0 %v3257
    %3515 = vmatpush.bf16.msra.mxu0 %v3255
    %3516 = vmatmul.bf16.gmra.mxu0 %v2714
    %v3517 = vpop.f32.mrf.mxu0
    %v3518 = vadd.f32 %v3505, %v3517
    %v3519 = vpop.f32.mrf.mxu0
    %3520 = vdwg.mxu0
    %3521 = vmatpush.bf16.msra.mxu0 %v3285
    %3522 = vmatpush.bf16.msra.mxu0 %v3283
    %3523 = vmatpush.bf16.msra.mxu0 %v3281
    %3524 = vmatpush.bf16.msra.mxu0 %v3279
    %3525 = vmatpush.bf16.msra.mxu0 %v3277
    %3526 = vmatpush.bf16.msra.mxu0 %v3275
    %3527 = vmatpush.bf16.msra.mxu0 %v3273
    %3528 = vmatpush.bf16.msra.mxu0 %v3271
    %3529 = vmatmul.bf16.gmra.mxu0 %v2715
    %v3530 = vpop.f32.mrf.mxu0
    %v3531 = vadd.f32 %v3518, %v3530
    %v3532 = vpop.f32.mrf.mxu0
    %3533 = vdwg.mxu0
    %3534 = vmatpush.bf16.msra.mxu0 %v3301
    %3535 = vmatpush.bf16.msra.mxu0 %v3299
    %3536 = vmatpush.bf16.msra.mxu0 %v3297
    %3537 = vmatpush.bf16.msra.mxu0 %v3295
    %3538 = vmatpush.bf16.msra.mxu0 %v3293
    %3539 = vmatpush.bf16.msra.mxu0 %v3291
    %3540 = vmatpush.bf16.msra.mxu0 %v3289
    %3541 = vmatpush.bf16.msra.mxu0 %v3287
    %3542 = vmatmul.bf16.gmra.mxu0 %v2716
    %v3543 = vpop.f32.mrf.mxu0
    %v3544 = vadd.f32 %v3531, %v3543
    %v3545 = vpop.f32.mrf.mxu0
    %3546 = vdwg.mxu0
    %3547 = vmatpush.bf16.msra.mxu0 %v3317
    %3548 = vmatpush.bf16.msra.mxu0 %v3315
    %3549 = vmatpush.bf16.msra.mxu0 %v3313
    %3550 = vmatpush.bf16.msra.mxu0 %v3311
    %3551 = vmatpush.bf16.msra.mxu0 %v3309
    %3552 = vmatpush.bf16.msra.mxu0 %v3307
    %3553 = vmatpush.bf16.msra.mxu0 %v3305
    %3554 = vmatpush.bf16.msra.mxu0 %v3303
    %3555 = vmatmul.bf16.gmra.mxu0 %v2717
    %v3556 = vpop.f32.mrf.mxu0
    %v3557 = vadd.f32 %v3544, %v3556
    %v3558 = vpop.f32.mrf.mxu0
    %3559 = vdwg.mxu0
    %3560 = vmatpush.bf16.msra.mxu0 %v3333
    %3561 = vmatpush.bf16.msra.mxu0 %v3331
    %3562 = vmatpush.bf16.msra.mxu0 %v3329
    %3563 = vmatpush.bf16.msra.mxu0 %v3327
    %3564 = vmatpush.bf16.msra.mxu0 %v3325
    %3565 = vmatpush.bf16.msra.mxu0 %v3323
    %3566 = vmatpush.bf16.msra.mxu0 %v3321
    %3567 = vmatpush.bf16.msra.mxu0 %v3319
    %3568 = vmatmul.bf16.gmra.mxu0 %v2718
    %v3569 = vpop.f32.mrf.mxu0
    %v3570 = vadd.f32 %v3557, %v3569
    %v3571 = vpop.f32.mrf.mxu0
    %3572 = vdwg.mxu0
    %3573 = vmatpush.bf16.msra.mxu0 %v3349
    %3574 = vmatpush.bf16.msra.mxu0 %v3347
    %3575 = vmatpush.bf16.msra.mxu0 %v3345
    %3576 = vmatpush.bf16.msra.mxu0 %v3343
    %3577 = vmatpush.bf16.msra.mxu0 %v3341
    %3578 = vmatpush.bf16.msra.mxu0 %v3339
    %3579 = vmatpush.bf16.msra.mxu0 %v3337
    %3580 = vmatpush.bf16.msra.mxu0 %v3335
    %3581 = vmatmul.bf16.gmra.mxu0 %v2719
    %v3582 = vpop.f32.mrf.mxu0
    %v3583 = vadd.f32 %v3570, %v3582
    %v3584 = vpop.f32.mrf.mxu0
    %3585 = vdwg.mxu0
    %3586 = vmatpush.bf16.msra.mxu0 %v3365
    %3587 = vmatpush.bf16.msra.mxu0 %v3363
    %3588 = vmatpush.bf16.msra.mxu0 %v3361
    %3589 = vmatpush.bf16.msra.mxu0 %v3359
    %3590 = vmatpush.bf16.msra.mxu0 %v3357
    %3591 = vmatpush.bf16.msra.mxu0 %v3355
    %3592 = vmatpush.bf16.msra.mxu0 %v3353
    %3593 = vmatpush.bf16.msra.mxu0 %v3351
    %3594 = vmatmul.bf16.gmra.mxu0 %v2720
    %v3595 = vpop.f32.mrf.mxu0
    %v3596 = vadd.f32 %v3583, %v3595
    %v3597 = vpop.f32.mrf.mxu0
    %3598 = vdwg.mxu0
    %3599 = vmatpush.bf16.msra.mxu0 %v3254
    %3600 = vmatpush.bf16.msra.mxu0 %v3252
    %3601 = vmatpush.bf16.msra.mxu0 %v3250
    %3602 = vmatpush.bf16.msra.mxu0 %v3248
    %3603 = vmatpush.bf16.msra.mxu0 %v3246
    %3604 = vmatpush.bf16.msra.mxu0 %v3244
    %3605 = vmatpush.bf16.msra.mxu0 %v3242
    %3606 = vmatpush.bf16.msra.mxu0 %v3240
    %3607 = vmatmul.bf16.gmra.mxu0 %v2713
    %v3608 = vpop.f32.mrf.mxu0
    %v3609 = vadd.f32 %v2852, %v3608
    %v3610 = vpop.f32.mrf.mxu0
    %3611 = vdwg.mxu0
    %3612 = vmatpush.bf16.msra.mxu0 %v3270
    %3613 = vmatpush.bf16.msra.mxu0 %v3268
    %3614 = vmatpush.bf16.msra.mxu0 %v3266
    %3615 = vmatpush.bf16.msra.mxu0 %v3264
    %3616 = vmatpush.bf16.msra.mxu0 %v3262
    %3617 = vmatpush.bf16.msra.mxu0 %v3260
    %3618 = vmatpush.bf16.msra.mxu0 %v3258
    %3619 = vmatpush.bf16.msra.mxu0 %v3256
    %3620 = vmatmul.bf16.gmra.mxu0 %v2714
    %v3621 = vpop.f32.mrf.mxu0
    %v3622 = vadd.f32 %v3609, %v3621
    %v3623 = vpop.f32.mrf.mxu0
    %3624 = vdwg.mxu0
    %3625 = vmatpush.bf16.msra.mxu0 %v3286
    %3626 = vmatpush.bf16.msra.mxu0 %v3284
    %3627 = vmatpush.bf16.msra.mxu0 %v3282
    %3628 = vmatpush.bf16.msra.mxu0 %v3280
    %3629 = vmatpush.bf16.msra.mxu0 %v3278
    %3630 = vmatpush.bf16.msra.mxu0 %v3276
    %3631 = vmatpush.bf16.msra.mxu0 %v3274
    %3632 = vmatpush.bf16.msra.mxu0 %v3272
    %3633 = vmatmul.bf16.gmra.mxu0 %v2715
    %v3634 = vpop.f32.mrf.mxu0
    %v3635 = vadd.f32 %v3622, %v3634
    %v3636 = vpop.f32.mrf.mxu0
    %3637 = vdwg.mxu0
    %3638 = vmatpush.bf16.msra.mxu0 %v3302
    %3639 = vmatpush.bf16.msra.mxu0 %v3300
    %3640 = vmatpush.bf16.msra.mxu0 %v3298
    %3641 = vmatpush.bf16.msra.mxu0 %v3296
    %3642 = vmatpush.bf16.msra.mxu0 %v3294
    %3643 = vmatpush.bf16.msra.mxu0 %v3292
    %3644 = vmatpush.bf16.msra.mxu0 %v3290
    %3645 = vmatpush.bf16.msra.mxu0 %v3288
    %3646 = vmatmul.bf16.gmra.mxu0 %v2716
    %v3647 = vpop.f32.mrf.mxu0
    %v3648 = vadd.f32 %v3635, %v3647
    %v3649 = vpop.f32.mrf.mxu0
    %3650 = vdwg.mxu0
    %3651 = vmatpush.bf16.msra.mxu0 %v3318
    %3652 = vmatpush.bf16.msra.mxu0 %v3316
    %3653 = vmatpush.bf16.msra.mxu0 %v3314
    %3654 = vmatpush.bf16.msra.mxu0 %v3312
    %3655 = vmatpush.bf16.msra.mxu0 %v3310
    %3656 = vmatpush.bf16.msra.mxu0 %v3308
    %3657 = vmatpush.bf16.msra.mxu0 %v3306
    %3658 = vmatpush.bf16.msra.mxu0 %v3304
    %3659 = vmatmul.bf16.gmra.mxu0 %v2717
    %v3660 = vpop.f32.mrf.mxu0
    %v3661 = vadd.f32 %v3648, %v3660
    %v3662 = vpop.f32.mrf.mxu0
    %3663 = vdwg.mxu0
    %3664 = vmatpush.bf16.msra.mxu0 %v3334
    %3665 = vmatpush.bf16.msra.mxu0 %v3332
    %3666 = vmatpush.bf16.msra.mxu0 %v3330
    %3667 = vmatpush.bf16.msra.mxu0 %v3328
    %3668 = vmatpush.bf16.msra.mxu0 %v3326
    %3669 = vmatpush.bf16.msra.mxu0 %v3324
    %3670 = vmatpush.bf16.msra.mxu0 %v3322
    %3671 = vmatpush.bf16.msra.mxu0 %v3320
    %3672 = vmatmul.bf16.gmra.mxu0 %v2718
    %v3673 = vpop.f32.mrf.mxu0
    %v3674 = vadd.f32 %v3661, %v3673
    %v3675 = vpop.f32.mrf.mxu0
    %3676 = vdwg.mxu0
    %3677 = vmatpush.bf16.msra.mxu0 %v3350
    %3678 = vmatpush.bf16.msra.mxu0 %v3348
    %3679 = vmatpush.bf16.msra.mxu0 %v3346
    %3680 = vmatpush.bf16.msra.mxu0 %v3344
    %3681 = vmatpush.bf16.msra.mxu0 %v3342
    %3682 = vmatpush.bf16.msra.mxu0 %v3340
    %3683 = vmatpush.bf16.msra.mxu0 %v3338
    %3684 = vmatpush.bf16.msra.mxu0 %v3336
    %3685 = vmatmul.bf16.gmra.mxu0 %v2719
    %v3686 = vpop.f32.mrf.mxu0
    %v3687 = vadd.f32 %v3674, %v3686
    %v3688 = vpop.f32.mrf.mxu0
    %3689 = vdwg.mxu0
    %3690 = vmatpush.bf16.msra.mxu0 %v3366
    %3691 = vmatpush.bf16.msra.mxu0 %v3364
    %3692 = vmatpush.bf16.msra.mxu0 %v3362
    %3693 = vmatpush.bf16.msra.mxu0 %v3360
    %3694 = vmatpush.bf16.msra.mxu0 %v3358
    %3695 = vmatpush.bf16.msra.mxu0 %v3356
    %3696 = vmatpush.bf16.msra.mxu0 %v3354
    %3697 = vmatpush.bf16.msra.mxu0 %v3352
    %3698 = vmatmul.bf16.gmra.mxu0 %v2720
    %v3699 = vpop.f32.mrf.mxu0
    %v3700 = vadd.f32 %v3687, %v3699
    %v3701 = vpop.f32.mrf.mxu0
    %3702 = vdwg.mxu0
    %v3703 = vmax.f32 %v3596, 0.0
    %v3704 = vmax.f32 %v3700, 0.0
    %v3705 = vpack.c.bf16 %v3703, %v3703
    %v3706 = vpack.c.bf16 %v3704, %v3704
    %v3707 = vld [vmem:[#allocation15] sm:$0xf]
    %v3708 = vld [vmem:[#allocation15 + $0x4] sm:$0xf]
    %v3709 = vld [vmem:[#allocation15 + $0x8] sm:$0xf]
    %v3710 = vld [vmem:[#allocation15 + $0xc] sm:$0xf]
    %v3711 = vld [vmem:[#allocation15 + $0x10] sm:$0xf]
    %v3712 = vld [vmem:[#allocation15 + $0x14] sm:$0xf]
    %v3713 = vld [vmem:[#allocation15 + $0x18] sm:$0xf]
    %v3714 = vld [vmem:[#allocation15 + $0x1c] sm:$0xf]
    %v3715 = vld [vmem:[#allocation15 + $0x20] sm:$0xf]
    %v3716 = vld [vmem:[#allocation15 + $0x24] sm:$0xf]
    %v3717 = vld [vmem:[#allocation15 + $0x28] sm:$0xf]
    %v3718 = vld [vmem:[#allocation15 + $0x2c] sm:$0xf]
    %v3719 = vld [vmem:[#allocation15 + $0x30] sm:$0xf]
    %v3720 = vld [vmem:[#allocation15 + $0x34] sm:$0xf]
    %v3721 = vld [vmem:[#allocation15 + $0x38] sm:$0xf]
    %v3722 = vld [vmem:[#allocation15 + $0x3c] sm:$0xf]
    %v3723 = vld [vmem:[#allocation15 + $0x40] sm:$0xf]
    %v3724 = vld [vmem:[#allocation15 + $0x44] sm:$0xf]
    %v3725 = vld [vmem:[#allocation15 + $0x48] sm:$0xf]
    %v3726 = vld [vmem:[#allocation15 + $0x4c] sm:$0xf]
    %v3727 = vld [vmem:[#allocation15 + $0x50] sm:$0xf]
    %v3728 = vld [vmem:[#allocation15 + $0x54] sm:$0xf]
    %v3729 = vld [vmem:[#allocation15 + $0x58] sm:$0xf]
    %v3730 = vld [vmem:[#allocation15 + $0x5c] sm:$0xf]
    %v3731 = vld [vmem:[#allocation15 + $0x60] sm:$0xf]
    %v3732 = vld [vmem:[#allocation15 + $0x64] sm:$0xf]
    %v3733 = vld [vmem:[#allocation15 + $0x68] sm:$0xf]
    %v3734 = vld [vmem:[#allocation15 + $0x6c] sm:$0xf]
    %v3735 = vld [vmem:[#allocation15 + $0x70] sm:$0xf]
    %v3736 = vld [vmem:[#allocation15 + $0x74] sm:$0xf]
    %v3737 = vld [vmem:[#allocation15 + $0x78] sm:$0xf]
    %v3738 = vld [vmem:[#allocation15 + $0x7c] sm:$0xf]
    %v3739 = vld [vmem:[%s10] sm:$0x1]
    %v3741 = vperm.slane %v3739, 0
    %v3775 = vunpack.c.l.b16 %v3707
    %v3776 = vunpack.c.l.b16 %v3708
    %v3777 = vunpack.c.l.b16 %v3709
    %v3778 = vunpack.c.l.b16 %v3710
    %v3779 = vunpack.c.l.b16 %v3711
    %v3780 = vunpack.c.l.b16 %v3712
    %v3781 = vunpack.c.l.b16 %v3713
    %v3782 = vunpack.c.l.b16 %v3714
    %v3783 = vunpack.c.l.b16 %v3715
    %v3784 = vunpack.c.l.b16 %v3716
    %v3785 = vunpack.c.l.b16 %v3717
    %v3786 = vunpack.c.l.b16 %v3718
    %v3787 = vunpack.c.l.b16 %v3719
    %v3788 = vunpack.c.l.b16 %v3720
    %v3789 = vunpack.c.l.b16 %v3721
    %v3790 = vunpack.c.l.b16 %v3722
    %v3791 = vunpack.c.l.b16 %v3723
    %v3792 = vunpack.c.l.b16 %v3724
    %v3793 = vunpack.c.l.b16 %v3725
    %v3794 = vunpack.c.l.b16 %v3726
    %v3795 = vunpack.c.l.b16 %v3727
    %v3796 = vunpack.c.l.b16 %v3728
    %v3797 = vunpack.c.l.b16 %v3729
    %v3798 = vunpack.c.l.b16 %v3730
    %v3799 = vunpack.c.l.b16 %v3731
    %v3800 = vunpack.c.l.b16 %v3732
    %v3801 = vunpack.c.l.b16 %v3733
    %v3802 = vunpack.c.l.b16 %v3734
    %v3803 = vunpack.c.l.b16 %v3735
    %v3804 = vunpack.c.l.b16 %v3736
    %v3805 = vunpack.c.l.b16 %v3737
    %v3806 = vunpack.c.l.b16 %v3738
    %v3807 = vpack.c.b16 %v3776, %v3775
    %v3808 = vpack.c.b16 %v3778, %v3777
    %v3809 = vpack.c.b16 %v3780, %v3779
    %v3810 = vpack.c.b16 %v3782, %v3781
    %v3811 = vpack.c.b16 %v3784, %v3783
    %v3812 = vpack.c.b16 %v3786, %v3785
    %v3813 = vpack.c.b16 %v3788, %v3787
    %v3814 = vpack.c.b16 %v3790, %v3789
    %v3815 = vpack.c.b16 %v3792, %v3791
    %v3816 = vpack.c.b16 %v3794, %v3793
    %v3817 = vpack.c.b16 %v3796, %v3795
    %v3818 = vpack.c.b16 %v3798, %v3797
    %v3819 = vpack.c.b16 %v3800, %v3799
    %v3820 = vpack.c.b16 %v3802, %v3801
    %v3821 = vpack.c.b16 %v3804, %v3803
    %v3822 = vpack.c.b16 %v3806, %v3805
    %3839 = vmatpush.bf16.msra.mxu0 %v3814
    %3840 = vmatpush.bf16.msra.mxu0 %v3813
    %3841 = vmatpush.bf16.msra.mxu0 %v3812
    %3842 = vmatpush.bf16.msra.mxu0 %v3811
    %3843 = vmatpush.bf16.msra.mxu0 %v3810
    %3844 = vmatpush.bf16.msra.mxu0 %v3809
    %3845 = vmatpush.bf16.msra.mxu0 %v3808
    %3846 = vmatpush.bf16.msra.mxu0 %v3807
    %3847 = vmatmul.bf16.gmra.mxu0 %v3705
    %v3848 = vpop.f32.mrf.mxu0
    %v3849 = vadd.f32 %v3741, %v3848
    %v3850 = vpop.f32.mrf.mxu0
    %3851 = vdwg.mxu0
    %3852 = vmatpush.bf16.msra.mxu0 %v3822
    %3853 = vmatpush.bf16.msra.mxu0 %v3821
    %3854 = vmatpush.bf16.msra.mxu0 %v3820
    %3855 = vmatpush.bf16.msra.mxu0 %v3819
    %3856 = vmatpush.bf16.msra.mxu0 %v3818
    %3857 = vmatpush.bf16.msra.mxu0 %v3817
    %3858 = vmatpush.bf16.msra.mxu0 %v3816
    %3859 = vmatpush.bf16.msra.mxu0 %v3815
    %3860 = vmatmul.bf16.gmra.mxu0 %v3706
    %v3861 = vpop.f32.mrf.mxu0
    %v3862 = vadd.f32 %v3849, %v3861
    %v3863 = vpop.f32.mrf.mxu0
    %3864 = vdwg.mxu0
    %v3865 = vmax.f32 %v3862, 0.0
    %v3866 = vpack.c.bf16 %v3865, %v3865
    %v3867 = vld [vmem:[%s11] sm:$0x1]
    %v3868 = vld [vmem:[#allocation2] sm:$0x1]
    %3870 = vset.pattern.permute.xlu0 0
    %3871 = vperm.xlu0 %3870, %v3868
    %v3872 = vpop.permute.xlu0 %3871
    %v3874 = vperm.slane %v3872, 0
    %3875 = vmatpush.bf16.xpose.msra.mxu0 0
    %3876 = vmatpush.bf16.xpose.msra.mxu0 0
    %3877 = vmatpush.bf16.xpose.msra.mxu0 0
    %3878 = vmatpush.bf16.xpose.msra.mxu0 0
    %3879 = vmatpush.bf16.xpose.msra.mxu0 0
    %3880 = vmatpush.bf16.xpose.msra.mxu0 0
    %3881 = vmatpush.bf16.xpose.msra.mxu0 0
    %3882 = vmatpush.bf16.xpose.msra.mxu0 %v3866
    %3883 = vmatmul.bf16.gmra.mxu0 %v3867
    %v3884 = vpop.f32.mrf.mxu0
    %v3885 = vadd.f32 %v3874, %v3884
    %v3886 = vpop.f32.mrf.mxu0
    %3887 = vdwg.mxu0
    %vm3888 = vcmask 57344
    %3889 = vst.msk [vmem:[#allocation17] sm:$0x1] %vm3888, %v3885
    // Predicated region
    $region86: #{tpu_custom_call.1} parent=1 // pred_check
      _
    $region87: #{tpu_custom_call.1} parent=1 // pred_check_branch
      %3891 = sbr.rel (0) target = $region89
    $region88: #{tpu_custom_call.1} parent=1 // pred_region
      %3893 = vsyncadd [#allocation5], 0
      %s3895 = sshll.u32 [#allocation17], 4
      %s3896 = int_to_ptr.vmem [resolvable:$true] %s3895
      %s3897 = sshll.u32 %s13, 4
      %s3898 = int_to_ptr.hbm [resolvable:$true] %s3897
      %3900 = dma.vmem_to_hbm [thread:$0]  %s3896, 16, %s3898, [#allocation5]
    $region89: #{tpu_custom_call.1} parent=1 // pred_fallthru
      _
    // Predicated region
    $region90: #{tpu_custom_call.1} parent=1 // pred_check
      _
    $region91: #{tpu_custom_call.1} parent=1 // pred_check_branch
      %3902 = sbr.rel (0) target = $region93
    $region92: #{tpu_custom_call.1} parent=1 // pred_region
      %3904 = dma.done [#allocation5], 16
    $region93: #{tpu_custom_call.1} parent=1 // pred_fallthru
      _
    %3905 = vsyncpa [#allocation4], 1
    %3906 = vsyncpa [#allocation7], 1
    %3907 = vsyncpa [#allocation10], 1
    %3908 = vsyncpa [#allocation13], 1
    %3909 = vsyncpa [#allocation16], 1
    %3910 = vsyncpa [#allocation5], 1

</llo_original>
